<compile_context>
chip_gen: v6e
topology: v6e:2x2x1
jax: 0.10.0
libtpu: 0.0.40
codegen_flags: <defaults>
</compile_context>

<pallas_src>
import functools
import math

import jax
import jax.numpy as jnp
from jax import lax
from jax.experimental import pallas as pl
from jax.experimental.pallas import tpu as pltpu


_STATIC_UNROLL_GROUPS = 32   # static-unroll the group-store loop up to this many groups
_MAX_GROUP_LANES = 1024      # cap on a concatenated group's lane width


def _round_up(x, m):
    return ((x + m - 1) // m) * m


def _group_size(q_dim):
    """Smallest G such that G*q_dim is a multiple of 128 (lane-dense stores), capped."""
    g = 128 // math.gcd(int(q_dim), 128)
    return g if g * q_dim <= _MAX_GROUP_LANES else 1


def _store_outer_product(z_ref, a, b, group):
    """z_ref[:, p*Q + q] = a[:, p] * b[:, q], written with lane-dense group stores."""
    p_dim = a.shape[1]
    q_dim = b.shape[1]
    width = group * q_dim
    n_full = p_dim // group
    rem = p_dim - n_full * group

    def build(a_block, g_size):
        pieces = [a_block[:, j:j + 1] * b for j in range(g_size)]
        blk = pieces[0] if g_size == 1 else jnp.concatenate(pieces, axis=-1)
        return blk.astype(z_ref.dtype)

    if n_full <= _STATIC_UNROLL_GROUPS:
        for g in range(n_full):                                   # static unroll
            z_ref[:, g * width:(g + 1) * width] = build(
                a[:, g * group:(g + 1) * group], group)
    else:
        # Large P: partially unrolled fori_loop keeps code size / live ranges bounded.
        def body(g, carry):
            a_grp = lax.dynamic_slice_in_dim(a, g * group, group, axis=1)
            start = g * width
            if width % 128 == 0:
                start = pl.multiple_of(start, 128)
            z_ref[:, pl.ds(start, width)] = build(a_grp, group)
            return carry
        lax.fori_loop(0, n_full, body, 0, unroll=4)
    if rem:
        z_ref[:, n_full * width:n_full * width + rem * q_dim] = build(
            a[:, n_full * group:p_dim], rem)


def _gbm_forward_kernel(cditerations, numin, numout, nummap, groups,
                        x_ref, y_ref,
                        w_h_ref, w_y_ref, w_x_ref,
                        ib_ref, ob_ref, hb_ref,
                        out_ref, z_ref):
    x = x_ref[...]                       # (TM, numin)   f32
    y = y_ref[...]                       # (TM, numout)  f32
    tm = x.shape[0]

    # Hoisted bias broadcasts (JAX does not CSE broadcast_in_dim across the CD loop).
    ib_b = jnp.broadcast_to(ib_ref[...], (tm, numin))
    ob_b = jnp.broadcast_to(ob_ref[...], (tm, numout))
    hb_b = jnp.broadcast_to(hb_ref[...], (tm, nummap))

    def gated_sigmoid(a, b, w_ref, bias_b, group):
        """sigmoid(bias + Z @ W2d), Z[n, p*Q+q] = a[n,p]*b[n,q], one long MXU matmul."""
        p_dim, q_dim = a.shape[1], b.shape[1]
        _store_outer_product(z_ref, a, b, group)          # lane-dense group stores
        z = z_ref[:, :p_dim * q_dim]                      # weight dtype (bf16-capable)
        logits = jnp.dot(z, w_ref[...],
                         preferred_element_type=jnp.float32) + bias_b
        # Exact sigmoid as a single EUP tanh push (no approx-reciprocal error).
        return 0.5 * jnp.tanh(0.5 * logits) + 0.5

    # TODO(synk): hidprobs/outprobs bodies are not in the provided source; this
    # uses the standard unfactored-GBM conditionals (sigmoid of the gated
    # bilinear pre-activation), with x_probs reconstructed from (y_probs, h).
    hidprobs = lambda xv, yv: gated_sigmoid(xv, yv, w_h_ref, hb_b, groups[0])  # p(h|x,y)
    outprobs = lambda xv, hv: gated_sigmoid(xv, hv, w_y_ref, ob_b, groups[1])  # p(y|x,h)
    inprobs = lambda yv, hv: gated_sigmoid(yv, hv, w_x_ref, ib_b, groups[2])   # p(x|y,h)

    h = hidprobs(x, y)
    x_p, y_p = x, y
    if cditerations <= 2:
        # Short CD chain: static unroll (LLO scheduler sees the whole body).
        for _ in range(cditerations):
            y_p = outprobs(x, h)
            x_p = inprobs(y_p, h)
            h = hidprobs(x, y_p)
    else:
        # Long CD chain: fori_loop keeps the working set to one iteration.
        def body(_, carry):
            _, _, h_c = carry
            y_n = outprobs(x, h_c)
            x_n = inprobs(y_n, h_c)
            h_n = hidprobs(x, y_n)
            return (x_n, y_n, h_n)
        x_p, y_p, h = lax.fori_loop(0, cditerations, body, (x_p, y_p, h))

    # One lane-dense slab store [x_probs | y_probs]; split in the wrapper.
    out_ref[...] = jnp.concatenate([x_p, y_p], axis=-1).astype(out_ref.dtype)


def prepare_gbm_params(weights, ib, ob, hb, weight_dtype=jnp.float32):
    """Parameter-static preprocessing. Call ONCE outside the training step.

    Builds the three 2-D (P*Q, R) weight views used by the kernel so no
    transpose / extra HBM round-trip of W is paid inside the jitted forward.
    On v6e/v7x pass weight_dtype=jnp.bfloat16 for large W: it halves the
    resident weight + Z-scratch VMEM and uses the MXU's native bf16 rate.
    """
    numin, numout, nummap = weights.shape
    w = weights.astype(jnp.float32)
    return dict(
        # row i*numout + j  ->  W[i, j, :]          (p(h | x, y))
        w_h2d=w.reshape(numin * numout, nummap).astype(weight_dtype),
        # row i*nummap + k  ->  W[i, :, k]          (p(y | x, h))
        w_y2d=jnp.transpose(w, (0, 2, 1)).reshape(numin * nummap,
                                                  numout).astype(weight_dtype),
        # row j*nummap + k  ->  W[:, j, k]          (p(x | y, h))
        w_x2d=jnp.transpose(w, (1, 2, 0)).reshape(numout * nummap,
                                                  numin).astype(weight_dtype),
        ib=ib.reshape(1, numin).astype(jnp.float32),
        ob=ob.reshape(1, numout).astype(jnp.float32),
        hb=hb.reshape(1, nummap).astype(jnp.float32),
    )


def _resident_spec(shape):
    """Constant-index-map (VMEM-resident) input; single-buffered if supported."""
    index_map = lambda i: (0,) * len(shape)
    try:
        return pl.BlockSpec(shape, index_map, pipeline_mode=pl.Buffered(1))
    except (AttributeError, TypeError):
        return pl.BlockSpec(shape, index_map)


def unfactored_gbm_forward(inputs, outputs, params, *, cditerations=1,
                           block_m=256):
    B, numin = inputs.shape
    B2, numout = outputs.shape
    assert B == B2
    nummap = params["w_h2d"].shape[1]
    assert params["w_h2d"].shape == (numin * numout, nummap)
    assert cditerations >= 1
    w_dtype = params["w_h2d"].dtype

    # Batch tile: fill the MXU, but keep >=2 grid steps whenever B allows it so
    # both v7x TensorCores get work (grid axis is "parallel").
    if B <= block_m:
        tm = max(8, _round_up(pl.cdiv(B, 2), 8))
    else:
        tm = block_m
    tm = min(tm, _round_up(B, 8))
    grid = (pl.cdiv(B, tm),)

    # Shared outer-product scratch (the three conditionals use it sequentially).
    z_width = _round_up(max(numin * numout, numin * nummap, numout * nummap), 128)
    groups = (_group_size(numout), _group_size(nummap), _group_size(nummap))

    act_spec = lambda n: pl.BlockSpec((tm, n), lambda i: (i, 0))

    # Exact VMEM budget: 1x resident weights/biases (single-buffered), 2x-buffered
    # activation/output tiles, one shared Z scratch, ~2 MiB margin; clamped to the
    # actual chip capacity (v7x = 64 MiB physical).
    try:
        phys_vmem = int(getattr(pltpu.get_tpu_info(), "vmem_capacity_bytes",
                                64 << 20))
    except Exception:
        phys_vmem = 64 << 20   # conservative fallback (v7x)
    w_bytes = sum(params[k].size * params[k].dtype.itemsize
                  for k in ("w_h2d", "w_y2d", "w_x2d"))
    bias_bytes = sum(params[k].size * params[k].dtype.itemsize
                     for k in ("ib", "ob", "hb"))
    io_bytes = 2 * 2 * 4 * tm * (numin + numout)   # double-buffered x,y,out tiles
    z_bytes = tm * z_width * jnp.dtype(w_dtype).itemsize
    needed = w_bytes + bias_bytes + io_bytes + z_bytes + (2 << 20)
    vmem_limit = int(min(max(needed, 16 << 20), phys_vmem - (4 << 20)))

    kernel = functools.partial(_gbm_forward_kernel, cditerations, numin, numout,
                               nummap, groups)
    # NOTE: if the three (bf16) weight views exceed ~40-48 MiB on v7x, switch
    # w_y2d/w_x2d below to streamed pl.Buffered(2) tiles instead of residency.
    slab = pl.pallas_call(
        kernel,
        out_shape=jax.ShapeDtypeStruct((B, numin + numout), jnp.float32),
        grid_spec=pltpu.PrefetchScalarGridSpec(
            num_scalar_prefetch=0,
            grid=grid,
            in_specs=[
                act_spec(numin),                             # x batch tile
                act_spec(numout),                            # y batch tile
                _resident_spec((numin * numout, nummap)),    # W views: resident
                _resident_spec((numin * nummap, numout)),
                _resident_spec((numout * nummap, numin)),
                _resident_spec((1, numin)),                  # biases: resident
                _resident_spec((1, numout)),
                _resident_spec((1, nummap)),
            ],
            out_specs=pl.BlockSpec((tm, numin + numout), lambda i: (i, 0)),
            scratch_shapes=[
                pltpu.VMEM((tm, z_width), w_dtype),          # shared Z scratch
            ]),
        compiler_params=pltpu.CompilerParams(
            dimension_semantics=("parallel",),               # dual-TC sharding on v7x
            vmem_limit_bytes=vmem_limit),
    )(inputs.astype(jnp.float32), outputs.astype(jnp.float32),
      params["w_h2d"], params["w_y2d"], params["w_x2d"],
      params["ib"], params["ob"], params["hb"])
    return slab[:, :numin], slab[:, numin:]


def _reference_forward(x, y, W, ib, ob, hb, cditerations):
    sig = jax.nn.sigmoid
    hi = lax.Precision.HIGHEST
    hid = lambda xv, yv: sig(jnp.einsum('bi,bj,ijk->bk', xv, yv, W, precision=hi) + hb)
    out = lambda xv, hv: sig(jnp.einsum('bi,bk,ijk->bj', xv, hv, W, precision=hi) + ob)
    inn = lambda yv, hv: sig(jnp.einsum('bj,bk,ijk->bi', yv, hv, W, precision=hi) + ib)
    h = hid(x, y)
    x_p, y_p = x, y
    for _ in range(cditerations):
        y_p = out(x, h)
        x_p = inn(y_p, h)
        h = hid(x, y_p)
    return x_p, y_p


if __name__ == "__main__":
    numin, numout, nummap = 16, 16, 32
    batchsize = 64
    cditerations = 2
    alpha = 0.001

    key = jax.random.PRNGKey(0)
    k_w, k_x, k_y = jax.random.split(key, 3)

    # Deterministic, in-script parameter init (matches the module's __init__).
    weights = jax.random.normal(k_w, (numin, numout, nummap), jnp.float32) * alpha
    ib = jnp.ones((numin,), jnp.float32) * 0.5
    ob = jnp.zeros((numout,), jnp.float32)
    hb = jnp.zeros((nummap,), jnp.float32)

    inputs = (jax.random.uniform(k_x, (batchsize, numin)) > 0.5).astype(jnp.float32)
    outputs = (jax.random.uniform(k_y, (batchsize, numout)) > 0.5).astype(jnp.float32)

    # Parameter-static prep (2-D weight views) done once, outside the jitted step.
    params = prepare_gbm_params(weights, ib, ob, hb)

    # block_m=32 with batch=64 exercises a 2-step "parallel" batch grid.
    fwd = jax.jit(functools.partial(unfactored_gbm_forward,
                                    cditerations=cditerations, block_m=32))
    x_probs, y_probs = fwd(inputs, outputs, params)
    jax.block_until_ready((x_probs, y_probs))

    x_ref, y_ref = _reference_forward(inputs, outputs, weights, ib, ob, hb,
                                      cditerations)
    assert x_probs.shape == (batchsize, numin)
    assert y_probs.shape == (batchsize, numout)
    # Exact tanh-based sigmoid (no approx reciprocal) => tight tolerance.
    assert jnp.allclose(x_probs, x_ref, atol=5e-3, rtol=5e-3), \
        float(jnp.max(jnp.abs(x_probs - x_ref)))
    assert jnp.allclose(y_probs, y_ref, atol=5e-3, rtol=5e-3), \
        float(jnp.max(jnp.abs(y_probs - y_ref)))
    print("KERNEL_OK")
</pallas_src>

<mosaic_0001>
module attributes {stable_mosaic.version = 11 : i64} {
  func.func @_gbm_forward_kernel(%arg0: i32, %arg1: memref<32x16xf32, #tpu.memory_space<vmem>>, %arg2: memref<32x16xf32, #tpu.memory_space<vmem>>, %arg3: memref<256x32xf32, #tpu.memory_space<vmem>>, %arg4: memref<512x16xf32, #tpu.memory_space<vmem>>, %arg5: memref<512x16xf32, #tpu.memory_space<vmem>>, %arg6: memref<1x16xf32, #tpu.memory_space<vmem>>, %arg7: memref<1x16xf32, #tpu.memory_space<vmem>>, %arg8: memref<1x32xf32, #tpu.memory_space<vmem>>, %arg9: memref<32x32xf32, #tpu.memory_space<vmem>>, %arg10: memref<32x512xf32, #tpu.memory_space<vmem>>) attributes {dimension_semantics = [#tpu.dimension_semantics<parallel>], iteration_bounds = array<i64: 2>, scalar_prefetch = 0 : i64, scratch_operands = 1 : i64, tpu.core_type = #tpu.core_type<tc>, window_params = [{transform_indices = @transform_0, window_bounds = array<i64: 32, 16>}, {transform_indices = @transform_1, window_bounds = array<i64: 32, 16>}, {pipeline_mode = #tpu.pipeline_mode<synchronous>, transform_indices = @transform_2, window_bounds = array<i64: 256, 32>}, {pipeline_mode = #tpu.pipeline_mode<synchronous>, transform_indices = @transform_3, window_bounds = array<i64: 512, 16>}, {pipeline_mode = #tpu.pipeline_mode<synchronous>, transform_indices = @transform_4, window_bounds = array<i64: 512, 16>}, {pipeline_mode = #tpu.pipeline_mode<synchronous>, transform_indices = @transform_5, window_bounds = array<i64: 1, 16>}, {pipeline_mode = #tpu.pipeline_mode<synchronous>, transform_indices = @transform_6, window_bounds = array<i64: 1, 16>}, {pipeline_mode = #tpu.pipeline_mode<synchronous>, transform_indices = @transform_7, window_bounds = array<i64: 1, 32>}, {transform_indices = @transform_8, window_bounds = array<i64: 32, 32>}]} {
    %c0 = arith.constant 0 : index
    %c0_0 = arith.constant 0 : index
    %0 = vector.load %arg1[%c0, %c0_0] : memref<32x16xf32, #tpu.memory_space<vmem>>, vector<32x16xf32>
    %c0_1 = arith.constant 0 : index
    %c0_2 = arith.constant 0 : index
    %1 = vector.load %arg2[%c0_1, %c0_2] : memref<32x16xf32, #tpu.memory_space<vmem>>, vector<32x16xf32>
    %c0_3 = arith.constant 0 : index
    %c0_4 = arith.constant 0 : index
    %2 = vector.load %arg6[%c0_3, %c0_4] : memref<1x16xf32, #tpu.memory_space<vmem>>, vector<1x16xf32>
    %3 = vector.shape_cast %2 : vector<1x16xf32> to vector<1x16xf32>
    %4 = vector.broadcast %3 : vector<1x16xf32> to vector<32x16xf32>
    %c0_5 = arith.constant 0 : index
    %c0_6 = arith.constant 0 : index
    %5 = vector.load %arg7[%c0_5, %c0_6] : memref<1x16xf32, #tpu.memory_space<vmem>>, vector<1x16xf32>
    %6 = vector.shape_cast %5 : vector<1x16xf32> to vector<1x16xf32>
    %7 = vector.broadcast %6 : vector<1x16xf32> to vector<32x16xf32>
    %c0_7 = arith.constant 0 : index
    %c0_8 = arith.constant 0 : index
    %8 = vector.load %arg8[%c0_7, %c0_8] : memref<1x32xf32, #tpu.memory_space<vmem>>, vector<1x32xf32>
    %9 = vector.shape_cast %8 : vector<1x32xf32> to vector<1x32xf32>
    %10 = vector.broadcast %9 : vector<1x32xf32> to vector<32x32xf32>
    %11 = vector.extract_strided_slice %0 {offsets = [0, 0], sizes = [32, 8], strides = [1, 1]} : vector<32x16xf32> to vector<32x8xf32>
    %12 = vector.extract_strided_slice %11 {offsets = [0, 0], sizes = [32, 1], strides = [1, 1]} : vector<32x8xf32> to vector<32x1xf32>
    %13 = vector.broadcast %12 : vector<32x1xf32> to vector<32x16xf32>
    %14 = arith.mulf %13, %1 : vector<32x16xf32>
    %15 = vector.extract_strided_slice %11 {offsets = [0, 1], sizes = [32, 1], strides = [1, 1]} : vector<32x8xf32> to vector<32x1xf32>
    %16 = vector.broadcast %15 : vector<32x1xf32> to vector<32x16xf32>
    %17 = arith.mulf %16, %1 : vector<32x16xf32>
    %18 = vector.extract_strided_slice %11 {offsets = [0, 2], sizes = [32, 1], strides = [1, 1]} : vector<32x8xf32> to vector<32x1xf32>
    %19 = vector.broadcast %18 : vector<32x1xf32> to vector<32x16xf32>
    %20 = arith.mulf %19, %1 : vector<32x16xf32>
    %21 = vector.extract_strided_slice %11 {offsets = [0, 3], sizes = [32, 1], strides = [1, 1]} : vector<32x8xf32> to vector<32x1xf32>
    %22 = vector.broadcast %21 : vector<32x1xf32> to vector<32x16xf32>
    %23 = arith.mulf %22, %1 : vector<32x16xf32>
    %24 = vector.extract_strided_slice %11 {offsets = [0, 4], sizes = [32, 1], strides = [1, 1]} : vector<32x8xf32> to vector<32x1xf32>
    %25 = vector.broadcast %24 : vector<32x1xf32> to vector<32x16xf32>
    %26 = arith.mulf %25, %1 : vector<32x16xf32>
    %27 = vector.extract_strided_slice %11 {offsets = [0, 5], sizes = [32, 1], strides = [1, 1]} : vector<32x8xf32> to vector<32x1xf32>
    %28 = vector.broadcast %27 : vector<32x1xf32> to vector<32x16xf32>
    %29 = arith.mulf %28, %1 : vector<32x16xf32>
    %30 = vector.extract_strided_slice %11 {offsets = [0, 6], sizes = [32, 1], strides = [1, 1]} : vector<32x8xf32> to vector<32x1xf32>
    %31 = vector.broadcast %30 : vector<32x1xf32> to vector<32x16xf32>
    %32 = arith.mulf %31, %1 : vector<32x16xf32>
    %33 = vector.extract_strided_slice %11 {offsets = [0, 7], sizes = [32, 1], strides = [1, 1]} : vector<32x8xf32> to vector<32x1xf32>
    %34 = vector.broadcast %33 : vector<32x1xf32> to vector<32x16xf32>
    %35 = arith.mulf %34, %1 : vector<32x16xf32>
    %36 = tpu.concatenate %14, %17, %20, %23, %26, %29, %32, %35 in 1 : vector<32x16xf32>, vector<32x16xf32>, vector<32x16xf32>, vector<32x16xf32>, vector<32x16xf32>, vector<32x16xf32>, vector<32x16xf32>, vector<32x16xf32> -> vector<32x128xf32>
    %c0_9 = arith.constant 0 : index
    %c0_10 = arith.constant 0 : index
    %37 = vector.load %arg10[%c0_9, %c0_10] : memref<32x512xf32, #tpu.memory_space<vmem>>, vector<32x128xf32>
    tpu.vector_store %arg10[%c0_9, %c0_10], %36 {strides = array<i32>} : memref<32x512xf32, #tpu.memory_space<vmem>>, vector<32x128xf32>,
    %38 = vector.extract_strided_slice %0 {offsets = [0, 8], sizes = [32, 8], strides = [1, 1]} : vector<32x16xf32> to vector<32x8xf32>
    %39 = vector.extract_strided_slice %38 {offsets = [0, 0], sizes = [32, 1], strides = [1, 1]} : vector<32x8xf32> to vector<32x1xf32>
    %40 = vector.broadcast %39 : vector<32x1xf32> to vector<32x16xf32>
    %41 = arith.mulf %40, %1 : vector<32x16xf32>
    %42 = vector.extract_strided_slice %38 {offsets = [0, 1], sizes = [32, 1], strides = [1, 1]} : vector<32x8xf32> to vector<32x1xf32>
    %43 = vector.broadcast %42 : vector<32x1xf32> to vector<32x16xf32>
    %44 = arith.mulf %43, %1 : vector<32x16xf32>
    %45 = vector.extract_strided_slice %38 {offsets = [0, 2], sizes = [32, 1], strides = [1, 1]} : vector<32x8xf32> to vector<32x1xf32>
    %46 = vector.broadcast %45 : vector<32x1xf32> to vector<32x16xf32>
    %47 = arith.mulf %46, %1 : vector<32x16xf32>
    %48 = vector.extract_strided_slice %38 {offsets = [0, 3], sizes = [32, 1], strides = [1, 1]} : vector<32x8xf32> to vector<32x1xf32>
    %49 = vector.broadcast %48 : vector<32x1xf32> to vector<32x16xf32>
    %50 = arith.mulf %49, %1 : vector<32x16xf32>
    %51 = vector.extract_strided_slice %38 {offsets = [0, 4], sizes = [32, 1], strides = [1, 1]} : vector<32x8xf32> to vector<32x1xf32>
    %52 = vector.broadcast %51 : vector<32x1xf32> to vector<32x16xf32>
    %53 = arith.mulf %52, %1 : vector<32x16xf32>
    %54 = vector.extract_strided_slice %38 {offsets = [0, 5], sizes = [32, 1], strides = [1, 1]} : vector<32x8xf32> to vector<32x1xf32>
    %55 = vector.broadcast %54 : vector<32x1xf32> to vector<32x16xf32>
    %56 = arith.mulf %55, %1 : vector<32x16xf32>
    %57 = vector.extract_strided_slice %38 {offsets = [0, 6], sizes = [32, 1], strides = [1, 1]} : vector<32x8xf32> to vector<32x1xf32>
    %58 = vector.broadcast %57 : vector<32x1xf32> to vector<32x16xf32>
    %59 = arith.mulf %58, %1 : vector<32x16xf32>
    %60 = vector.extract_strided_slice %38 {offsets = [0, 7], sizes = [32, 1], strides = [1, 1]} : vector<32x8xf32> to vector<32x1xf32>
    %61 = vector.broadcast %60 : vector<32x1xf32> to vector<32x16xf32>
    %62 = arith.mulf %61, %1 : vector<32x16xf32>
    %63 = tpu.concatenate %41, %44, %47, %50, %53, %56, %59, %62 in 1 : vector<32x16xf32>, vector<32x16xf32>, vector<32x16xf32>, vector<32x16xf32>, vector<32x16xf32>, vector<32x16xf32>, vector<32x16xf32>, vector<32x16xf32> -> vector<32x128xf32>
    %c0_11 = arith.constant 0 : index
    %c128 = arith.constant 128 : index
    %64 = vector.load %arg10[%c0_11, %c128] : memref<32x512xf32, #tpu.memory_space<vmem>>, vector<32x128xf32>
    tpu.vector_store %arg10[%c0_11, %c128], %63 {strides = array<i32>} : memref<32x512xf32, #tpu.memory_space<vmem>>, vector<32x128xf32>,
    %c0_12 = arith.constant 0 : index
    %c0_13 = arith.constant 0 : index
    %65 = vector.load %arg10[%c0_12, %c0_13] : memref<32x512xf32, #tpu.memory_space<vmem>>, vector<32x256xf32>
    %c0_14 = arith.constant 0 : index
    %c0_15 = arith.constant 0 : index
    %66 = vector.load %arg3[%c0_14, %c0_15] : memref<256x32xf32, #tpu.memory_space<vmem>>, vector<256x32xf32>
    %cst = arith.constant dense<0.000000e+00> : vector<32x32xf32>
    %67 = tpu.matmul %65, %66, %cst {dimension_numbers = #tpu.dot_dimension_numbers<[1], [0], [0], [1], [0, 0, 1, 1], [], []>} : vector<32x256xf32>, vector<256x32xf32>, vector<32x32xf32> -> vector<32x32xf32>
    %68 = arith.addf %67, %10 : vector<32x32xf32>
    %cst_16 = arith.constant 5.000000e-01 : f32
    %69 = vector.broadcast %cst_16 : f32 to vector<32x32xf32>
    %70 = arith.mulf %69, %68 : vector<32x32xf32>
    %71 = math.tanh %70 : vector<32x32xf32>
    %cst_17 = arith.constant 5.000000e-01 : f32
    %72 = vector.broadcast %cst_17 : f32 to vector<32x32xf32>
    %73 = arith.mulf %72, %71 : vector<32x32xf32>
    %cst_18 = arith.constant 5.000000e-01 : f32
    %74 = vector.broadcast %cst_18 : f32 to vector<32x32xf32>
    %75 = arith.addf %73, %74 : vector<32x32xf32>
    %76 = vector.extract_strided_slice %0 {offsets = [0, 0], sizes = [32, 4], strides = [1, 1]} : vector<32x16xf32> to vector<32x4xf32>
    %77 = vector.extract_strided_slice %76 {offsets = [0, 0], sizes = [32, 1], strides = [1, 1]} : vector<32x4xf32> to vector<32x1xf32>
    %78 = vector.broadcast %77 : vector<32x1xf32> to vector<32x32xf32>
    %79 = arith.mulf %78, %75 : vector<32x32xf32>
    %80 = vector.extract_strided_slice %76 {offsets = [0, 1], sizes = [32, 1], strides = [1, 1]} : vector<32x4xf32> to vector<32x1xf32>
    %81 = vector.broadcast %80 : vector<32x1xf32> to vector<32x32xf32>
    %82 = arith.mulf %81, %75 : vector<32x32xf32>
    %83 = vector.extract_strided_slice %76 {offsets = [0, 2], sizes = [32, 1], strides = [1, 1]} : vector<32x4xf32> to vector<32x1xf32>
    %84 = vector.broadcast %83 : vector<32x1xf32> to vector<32x32xf32>
    %85 = arith.mulf %84, %75 : vector<32x32xf32>
    %86 = vector.extract_strided_slice %76 {offsets = [0, 3], sizes = [32, 1], strides = [1, 1]} : vector<32x4xf32> to vector<32x1xf32>
    %87 = vector.broadcast %86 : vector<32x1xf32> to vector<32x32xf32>
    %88 = arith.mulf %87, %75 : vector<32x32xf32>
    %89 = tpu.concatenate %79, %82, %85, %88 in 1 : vector<32x32xf32>, vector<32x32xf32>, vector<32x32xf32>, vector<32x32xf32> -> vector<32x128xf32>
    %c0_19 = arith.constant 0 : index
    %c0_20 = arith.constant 0 : index
    %90 = vector.load %arg10[%c0_19, %c0_20] : memref<32x512xf32, #tpu.memory_space<vmem>>, vector<32x128xf32>
    tpu.vector_store %arg10[%c0_19, %c0_20], %89 {strides = array<i32>} : memref<32x512xf32, #tpu.memory_space<vmem>>, vector<32x128xf32>,
    %91 = vector.extract_strided_slice %0 {offsets = [0, 4], sizes = [32, 4], strides = [1, 1]} : vector<32x16xf32> to vector<32x4xf32>
    %92 = vector.extract_strided_slice %91 {offsets = [0, 0], sizes = [32, 1], strides = [1, 1]} : vector<32x4xf32> to vector<32x1xf32>
    %93 = vector.broadcast %92 : vector<32x1xf32> to vector<32x32xf32>
    %94 = arith.mulf %93, %75 : vector<32x32xf32>
    %95 = vector.extract_strided_slice %91 {offsets = [0, 1], sizes = [32, 1], strides = [1, 1]} : vector<32x4xf32> to vector<32x1xf32>
    %96 = vector.broadcast %95 : vector<32x1xf32> to vector<32x32xf32>
    %97 = arith.mulf %96, %75 : vector<32x32xf32>
    %98 = vector.extract_strided_slice %91 {offsets = [0, 2], sizes = [32, 1], strides = [1, 1]} : vector<32x4xf32> to vector<32x1xf32>
    %99 = vector.broadcast %98 : vector<32x1xf32> to vector<32x32xf32>
    %100 = arith.mulf %99, %75 : vector<32x32xf32>
    %101 = vector.extract_strided_slice %91 {offsets = [0, 3], sizes = [32, 1], strides = [1, 1]} : vector<32x4xf32> to vector<32x1xf32>
    %102 = vector.broadcast %101 : vector<32x1xf32> to vector<32x32xf32>
    %103 = arith.mulf %102, %75 : vector<32x32xf32>
    %104 = tpu.concatenate %94, %97, %100, %103 in 1 : vector<32x32xf32>, vector<32x32xf32>, vector<32x32xf32>, vector<32x32xf32> -> vector<32x128xf32>
    %c0_21 = arith.constant 0 : index
    %c128_22 = arith.constant 128 : index
    %105 = vector.load %arg10[%c0_21, %c128_22] : memref<32x512xf32, #tpu.memory_space<vmem>>, vector<32x128xf32>
    tpu.vector_store %arg10[%c0_21, %c128_22], %104 {strides = array<i32>} : memref<32x512xf32, #tpu.memory_space<vmem>>, vector<32x128xf32>,
    %106 = vector.extract_strided_slice %0 {offsets = [0, 8], sizes = [32, 4], strides = [1, 1]} : vector<32x16xf32> to vector<32x4xf32>
    %107 = vector.extract_strided_slice %106 {offsets = [0, 0], sizes = [32, 1], strides = [1, 1]} : vector<32x4xf32> to vector<32x1xf32>
    %108 = vector.broadcast %107 : vector<32x1xf32> to vector<32x32xf32>
    %109 = arith.mulf %108, %75 : vector<32x32xf32>
    %110 = vector.extract_strided_slice %106 {offsets = [0, 1], sizes = [32, 1], strides = [1, 1]} : vector<32x4xf32> to vector<32x1xf32>
    %111 = vector.broadcast %110 : vector<32x1xf32> to vector<32x32xf32>
    %112 = arith.mulf %111, %75 : vector<32x32xf32>
    %113 = vector.extract_strided_slice %106 {offsets = [0, 2], sizes = [32, 1], strides = [1, 1]} : vector<32x4xf32> to vector<32x1xf32>
    %114 = vector.broadcast %113 : vector<32x1xf32> to vector<32x32xf32>
    %115 = arith.mulf %114, %75 : vector<32x32xf32>
    %116 = vector.extract_strided_slice %106 {offsets = [0, 3], sizes = [32, 1], strides = [1, 1]} : vector<32x4xf32> to vector<32x1xf32>
    %117 = vector.broadcast %116 : vector<32x1xf32> to vector<32x32xf32>
    %118 = arith.mulf %117, %75 : vector<32x32xf32>
    %119 = tpu.concatenate %109, %112, %115, %118 in 1 : vector<32x32xf32>, vector<32x32xf32>, vector<32x32xf32>, vector<32x32xf32> -> vector<32x128xf32>
    %c0_23 = arith.constant 0 : index
    %c256 = arith.constant 256 : index
    %120 = vector.load %arg10[%c0_23, %c256] : memref<32x512xf32, #tpu.memory_space<vmem>>, vector<32x128xf32>
    tpu.vector_store %arg10[%c0_23, %c256], %119 {strides = array<i32>} : memref<32x512xf32, #tpu.memory_space<vmem>>, vector<32x128xf32>,
    %121 = vector.extract_strided_slice %0 {offsets = [0, 12], sizes = [32, 4], strides = [1, 1]} : vector<32x16xf32> to vector<32x4xf32>
    %122 = vector.extract_strided_slice %121 {offsets = [0, 0], sizes = [32, 1], strides = [1, 1]} : vector<32x4xf32> to vector<32x1xf32>
    %123 = vector.broadcast %122 : vector<32x1xf32> to vector<32x32xf32>
    %124 = arith.mulf %123, %75 : vector<32x32xf32>
    %125 = vector.extract_strided_slice %121 {offsets = [0, 1], sizes = [32, 1], strides = [1, 1]} : vector<32x4xf32> to vector<32x1xf32>
    %126 = vector.broadcast %125 : vector<32x1xf32> to vector<32x32xf32>
    %127 = arith.mulf %126, %75 : vector<32x32xf32>
    %128 = vector.extract_strided_slice %121 {offsets = [0, 2], sizes = [32, 1], strides = [1, 1]} : vector<32x4xf32> to vector<32x1xf32>
    %129 = vector.broadcast %128 : vector<32x1xf32> to vector<32x32xf32>
    %130 = arith.mulf %129, %75 : vector<32x32xf32>
    %131 = vector.extract_strided_slice %121 {offsets = [0, 3], sizes = [32, 1], strides = [1, 1]} : vector<32x4xf32> to vector<32x1xf32>
    %132 = vector.broadcast %131 : vector<32x1xf32> to vector<32x32xf32>
    %133 = arith.mulf %132, %75 : vector<32x32xf32>
    %134 = tpu.concatenate %124, %127, %130, %133 in 1 : vector<32x32xf32>, vector<32x32xf32>, vector<32x32xf32>, vector<32x32xf32> -> vector<32x128xf32>
    %c0_24 = arith.constant 0 : index
    %c384 = arith.constant 384 : index
    %135 = vector.load %arg10[%c0_24, %c384] : memref<32x512xf32, #tpu.memory_space<vmem>>, vector<32x128xf32>
    tpu.vector_store %arg10[%c0_24, %c384], %134 {strides = array<i32>} : memref<32x512xf32, #tpu.memory_space<vmem>>, vector<32x128xf32>,
    %c0_25 = arith.constant 0 : index
    %c0_26 = arith.constant 0 : index
    %136 = vector.load %arg10[%c0_25, %c0_26] : memref<32x512xf32, #tpu.memory_space<vmem>>, vector<32x512xf32>
    %c0_27 = arith.constant 0 : index
    %c0_28 = arith.constant 0 : index
    %137 = vector.load %arg4[%c0_27, %c0_28] : memref<512x16xf32, #tpu.memory_space<vmem>>, vector<512x16xf32>
    %cst_29 = arith.constant dense<0.000000e+00> : vector<32x16xf32>
    %138 = tpu.matmul %136, %137, %cst_29 {dimension_numbers = #tpu.dot_dimension_numbers<[1], [0], [0], [1], [0, 0, 1, 1], [], []>} : vector<32x512xf32>, vector<512x16xf32>, vector<32x16xf32> -> vector<32x16xf32>
    %139 = arith.addf %138, %7 : vector<32x16xf32>
    %cst_30 = arith.constant 5.000000e-01 : f32
    %140 = vector.broadcast %cst_30 : f32 to vector<32x16xf32>
    %141 = arith.mulf %140, %139 : vector<32x16xf32>
    %142 = math.tanh %141 : vector<32x16xf32>
    %cst_31 = arith.constant 5.000000e-01 : f32
    %143 = vector.broadcast %cst_31 : f32 to vector<32x16xf32>
    %144 = arith.mulf %143, %142 : vector<32x16xf32>
    %cst_32 = arith.constant 5.000000e-01 : f32
    %145 = vector.broadcast %cst_32 : f32 to vector<32x16xf32>
    %146 = arith.addf %144, %145 : vector<32x16xf32>
    %147 = vector.extract_strided_slice %146 {offsets = [0, 0], sizes = [32, 4], strides = [1, 1]} : vector<32x16xf32> to vector<32x4xf32>
    %148 = vector.extract_strided_slice %147 {offsets = [0, 0], sizes = [32, 1], strides = [1, 1]} : vector<32x4xf32> to vector<32x1xf32>
    %149 = vector.broadcast %148 : vector<32x1xf32> to vector<32x32xf32>
    %150 = arith.mulf %149, %75 : vector<32x32xf32>
    %151 = vector.extract_strided_slice %147 {offsets = [0, 1], sizes = [32, 1], strides = [1, 1]} : vector<32x4xf32> to vector<32x1xf32>
    %152 = vector.broadcast %151 : vector<32x1xf32> to vector<32x32xf32>
    %153 = arith.mulf %152, %75 : vector<32x32xf32>
    %154 = vector.extract_strided_slice %147 {offsets = [0, 2], sizes = [32, 1], strides = [1, 1]} : vector<32x4xf32> to vector<32x1xf32>
    %155 = vector.broadcast %154 : vector<32x1xf32> to vector<32x32xf32>
    %156 = arith.mulf %155, %75 : vector<32x32xf32>
    %157 = vector.extract_strided_slice %147 {offsets = [0, 3], sizes = [32, 1], strides = [1, 1]} : vector<32x4xf32> to vector<32x1xf32>
    %158 = vector.broadcast %157 : vector<32x1xf32> to vector<32x32xf32>
    %159 = arith.mulf %158, %75 : vector<32x32xf32>
    %160 = tpu.concatenate %150, %153, %156, %159 in 1 : vector<32x32xf32>, vector<32x32xf32>, vector<32x32xf32>, vector<32x32xf32> -> vector<32x128xf32>
    %c0_33 = arith.constant 0 : index
    %c0_34 = arith.constant 0 : index
    %161 = vector.load %arg10[%c0_33, %c0_34] : memref<32x512xf32, #tpu.memory_space<vmem>>, vector<32x128xf32>
    tpu.vector_store %arg10[%c0_33, %c0_34], %160 {strides = array<i32>} : memref<32x512xf32, #tpu.memory_space<vmem>>, vector<32x128xf32>,
    %162 = vector.extract_strided_slice %146 {offsets = [0, 4], sizes = [32, 4], strides = [1, 1]} : vector<32x16xf32> to vector<32x4xf32>
    %163 = vector.extract_strided_slice %162 {offsets = [0, 0], sizes = [32, 1], strides = [1, 1]} : vector<32x4xf32> to vector<32x1xf32>
    %164 = vector.broadcast %163 : vector<32x1xf32> to vector<32x32xf32>
    %165 = arith.mulf %164, %75 : vector<32x32xf32>
    %166 = vector.extract_strided_slice %162 {offsets = [0, 1], sizes = [32, 1], strides = [1, 1]} : vector<32x4xf32> to vector<32x1xf32>
    %167 = vector.broadcast %166 : vector<32x1xf32> to vector<32x32xf32>
    %168 = arith.mulf %167, %75 : vector<32x32xf32>
    %169 = vector.extract_strided_slice %162 {offsets = [0, 2], sizes = [32, 1], strides = [1, 1]} : vector<32x4xf32> to vector<32x1xf32>
    %170 = vector.broadcast %169 : vector<32x1xf32> to vector<32x32xf32>
    %171 = arith.mulf %170, %75 : vector<32x32xf32>
    %172 = vector.extract_strided_slice %162 {offsets = [0, 3], sizes = [32, 1], strides = [1, 1]} : vector<32x4xf32> to vector<32x1xf32>
    %173 = vector.broadcast %172 : vector<32x1xf32> to vector<32x32xf32>
    %174 = arith.mulf %173, %75 : vector<32x32xf32>
    %175 = tpu.concatenate %165, %168, %171, %174 in 1 : vector<32x32xf32>, vector<32x32xf32>, vector<32x32xf32>, vector<32x32xf32> -> vector<32x128xf32>
    %c0_35 = arith.constant 0 : index
    %c128_36 = arith.constant 128 : index
    %176 = vector.load %arg10[%c0_35, %c128_36] : memref<32x512xf32, #tpu.memory_space<vmem>>, vector<32x128xf32>
    tpu.vector_store %arg10[%c0_35, %c128_36], %175 {strides = array<i32>} : memref<32x512xf32, #tpu.memory_space<vmem>>, vector<32x128xf32>,
    %177 = vector.extract_strided_slice %146 {offsets = [0, 8], sizes = [32, 4], strides = [1, 1]} : vector<32x16xf32> to vector<32x4xf32>
    %178 = vector.extract_strided_slice %177 {offsets = [0, 0], sizes = [32, 1], strides = [1, 1]} : vector<32x4xf32> to vector<32x1xf32>
    %179 = vector.broadcast %178 : vector<32x1xf32> to vector<32x32xf32>
    %180 = arith.mulf %179, %75 : vector<32x32xf32>
    %181 = vector.extract_strided_slice %177 {offsets = [0, 1], sizes = [32, 1], strides = [1, 1]} : vector<32x4xf32> to vector<32x1xf32>
    %182 = vector.broadcast %181 : vector<32x1xf32> to vector<32x32xf32>
    %183 = arith.mulf %182, %75 : vector<32x32xf32>
    %184 = vector.extract_strided_slice %177 {offsets = [0, 2], sizes = [32, 1], strides = [1, 1]} : vector<32x4xf32> to vector<32x1xf32>
    %185 = vector.broadcast %184 : vector<32x1xf32> to vector<32x32xf32>
    %186 = arith.mulf %185, %75 : vector<32x32xf32>
    %187 = vector.extract_strided_slice %177 {offsets = [0, 3], sizes = [32, 1], strides = [1, 1]} : vector<32x4xf32> to vector<32x1xf32>
    %188 = vector.broadcast %187 : vector<32x1xf32> to vector<32x32xf32>
    %189 = arith.mulf %188, %75 : vector<32x32xf32>
    %190 = tpu.concatenate %180, %183, %186, %189 in 1 : vector<32x32xf32>, vector<32x32xf32>, vector<32x32xf32>, vector<32x32xf32> -> vector<32x128xf32>
    %c0_37 = arith.constant 0 : index
    %c256_38 = arith.constant 256 : index
    %191 = vector.load %arg10[%c0_37, %c256_38] : memref<32x512xf32, #tpu.memory_space<vmem>>, vector<32x128xf32>
    tpu.vector_store %arg10[%c0_37, %c256_38], %190 {strides = array<i32>} : memref<32x512xf32, #tpu.memory_space<vmem>>, vector<32x128xf32>,
    %192 = vector.extract_strided_slice %146 {offsets = [0, 12], sizes = [32, 4], strides = [1, 1]} : vector<32x16xf32> to vector<32x4xf32>
    %193 = vector.extract_strided_slice %192 {offsets = [0, 0], sizes = [32, 1], strides = [1, 1]} : vector<32x4xf32> to vector<32x1xf32>
    %194 = vector.broadcast %193 : vector<32x1xf32> to vector<32x32xf32>
    %195 = arith.mulf %194, %75 : vector<32x32xf32>
    %196 = vector.extract_strided_slice %192 {offsets = [0, 1], sizes = [32, 1], strides = [1, 1]} : vector<32x4xf32> to vector<32x1xf32>
    %197 = vector.broadcast %196 : vector<32x1xf32> to vector<32x32xf32>
    %198 = arith.mulf %197, %75 : vector<32x32xf32>
    %199 = vector.extract_strided_slice %192 {offsets = [0, 2], sizes = [32, 1], strides = [1, 1]} : vector<32x4xf32> to vector<32x1xf32>
    %200 = vector.broadcast %199 : vector<32x1xf32> to vector<32x32xf32>
    %201 = arith.mulf %200, %75 : vector<32x32xf32>
    %202 = vector.extract_strided_slice %192 {offsets = [0, 3], sizes = [32, 1], strides = [1, 1]} : vector<32x4xf32> to vector<32x1xf32>
    %203 = vector.broadcast %202 : vector<32x1xf32> to vector<32x32xf32>
    %204 = arith.mulf %203, %75 : vector<32x32xf32>
    %205 = tpu.concatenate %195, %198, %201, %204 in 1 : vector<32x32xf32>, vector<32x32xf32>, vector<32x32xf32>, vector<32x32xf32> -> vector<32x128xf32>
    %c0_39 = arith.constant 0 : index
    %c384_40 = arith.constant 384 : index
    %206 = vector.load %arg10[%c0_39, %c384_40] : memref<32x512xf32, #tpu.memory_space<vmem>>, vector<32x128xf32>
    tpu.vector_store %arg10[%c0_39, %c384_40], %205 {strides = array<i32>} : memref<32x512xf32, #tpu.memory_space<vmem>>, vector<32x128xf32>,
    %207 = vector.extract_strided_slice %0 {offsets = [0, 0], sizes = [32, 8], strides = [1, 1]} : vector<32x16xf32> to vector<32x8xf32>
    %208 = vector.extract_strided_slice %207 {offsets = [0, 0], sizes = [32, 1], strides = [1, 1]} : vector<32x8xf32> to vector<32x1xf32>
    %209 = vector.broadcast %208 : vector<32x1xf32> to vector<32x16xf32>
    %210 = arith.mulf %209, %146 : vector<32x16xf32>
    %211 = vector.extract_strided_slice %207 {offsets = [0, 1], sizes = [32, 1], strides = [1, 1]} : vector<32x8xf32> to vector<32x1xf32>
    %212 = vector.broadcast %211 : vector<32x1xf32> to vector<32x16xf32>
    %213 = arith.mulf %212, %146 : vector<32x16xf32>
    %214 = vector.extract_strided_slice %207 {offsets = [0, 2], sizes = [32, 1], strides = [1, 1]} : vector<32x8xf32> to vector<32x1xf32>
    %215 = vector.broadcast %214 : vector<32x1xf32> to vector<32x16xf32>
    %216 = arith.mulf %215, %146 : vector<32x16xf32>
    %217 = vector.extract_strided_slice %207 {offsets = [0, 3], sizes = [32, 1], strides = [1, 1]} : vector<32x8xf32> to vector<32x1xf32>
    %218 = vector.broadcast %217 : vector<32x1xf32> to vector<32x16xf32>
    %219 = arith.mulf %218, %146 : vector<32x16xf32>
    %220 = vector.extract_strided_slice %207 {offsets = [0, 4], sizes = [32, 1], strides = [1, 1]} : vector<32x8xf32> to vector<32x1xf32>
    %221 = vector.broadcast %220 : vector<32x1xf32> to vector<32x16xf32>
    %222 = arith.mulf %221, %146 : vector<32x16xf32>
    %223 = vector.extract_strided_slice %207 {offsets = [0, 5], sizes = [32, 1], strides = [1, 1]} : vector<32x8xf32> to vector<32x1xf32>
    %224 = vector.broadcast %223 : vector<32x1xf32> to vector<32x16xf32>
    %225 = arith.mulf %224, %146 : vector<32x16xf32>
    %226 = vector.extract_strided_slice %207 {offsets = [0, 6], sizes = [32, 1], strides = [1, 1]} : vector<32x8xf32> to vector<32x1xf32>
    %227 = vector.broadcast %226 : vector<32x1xf32> to vector<32x16xf32>
    %228 = arith.mulf %227, %146 : vector<32x16xf32>
    %229 = vector.extract_strided_slice %207 {offsets = [0, 7], sizes = [32, 1], strides = [1, 1]} : vector<32x8xf32> to vector<32x1xf32>
    %230 = vector.broadcast %229 : vector<32x1xf32> to vector<32x16xf32>
    %231 = arith.mulf %230, %146 : vector<32x16xf32>
    %232 = tpu.concatenate %210, %213, %216, %219, %222, %225, %228, %231 in 1 : vector<32x16xf32>, vector<32x16xf32>, vector<32x16xf32>, vector<32x16xf32>, vector<32x16xf32>, vector<32x16xf32>, vector<32x16xf32>, vector<32x16xf32> -> vector<32x128xf32>
    %c0_41 = arith.constant 0 : index
    %c0_42 = arith.constant 0 : index
    %233 = vector.load %arg10[%c0_41, %c0_42] : memref<32x512xf32, #tpu.memory_space<vmem>>, vector<32x128xf32>
    tpu.vector_store %arg10[%c0_41, %c0_42], %232 {strides = array<i32>} : memref<32x512xf32, #tpu.memory_space<vmem>>, vector<32x128xf32>,
    %234 = vector.extract_strided_slice %0 {offsets = [0, 8], sizes = [32, 8], strides = [1, 1]} : vector<32x16xf32> to vector<32x8xf32>
    %235 = vector.extract_strided_slice %234 {offsets = [0, 0], sizes = [32, 1], strides = [1, 1]} : vector<32x8xf32> to vector<32x1xf32>
    %236 = vector.broadcast %235 : vector<32x1xf32> to vector<32x16xf32>
    %237 = arith.mulf %236, %146 : vector<32x16xf32>
    %238 = vector.extract_strided_slice %234 {offsets = [0, 1], sizes = [32, 1], strides = [1, 1]} : vector<32x8xf32> to vector<32x1xf32>
    %239 = vector.broadcast %238 : vector<32x1xf32> to vector<32x16xf32>
    %240 = arith.mulf %239, %146 : vector<32x16xf32>
    %241 = vector.extract_strided_slice %234 {offsets = [0, 2], sizes = [32, 1], strides = [1, 1]} : vector<32x8xf32> to vector<32x1xf32>
    %242 = vector.broadcast %241 : vector<32x1xf32> to vector<32x16xf32>
    %243 = arith.mulf %242, %146 : vector<32x16xf32>
    %244 = vector.extract_strided_slice %234 {offsets = [0, 3], sizes = [32, 1], strides = [1, 1]} : vector<32x8xf32> to vector<32x1xf32>
    %245 = vector.broadcast %244 : vector<32x1xf32> to vector<32x16xf32>
    %246 = arith.mulf %245, %146 : vector<32x16xf32>
    %247 = vector.extract_strided_slice %234 {offsets = [0, 4], sizes = [32, 1], strides = [1, 1]} : vector<32x8xf32> to vector<32x1xf32>
    %248 = vector.broadcast %247 : vector<32x1xf32> to vector<32x16xf32>
    %249 = arith.mulf %248, %146 : vector<32x16xf32>
    %250 = vector.extract_strided_slice %234 {offsets = [0, 5], sizes = [32, 1], strides = [1, 1]} : vector<32x8xf32> to vector<32x1xf32>
    %251 = vector.broadcast %250 : vector<32x1xf32> to vector<32x16xf32>
    %252 = arith.mulf %251, %146 : vector<32x16xf32>
    %253 = vector.extract_strided_slice %234 {offsets = [0, 6], sizes = [32, 1], strides = [1, 1]} : vector<32x8xf32> to vector<32x1xf32>
    %254 = vector.broadcast %253 : vector<32x1xf32> to vector<32x16xf32>
    %255 = arith.mulf %254, %146 : vector<32x16xf32>
    %256 = vector.extract_strided_slice %234 {offsets = [0, 7], sizes = [32, 1], strides = [1, 1]} : vector<32x8xf32> to vector<32x1xf32>
    %257 = vector.broadcast %256 : vector<32x1xf32> to vector<32x16xf32>
    %258 = arith.mulf %257, %146 : vector<32x16xf32>
    %259 = tpu.concatenate %237, %240, %243, %246, %249, %252, %255, %258 in 1 : vector<32x16xf32>, vector<32x16xf32>, vector<32x16xf32>, vector<32x16xf32>, vector<32x16xf32>, vector<32x16xf32>, vector<32x16xf32>, vector<32x16xf32> -> vector<32x128xf32>
    %c0_43 = arith.constant 0 : index
    %c128_44 = arith.constant 128 : index
    %260 = vector.load %arg10[%c0_43, %c128_44] : memref<32x512xf32, #tpu.memory_space<vmem>>, vector<32x128xf32>
    tpu.vector_store %arg10[%c0_43, %c128_44], %259 {strides = array<i32>} : memref<32x512xf32, #tpu.memory_space<vmem>>, vector<32x128xf32>,
    %c0_45 = arith.constant 0 : index
    %c0_46 = arith.constant 0 : index
    %261 = vector.load %arg10[%c0_45, %c0_46] : memref<32x512xf32, #tpu.memory_space<vmem>>, vector<32x256xf32>
    %c0_47 = arith.constant 0 : index
    %c0_48 = arith.constant 0 : index
    %262 = vector.load %arg3[%c0_47, %c0_48] : memref<256x32xf32, #tpu.memory_space<vmem>>, vector<256x32xf32>
    %cst_49 = arith.constant dense<0.000000e+00> : vector<32x32xf32>
    %263 = tpu.matmul %261, %262, %cst_49 {dimension_numbers = #tpu.dot_dimension_numbers<[1], [0], [0], [1], [0, 0, 1, 1], [], []>} : vector<32x256xf32>, vector<256x32xf32>, vector<32x32xf32> -> vector<32x32xf32>
    %264 = arith.addf %263, %10 : vector<32x32xf32>
    %cst_50 = arith.constant 5.000000e-01 : f32
    %265 = vector.broadcast %cst_50 : f32 to vector<32x32xf32>
    %266 = arith.mulf %265, %264 : vector<32x32xf32>
    %267 = math.tanh %266 : vector<32x32xf32>
    %cst_51 = arith.constant 5.000000e-01 : f32
    %268 = vector.broadcast %cst_51 : f32 to vector<32x32xf32>
    %269 = arith.mulf %268, %267 : vector<32x32xf32>
    %cst_52 = arith.constant 5.000000e-01 : f32
    %270 = vector.broadcast %cst_52 : f32 to vector<32x32xf32>
    %271 = arith.addf %269, %270 : vector<32x32xf32>
    %272 = vector.extract_strided_slice %0 {offsets = [0, 0], sizes = [32, 4], strides = [1, 1]} : vector<32x16xf32> to vector<32x4xf32>
    %273 = vector.extract_strided_slice %272 {offsets = [0, 0], sizes = [32, 1], strides = [1, 1]} : vector<32x4xf32> to vector<32x1xf32>
    %274 = vector.broadcast %273 : vector<32x1xf32> to vector<32x32xf32>
    %275 = arith.mulf %274, %271 : vector<32x32xf32>
    %276 = vector.extract_strided_slice %272 {offsets = [0, 1], sizes = [32, 1], strides = [1, 1]} : vector<32x4xf32> to vector<32x1xf32>
    %277 = vector.broadcast %276 : vector<32x1xf32> to vector<32x32xf32>
    %278 = arith.mulf %277, %271 : vector<32x32xf32>
    %279 = vector.extract_strided_slice %272 {offsets = [0, 2], sizes = [32, 1], strides = [1, 1]} : vector<32x4xf32> to vector<32x1xf32>
    %280 = vector.broadcast %279 : vector<32x1xf32> to vector<32x32xf32>
    %281 = arith.mulf %280, %271 : vector<32x32xf32>
    %282 = vector.extract_strided_slice %272 {offsets = [0, 3], sizes = [32, 1], strides = [1, 1]} : vector<32x4xf32> to vector<32x1xf32>
    %283 = vector.broadcast %282 : vector<32x1xf32> to vector<32x32xf32>
    %284 = arith.mulf %283, %271 : vector<32x32xf32>
    %285 = tpu.concatenate %275, %278, %281, %284 in 1 : vector<32x32xf32>, vector<32x32xf32>, vector<32x32xf32>, vector<32x32xf32> -> vector<32x128xf32>
    %c0_53 = arith.constant 0 : index
    %c0_54 = arith.constant 0 : index
    %286 = vector.load %arg10[%c0_53, %c0_54] : memref<32x512xf32, #tpu.memory_space<vmem>>, vector<32x128xf32>
    tpu.vector_store %arg10[%c0_53, %c0_54], %285 {strides = array<i32>} : memref<32x512xf32, #tpu.memory_space<vmem>>, vector<32x128xf32>,
    %287 = vector.extract_strided_slice %0 {offsets = [0, 4], sizes = [32, 4], strides = [1, 1]} : vector<32x16xf32> to vector<32x4xf32>
    %288 = vector.extract_strided_slice %287 {offsets = [0, 0], sizes = [32, 1], strides = [1, 1]} : vector<32x4xf32> to vector<32x1xf32>
    %289 = vector.broadcast %288 : vector<32x1xf32> to vector<32x32xf32>
    %290 = arith.mulf %289, %271 : vector<32x32xf32>
    %291 = vector.extract_strided_slice %287 {offsets = [0, 1], sizes = [32, 1], strides = [1, 1]} : vector<32x4xf32> to vector<32x1xf32>
    %292 = vector.broadcast %291 : vector<32x1xf32> to vector<32x32xf32>
    %293 = arith.mulf %292, %271 : vector<32x32xf32>
    %294 = vector.extract_strided_slice %287 {offsets = [0, 2], sizes = [32, 1], strides = [1, 1]} : vector<32x4xf32> to vector<32x1xf32>
    %295 = vector.broadcast %294 : vector<32x1xf32> to vector<32x32xf32>
    %296 = arith.mulf %295, %271 : vector<32x32xf32>
    %297 = vector.extract_strided_slice %287 {offsets = [0, 3], sizes = [32, 1], strides = [1, 1]} : vector<32x4xf32> to vector<32x1xf32>
    %298 = vector.broadcast %297 : vector<32x1xf32> to vector<32x32xf32>
    %299 = arith.mulf %298, %271 : vector<32x32xf32>
    %300 = tpu.concatenate %290, %293, %296, %299 in 1 : vector<32x32xf32>, vector<32x32xf32>, vector<32x32xf32>, vector<32x32xf32> -> vector<32x128xf32>
    %c0_55 = arith.constant 0 : index
    %c128_56 = arith.constant 128 : index
    %301 = vector.load %arg10[%c0_55, %c128_56] : memref<32x512xf32, #tpu.memory_space<vmem>>, vector<32x128xf32>
    tpu.vector_store %arg10[%c0_55, %c128_56], %300 {strides = array<i32>} : memref<32x512xf32, #tpu.memory_space<vmem>>, vector<32x128xf32>,
    %302 = vector.extract_strided_slice %0 {offsets = [0, 8], sizes = [32, 4], strides = [1, 1]} : vector<32x16xf32> to vector<32x4xf32>
    %303 = vector.extract_strided_slice %302 {offsets = [0, 0], sizes = [32, 1], strides = [1, 1]} : vector<32x4xf32> to vector<32x1xf32>
    %304 = vector.broadcast %303 : vector<32x1xf32> to vector<32x32xf32>
    %305 = arith.mulf %304, %271 : vector<32x32xf32>
    %306 = vector.extract_strided_slice %302 {offsets = [0, 1], sizes = [32, 1], strides = [1, 1]} : vector<32x4xf32> to vector<32x1xf32>
    %307 = vector.broadcast %306 : vector<32x1xf32> to vector<32x32xf32>
    %308 = arith.mulf %307, %271 : vector<32x32xf32>
    %309 = vector.extract_strided_slice %302 {offsets = [0, 2], sizes = [32, 1], strides = [1, 1]} : vector<32x4xf32> to vector<32x1xf32>
    %310 = vector.broadcast %309 : vector<32x1xf32> to vector<32x32xf32>
    %311 = arith.mulf %310, %271 : vector<32x32xf32>
    %312 = vector.extract_strided_slice %302 {offsets = [0, 3], sizes = [32, 1], strides = [1, 1]} : vector<32x4xf32> to vector<32x1xf32>
    %313 = vector.broadcast %312 : vector<32x1xf32> to vector<32x32xf32>
    %314 = arith.mulf %313, %271 : vector<32x32xf32>
    %315 = tpu.concatenate %305, %308, %311, %314 in 1 : vector<32x32xf32>, vector<32x32xf32>, vector<32x32xf32>, vector<32x32xf32> -> vector<32x128xf32>
    %c0_57 = arith.constant 0 : index
    %c256_58 = arith.constant 256 : index
    %316 = vector.load %arg10[%c0_57, %c256_58] : memref<32x512xf32, #tpu.memory_space<vmem>>, vector<32x128xf32>
    tpu.vector_store %arg10[%c0_57, %c256_58], %315 {strides = array<i32>} : memref<32x512xf32, #tpu.memory_space<vmem>>, vector<32x128xf32>,
    %317 = vector.extract_strided_slice %0 {offsets = [0, 12], sizes = [32, 4], strides = [1, 1]} : vector<32x16xf32> to vector<32x4xf32>
    %318 = vector.extract_strided_slice %317 {offsets = [0, 0], sizes = [32, 1], strides = [1, 1]} : vector<32x4xf32> to vector<32x1xf32>
    %319 = vector.broadcast %318 : vector<32x1xf32> to vector<32x32xf32>
    %320 = arith.mulf %319, %271 : vector<32x32xf32>
    %321 = vector.extract_strided_slice %317 {offsets = [0, 1], sizes = [32, 1], strides = [1, 1]} : vector<32x4xf32> to vector<32x1xf32>
    %322 = vector.broadcast %321 : vector<32x1xf32> to vector<32x32xf32>
    %323 = arith.mulf %322, %271 : vector<32x32xf32>
    %324 = vector.extract_strided_slice %317 {offsets = [0, 2], sizes = [32, 1], strides = [1, 1]} : vector<32x4xf32> to vector<32x1xf32>
    %325 = vector.broadcast %324 : vector<32x1xf32> to vector<32x32xf32>
    %326 = arith.mulf %325, %271 : vector<32x32xf32>
    %327 = vector.extract_strided_slice %317 {offsets = [0, 3], sizes = [32, 1], strides = [1, 1]} : vector<32x4xf32> to vector<32x1xf32>
    %328 = vector.broadcast %327 : vector<32x1xf32> to vector<32x32xf32>
    %329 = arith.mulf %328, %271 : vector<32x32xf32>
    %330 = tpu.concatenate %320, %323, %326, %329 in 1 : vector<32x32xf32>, vector<32x32xf32>, vector<32x32xf32>, vector<32x32xf32> -> vector<32x128xf32>
    %c0_59 = arith.constant 0 : index
    %c384_60 = arith.constant 384 : index
    %331 = vector.load %arg10[%c0_59, %c384_60] : memref<32x512xf32, #tpu.memory_space<vmem>>, vector<32x128xf32>
    tpu.vector_store %arg10[%c0_59, %c384_60], %330 {strides = array<i32>} : memref<32x512xf32, #tpu.memory_space<vmem>>, vector<32x128xf32>,
    %c0_61 = arith.constant 0 : index
    %c0_62 = arith.constant 0 : index
    %332 = vector.load %arg10[%c0_61, %c0_62] : memref<32x512xf32, #tpu.memory_space<vmem>>, vector<32x512xf32>
    %c0_63 = arith.constant 0 : index
    %c0_64 = arith.constant 0 : index
    %333 = vector.load %arg4[%c0_63, %c0_64] : memref<512x16xf32, #tpu.memory_space<vmem>>, vector<512x16xf32>
    %cst_65 = arith.constant dense<0.000000e+00> : vector<32x16xf32>
    %334 = tpu.matmul %332, %333, %cst_65 {dimension_numbers = #tpu.dot_dimension_numbers<[1], [0], [0], [1], [0, 0, 1, 1], [], []>} : vector<32x512xf32>, vector<512x16xf32>, vector<32x16xf32> -> vector<32x16xf32>
    %335 = arith.addf %334, %7 : vector<32x16xf32>
    %cst_66 = arith.constant 5.000000e-01 : f32
    %336 = vector.broadcast %cst_66 : f32 to vector<32x16xf32>
    %337 = arith.mulf %336, %335 : vector<32x16xf32>
    %338 = math.tanh %337 : vector<32x16xf32>
    %cst_67 = arith.constant 5.000000e-01 : f32
    %339 = vector.broadcast %cst_67 : f32 to vector<32x16xf32>
    %340 = arith.mulf %339, %338 : vector<32x16xf32>
    %cst_68 = arith.constant 5.000000e-01 : f32
    %341 = vector.broadcast %cst_68 : f32 to vector<32x16xf32>
    %342 = arith.addf %340, %341 : vector<32x16xf32>
    %343 = vector.extract_strided_slice %342 {offsets = [0, 0], sizes = [32, 4], strides = [1, 1]} : vector<32x16xf32> to vector<32x4xf32>
    %344 = vector.extract_strided_slice %343 {offsets = [0, 0], sizes = [32, 1], strides = [1, 1]} : vector<32x4xf32> to vector<32x1xf32>
    %345 = vector.broadcast %344 : vector<32x1xf32> to vector<32x32xf32>
    %346 = arith.mulf %345, %271 : vector<32x32xf32>
    %347 = vector.extract_strided_slice %343 {offsets = [0, 1], sizes = [32, 1], strides = [1, 1]} : vector<32x4xf32> to vector<32x1xf32>
    %348 = vector.broadcast %347 : vector<32x1xf32> to vector<32x32xf32>
    %349 = arith.mulf %348, %271 : vector<32x32xf32>
    %350 = vector.extract_strided_slice %343 {offsets = [0, 2], sizes = [32, 1], strides = [1, 1]} : vector<32x4xf32> to vector<32x1xf32>
    %351 = vector.broadcast %350 : vector<32x1xf32> to vector<32x32xf32>
    %352 = arith.mulf %351, %271 : vector<32x32xf32>
    %353 = vector.extract_strided_slice %343 {offsets = [0, 3], sizes = [32, 1], strides = [1, 1]} : vector<32x4xf32> to vector<32x1xf32>
    %354 = vector.broadcast %353 : vector<32x1xf32> to vector<32x32xf32>
    %355 = arith.mulf %354, %271 : vector<32x32xf32>
    %356 = tpu.concatenate %346, %349, %352, %355 in 1 : vector<32x32xf32>, vector<32x32xf32>, vector<32x32xf32>, vector<32x32xf32> -> vector<32x128xf32>
    %c0_69 = arith.constant 0 : index
    %c0_70 = arith.constant 0 : index
    %357 = vector.load %arg10[%c0_69, %c0_70] : memref<32x512xf32, #tpu.memory_space<vmem>>, vector<32x128xf32>
    tpu.vector_store %arg10[%c0_69, %c0_70], %356 {strides = array<i32>} : memref<32x512xf32, #tpu.memory_space<vmem>>, vector<32x128xf32>,
    %358 = vector.extract_strided_slice %342 {offsets = [0, 4], sizes = [32, 4], strides = [1, 1]} : vector<32x16xf32> to vector<32x4xf32>
    %359 = vector.extract_strided_slice %358 {offsets = [0, 0], sizes = [32, 1], strides = [1, 1]} : vector<32x4xf32> to vector<32x1xf32>
    %360 = vector.broadcast %359 : vector<32x1xf32> to vector<32x32xf32>
    %361 = arith.mulf %360, %271 : vector<32x32xf32>
    %362 = vector.extract_strided_slice %358 {offsets = [0, 1], sizes = [32, 1], strides = [1, 1]} : vector<32x4xf32> to vector<32x1xf32>
    %363 = vector.broadcast %362 : vector<32x1xf32> to vector<32x32xf32>
    %364 = arith.mulf %363, %271 : vector<32x32xf32>
    %365 = vector.extract_strided_slice %358 {offsets = [0, 2], sizes = [32, 1], strides = [1, 1]} : vector<32x4xf32> to vector<32x1xf32>
    %366 = vector.broadcast %365 : vector<32x1xf32> to vector<32x32xf32>
    %367 = arith.mulf %366, %271 : vector<32x32xf32>
    %368 = vector.extract_strided_slice %358 {offsets = [0, 3], sizes = [32, 1], strides = [1, 1]} : vector<32x4xf32> to vector<32x1xf32>
    %369 = vector.broadcast %368 : vector<32x1xf32> to vector<32x32xf32>
    %370 = arith.mulf %369, %271 : vector<32x32xf32>
    %371 = tpu.concatenate %361, %364, %367, %370 in 1 : vector<32x32xf32>, vector<32x32xf32>, vector<32x32xf32>, vector<32x32xf32> -> vector<32x128xf32>
    %c0_71 = arith.constant 0 : index
    %c128_72 = arith.constant 128 : index
    %372 = vector.load %arg10[%c0_71, %c128_72] : memref<32x512xf32, #tpu.memory_space<vmem>>, vector<32x128xf32>
    tpu.vector_store %arg10[%c0_71, %c128_72], %371 {strides = array<i32>} : memref<32x512xf32, #tpu.memory_space<vmem>>, vector<32x128xf32>,
    %373 = vector.extract_strided_slice %342 {offsets = [0, 8], sizes = [32, 4], strides = [1, 1]} : vector<32x16xf32> to vector<32x4xf32>
    %374 = vector.extract_strided_slice %373 {offsets = [0, 0], sizes = [32, 1], strides = [1, 1]} : vector<32x4xf32> to vector<32x1xf32>
    %375 = vector.broadcast %374 : vector<32x1xf32> to vector<32x32xf32>
    %376 = arith.mulf %375, %271 : vector<32x32xf32>
    %377 = vector.extract_strided_slice %373 {offsets = [0, 1], sizes = [32, 1], strides = [1, 1]} : vector<32x4xf32> to vector<32x1xf32>
    %378 = vector.broadcast %377 : vector<32x1xf32> to vector<32x32xf32>
    %379 = arith.mulf %378, %271 : vector<32x32xf32>
    %380 = vector.extract_strided_slice %373 {offsets = [0, 2], sizes = [32, 1], strides = [1, 1]} : vector<32x4xf32> to vector<32x1xf32>
    %381 = vector.broadcast %380 : vector<32x1xf32> to vector<32x32xf32>
    %382 = arith.mulf %381, %271 : vector<32x32xf32>
    %383 = vector.extract_strided_slice %373 {offsets = [0, 3], sizes = [32, 1], strides = [1, 1]} : vector<32x4xf32> to vector<32x1xf32>
    %384 = vector.broadcast %383 : vector<32x1xf32> to vector<32x32xf32>
    %385 = arith.mulf %384, %271 : vector<32x32xf32>
    %386 = tpu.concatenate %376, %379, %382, %385 in 1 : vector<32x32xf32>, vector<32x32xf32>, vector<32x32xf32>, vector<32x32xf32> -> vector<32x128xf32>
    %c0_73 = arith.constant 0 : index
    %c256_74 = arith.constant 256 : index
    %387 = vector.load %arg10[%c0_73, %c256_74] : memref<32x512xf32, #tpu.memory_space<vmem>>, vector<32x128xf32>
    tpu.vector_store %arg10[%c0_73, %c256_74], %386 {strides = array<i32>} : memref<32x512xf32, #tpu.memory_space<vmem>>, vector<32x128xf32>,
    %388 = vector.extract_strided_slice %342 {offsets = [0, 12], sizes = [32, 4], strides = [1, 1]} : vector<32x16xf32> to vector<32x4xf32>
    %389 = vector.extract_strided_slice %388 {offsets = [0, 0], sizes = [32, 1], strides = [1, 1]} : vector<32x4xf32> to vector<32x1xf32>
    %390 = vector.broadcast %389 : vector<32x1xf32> to vector<32x32xf32>
    %391 = arith.mulf %390, %271 : vector<32x32xf32>
    %392 = vector.extract_strided_slice %388 {offsets = [0, 1], sizes = [32, 1], strides = [1, 1]} : vector<32x4xf32> to vector<32x1xf32>
    %393 = vector.broadcast %392 : vector<32x1xf32> to vector<32x32xf32>
    %394 = arith.mulf %393, %271 : vector<32x32xf32>
    %395 = vector.extract_strided_slice %388 {offsets = [0, 2], sizes = [32, 1], strides = [1, 1]} : vector<32x4xf32> to vector<32x1xf32>
    %396 = vector.broadcast %395 : vector<32x1xf32> to vector<32x32xf32>
    %397 = arith.mulf %396, %271 : vector<32x32xf32>
    %398 = vector.extract_strided_slice %388 {offsets = [0, 3], sizes = [32, 1], strides = [1, 1]} : vector<32x4xf32> to vector<32x1xf32>
    %399 = vector.broadcast %398 : vector<32x1xf32> to vector<32x32xf32>
    %400 = arith.mulf %399, %271 : vector<32x32xf32>
    %401 = tpu.concatenate %391, %394, %397, %400 in 1 : vector<32x32xf32>, vector<32x32xf32>, vector<32x32xf32>, vector<32x32xf32> -> vector<32x128xf32>
    %c0_75 = arith.constant 0 : index
    %c384_76 = arith.constant 384 : index
    %402 = vector.load %arg10[%c0_75, %c384_76] : memref<32x512xf32, #tpu.memory_space<vmem>>, vector<32x128xf32>
    tpu.vector_store %arg10[%c0_75, %c384_76], %401 {strides = array<i32>} : memref<32x512xf32, #tpu.memory_space<vmem>>, vector<32x128xf32>,
    %c0_77 = arith.constant 0 : index
    %c0_78 = arith.constant 0 : index
    %403 = vector.load %arg10[%c0_77, %c0_78] : memref<32x512xf32, #tpu.memory_space<vmem>>, vector<32x512xf32>
    %c0_79 = arith.constant 0 : index
    %c0_80 = arith.constant 0 : index
    %404 = vector.load %arg5[%c0_79, %c0_80] : memref<512x16xf32, #tpu.memory_space<vmem>>, vector<512x16xf32>
    %cst_81 = arith.constant dense<0.000000e+00> : vector<32x16xf32>
    %405 = tpu.matmul %403, %404, %cst_81 {dimension_numbers = #tpu.dot_dimension_numbers<[1], [0], [0], [1], [0, 0, 1, 1], [], []>} : vector<32x512xf32>, vector<512x16xf32>, vector<32x16xf32> -> vector<32x16xf32>
    %406 = arith.addf %405, %4 : vector<32x16xf32>
    %cst_82 = arith.constant 5.000000e-01 : f32
    %407 = vector.broadcast %cst_82 : f32 to vector<32x16xf32>
    %408 = arith.mulf %407, %406 : vector<32x16xf32>
    %409 = math.tanh %408 : vector<32x16xf32>
    %cst_83 = arith.constant 5.000000e-01 : f32
    %410 = vector.broadcast %cst_83 : f32 to vector<32x16xf32>
    %411 = arith.mulf %410, %409 : vector<32x16xf32>
    %cst_84 = arith.constant 5.000000e-01 : f32
    %412 = vector.broadcast %cst_84 : f32 to vector<32x16xf32>
    %413 = arith.addf %411, %412 : vector<32x16xf32>
    %414 = vector.extract_strided_slice %0 {offsets = [0, 0], sizes = [32, 8], strides = [1, 1]} : vector<32x16xf32> to vector<32x8xf32>
    %415 = vector.extract_strided_slice %414 {offsets = [0, 0], sizes = [32, 1], strides = [1, 1]} : vector<32x8xf32> to vector<32x1xf32>
    %416 = vector.broadcast %415 : vector<32x1xf32> to vector<32x16xf32>
    %417 = arith.mulf %416, %342 : vector<32x16xf32>
    %418 = vector.extract_strided_slice %414 {offsets = [0, 1], sizes = [32, 1], strides = [1, 1]} : vector<32x8xf32> to vector<32x1xf32>
    %419 = vector.broadcast %418 : vector<32x1xf32> to vector<32x16xf32>
    %420 = arith.mulf %419, %342 : vector<32x16xf32>
    %421 = vector.extract_strided_slice %414 {offsets = [0, 2], sizes = [32, 1], strides = [1, 1]} : vector<32x8xf32> to vector<32x1xf32>
    %422 = vector.broadcast %421 : vector<32x1xf32> to vector<32x16xf32>
    %423 = arith.mulf %422, %342 : vector<32x16xf32>
    %424 = vector.extract_strided_slice %414 {offsets = [0, 3], sizes = [32, 1], strides = [1, 1]} : vector<32x8xf32> to vector<32x1xf32>
    %425 = vector.broadcast %424 : vector<32x1xf32> to vector<32x16xf32>
    %426 = arith.mulf %425, %342 : vector<32x16xf32>
    %427 = vector.extract_strided_slice %414 {offsets = [0, 4], sizes = [32, 1], strides = [1, 1]} : vector<32x8xf32> to vector<32x1xf32>
    %428 = vector.broadcast %427 : vector<32x1xf32> to vector<32x16xf32>
    %429 = arith.mulf %428, %342 : vector<32x16xf32>
    %430 = vector.extract_strided_slice %414 {offsets = [0, 5], sizes = [32, 1], strides = [1, 1]} : vector<32x8xf32> to vector<32x1xf32>
    %431 = vector.broadcast %430 : vector<32x1xf32> to vector<32x16xf32>
    %432 = arith.mulf %431, %342 : vector<32x16xf32>
    %433 = vector.extract_strided_slice %414 {offsets = [0, 6], sizes = [32, 1], strides = [1, 1]} : vector<32x8xf32> to vector<32x1xf32>
    %434 = vector.broadcast %433 : vector<32x1xf32> to vector<32x16xf32>
    %435 = arith.mulf %434, %342 : vector<32x16xf32>
    %436 = vector.extract_strided_slice %414 {offsets = [0, 7], sizes = [32, 1], strides = [1, 1]} : vector<32x8xf32> to vector<32x1xf32>
    %437 = vector.broadcast %436 : vector<32x1xf32> to vector<32x16xf32>
    %438 = arith.mulf %437, %342 : vector<32x16xf32>
    %439 = tpu.concatenate %417, %420, %423, %426, %429, %432, %435, %438 in 1 : vector<32x16xf32>, vector<32x16xf32>, vector<32x16xf32>, vector<32x16xf32>, vector<32x16xf32>, vector<32x16xf32>, vector<32x16xf32>, vector<32x16xf32> -> vector<32x128xf32>
    %c0_85 = arith.constant 0 : index
    %c0_86 = arith.constant 0 : index
    %440 = vector.load %arg10[%c0_85, %c0_86] : memref<32x512xf32, #tpu.memory_space<vmem>>, vector<32x128xf32>
    tpu.vector_store %arg10[%c0_85, %c0_86], %439 {strides = array<i32>} : memref<32x512xf32, #tpu.memory_space<vmem>>, vector<32x128xf32>,
    %441 = vector.extract_strided_slice %0 {offsets = [0, 8], sizes = [32, 8], strides = [1, 1]} : vector<32x16xf32> to vector<32x8xf32>
    %442 = vector.extract_strided_slice %441 {offsets = [0, 0], sizes = [32, 1], strides = [1, 1]} : vector<32x8xf32> to vector<32x1xf32>
    %443 = vector.broadcast %442 : vector<32x1xf32> to vector<32x16xf32>
    %444 = arith.mulf %443, %342 : vector<32x16xf32>
    %445 = vector.extract_strided_slice %441 {offsets = [0, 1], sizes = [32, 1], strides = [1, 1]} : vector<32x8xf32> to vector<32x1xf32>
    %446 = vector.broadcast %445 : vector<32x1xf32> to vector<32x16xf32>
    %447 = arith.mulf %446, %342 : vector<32x16xf32>
    %448 = vector.extract_strided_slice %441 {offsets = [0, 2], sizes = [32, 1], strides = [1, 1]} : vector<32x8xf32> to vector<32x1xf32>
    %449 = vector.broadcast %448 : vector<32x1xf32> to vector<32x16xf32>
    %450 = arith.mulf %449, %342 : vector<32x16xf32>
    %451 = vector.extract_strided_slice %441 {offsets = [0, 3], sizes = [32, 1], strides = [1, 1]} : vector<32x8xf32> to vector<32x1xf32>
    %452 = vector.broadcast %451 : vector<32x1xf32> to vector<32x16xf32>
    %453 = arith.mulf %452, %342 : vector<32x16xf32>
    %454 = vector.extract_strided_slice %441 {offsets = [0, 4], sizes = [32, 1], strides = [1, 1]} : vector<32x8xf32> to vector<32x1xf32>
    %455 = vector.broadcast %454 : vector<32x1xf32> to vector<32x16xf32>
    %456 = arith.mulf %455, %342 : vector<32x16xf32>
    %457 = vector.extract_strided_slice %441 {offsets = [0, 5], sizes = [32, 1], strides = [1, 1]} : vector<32x8xf32> to vector<32x1xf32>
    %458 = vector.broadcast %457 : vector<32x1xf32> to vector<32x16xf32>
    %459 = arith.mulf %458, %342 : vector<32x16xf32>
    %460 = vector.extract_strided_slice %441 {offsets = [0, 6], sizes = [32, 1], strides = [1, 1]} : vector<32x8xf32> to vector<32x1xf32>
    %461 = vector.broadcast %460 : vector<32x1xf32> to vector<32x16xf32>
    %462 = arith.mulf %461, %342 : vector<32x16xf32>
    %463 = vector.extract_strided_slice %441 {offsets = [0, 7], sizes = [32, 1], strides = [1, 1]} : vector<32x8xf32> to vector<32x1xf32>
    %464 = vector.broadcast %463 : vector<32x1xf32> to vector<32x16xf32>
    %465 = arith.mulf %464, %342 : vector<32x16xf32>
    %466 = tpu.concatenate %444, %447, %450, %453, %456, %459, %462, %465 in 1 : vector<32x16xf32>, vector<32x16xf32>, vector<32x16xf32>, vector<32x16xf32>, vector<32x16xf32>, vector<32x16xf32>, vector<32x16xf32>, vector<32x16xf32> -> vector<32x128xf32>
    %c0_87 = arith.constant 0 : index
    %c128_88 = arith.constant 128 : index
    %467 = vector.load %arg10[%c0_87, %c128_88] : memref<32x512xf32, #tpu.memory_space<vmem>>, vector<32x128xf32>
    tpu.vector_store %arg10[%c0_87, %c128_88], %466 {strides = array<i32>} : memref<32x512xf32, #tpu.memory_space<vmem>>, vector<32x128xf32>,
    %468 = tpu.concatenate %413, %342 in 1 : vector<32x16xf32>, vector<32x16xf32> -> vector<32x32xf32>
    %c0_89 = arith.constant 0 : index
    %c0_90 = arith.constant 0 : index
    %469 = vector.load %arg9[%c0_89, %c0_90] : memref<32x32xf32, #tpu.memory_space<vmem>>, vector<32x32xf32>
    tpu.vector_store %arg9[%c0_89, %c0_90], %468 {strides = array<i32>} : memref<32x32xf32, #tpu.memory_space<vmem>>, vector<32x32xf32>,
    return
  }
  func.func @transform_0(%arg0: i32) -> (i32, i32) {
    %c0_i32 = arith.constant 0 : i32
    %c0_i32_0 = arith.constant 0 : i32
    return %arg0, %c0_i32 : i32, i32
  }
  func.func @transform_1(%arg0: i32) -> (i32, i32) {
    %c0_i32 = arith.constant 0 : i32
    %c0_i32_0 = arith.constant 0 : i32
    return %arg0, %c0_i32 : i32, i32
  }
  func.func @transform_2(%arg0: i32) -> (i32, i32) {
    %c0_i32 = arith.constant 0 : i32
    %c0_i32_0 = arith.constant 0 : i32
    %c0_i32_1 = arith.constant 0 : i32
    return %c0_i32, %c0_i32_0 : i32, i32
  }
  func.func @transform_3(%arg0: i32) -> (i32, i32) {
    %c0_i32 = arith.constant 0 : i32
    %c0_i32_0 = arith.constant 0 : i32
    %c0_i32_1 = arith.constant 0 : i32
    return %c0_i32, %c0_i32_0 : i32, i32
  }
  func.func @transform_4(%arg0: i32) -> (i32, i32) {
    %c0_i32 = arith.constant 0 : i32
    %c0_i32_0 = arith.constant 0 : i32
    %c0_i32_1 = arith.constant 0 : i32
    return %c0_i32, %c0_i32_0 : i32, i32
  }
  func.func @transform_5(%arg0: i32) -> (i32, i32) {
    %c0_i32 = arith.constant 0 : i32
    %c0_i32_0 = arith.constant 0 : i32
    %c0_i32_1 = arith.constant 0 : i32
    return %c0_i32, %c0_i32_0 : i32, i32
  }
  func.func @transform_6(%arg0: i32) -> (i32, i32) {
    %c0_i32 = arith.constant 0 : i32
    %c0_i32_0 = arith.constant 0 : i32
    %c0_i32_1 = arith.constant 0 : i32
    return %c0_i32, %c0_i32_0 : i32, i32
  }
  func.func @transform_7(%arg0: i32) -> (i32, i32) {
    %c0_i32 = arith.constant 0 : i32
    %c0_i32_0 = arith.constant 0 : i32
    %c0_i32_1 = arith.constant 0 : i32
    return %c0_i32, %c0_i32_0 : i32, i32
  }
  func.func @transform_8(%arg0: i32) -> (i32, i32) {
    %c0_i32 = arith.constant 0 : i32
    %c0_i32_0 = arith.constant 0 : i32
    return %arg0, %c0_i32 : i32, i32
  }
}

</mosaic_0001>

<llo_original>
// kernel: unfactored_gbm_forward.1
$region0: #{unfactored_gbm_forward.1}
  #allocation0 [shape = 'u32[]', space=smem, size = 0x4, offset = 0x4, fixed_abs, tag = 'smem constant byte address 0x4 - core index']
  #allocation1 [shape = 'u32[144,128]{1,0:T(1,128)}', space=vmem, size = 0x12000, scoped, tag = 'internal scratch']
  #allocation2 [shape = 'f32[32,512]{1,0:T(8,128)}', space=vmem, size = 0x10000, scoped, tag = 'scratch operand']
  %s0 = inlined_call_operand.vmem [shape: f32[64,16], index: 0, kind: input, shape index: {}]
  %s1 = inlined_call_operand.vmem [shape: f32[64,16], index: 1, kind: input, shape index: {}]
  %s2 = inlined_call_operand.vmem [shape: f32[256,32], index: 2, kind: input, shape index: {}]
  %s3 = inlined_call_operand.vmem [shape: f32[512,16], index: 3, kind: input, shape index: {}]
  %s4 = inlined_call_operand.vmem [shape: f32[512,16], index: 4, kind: input, shape index: {}]
  %s5 = inlined_call_operand.vmem [shape: f32[1,16], index: 5, kind: input, shape index: {}]
  %s6 = inlined_call_operand.vmem [shape: f32[1,16], index: 6, kind: input, shape index: {}]
  %s7 = inlined_call_operand.vmem [shape: f32[1,32], index: 7, kind: input, shape index: {}]
  %s8 = inlined_call_operand.vmem [shape: f32[64,32], index: 8, kind: output, shape index: {}]
  %s9 = sld [smem:[#allocation0]]
  $region65: #{unfactored_gbm_forward.1} parent=0
    _
  %s11 = ssub.s32 1, %s9
  %s12 = scalar_select 0, %s11, %s9
  loop: start=0, step=1, limit=4
  $region2: #{unfactored_gbm_forward.1} parent=0 // loop_pre_header
    _
  $region3: #{unfactored_gbm_forward.1} parent=0 // loop_header
    %s14 = sphi 0, %s18
    %p15 = scmp.ge.s32.totalorder %s14, 4
    %s24 = sphi 0, %s26
    %s27 = sphi 0, %s24
    %s28 = sphi 0, %s27
    %s44 = sphi 0, %s28
    %s50 = sphi 0, %s52
    %s53 = sphi 0, %s50
    %s54 = sphi 0, %s53
    %s70 = sphi 0, %s54
    %s74 = sphi 0, %s74
    %s76 = sphi 0, %s74
    %s77 = sphi 0, %s76
    %s91 = sphi 0, %s77
    %s95 = sphi 0, %s95
    %s97 = sphi 0, %s95
    %s98 = sphi 0, %s97
    %s112 = sphi 0, %s98
    %s116 = sphi 0, %s116
    %s118 = sphi 0, %s116
    %s119 = sphi 0, %s118
    %s133 = sphi 0, %s119
    %s137 = sphi 0, %s137
    %s139 = sphi 0, %s137
    %s140 = sphi 0, %s139
    %s154 = sphi 0, %s140
    %s158 = sphi 0, %s158
    %s160 = sphi 0, %s158
    %s161 = sphi 0, %s160
    %s175 = sphi 0, %s161
    %s179 = sphi 0, %s179
    %s181 = sphi 0, %s179
    %s182 = sphi 0, %s181
    %s196 = sphi 0, %s182
    %s202 = sphi 0, %s204
    %s205 = sphi 0, %s202
    %s206 = sphi 0, %s205
    %s222 = sphi 0, %s206
  $region4: #{unfactored_gbm_forward.1} parent=0 // loop_header_branch
    %17 = sbr.rel (%p15) target = $region8
  $region5: #{unfactored_gbm_forward.1} parent=0 // loop_body
    %s19 = ssub.s32 %s14, 1
    %s20 = ssub.s32 %s14, 2
    %s21 = sadd.s32 %s14, 1
    %s22 = ssub.s32 %s14, %s21
    %p23 = scmp.eq.s32.totalorder %s22, 0
    %s25 = sadd.s32 %s24, 1
    %s26 = scalar_select %p23, %s24, %s25
    %p29 = pneg %p23
    %p30 = scmp.eq.s32.totalorder %s14, 1
    %p31 = por %p29, %p30
    %p32 = scmp.ne.s32.totalorder %s24, %s27
    %p33 = scmp.eq.s32.totalorder %s14, 0
    %p34 = por %p32, %p33
    %p35 = scmp.ne.s32.totalorder %s24, %s27
    %p36 = scmp.eq.s32.totalorder %s19, 1
    %p37 = por %p35, %p36
    %p38 = scmp.ne.s32.totalorder %s27, %s28
    %p39 = scmp.eq.s32.totalorder %s19, 0
    %p40 = por %p38, %p39
    %p41 = scmp.ne.s32.totalorder %s27, %s28
    %p42 = scmp.eq.s32.totalorder %s20, 1
    %p43 = por %p41, %p42
    %p45 = scmp.ne.s32.totalorder %s28, %s44
    %p46 = scmp.eq.s32.totalorder %s20, 0
    %p47 = por %p45, %p46
    %s48 = ssub.s32 %s14, %s21
    %p49 = scmp.eq.s32.totalorder %s48, 0
    %s51 = sadd.s32 %s50, 1
    %s52 = scalar_select %p49, %s50, %s51
    %p55 = pneg %p49
    %p56 = scmp.eq.s32.totalorder %s14, 1
    %p57 = por %p55, %p56
    %p58 = scmp.ne.s32.totalorder %s50, %s53
    %p59 = scmp.eq.s32.totalorder %s14, 0
    %p60 = por %p58, %p59
    %p61 = scmp.ne.s32.totalorder %s50, %s53
    %p62 = scmp.eq.s32.totalorder %s19, 1
    %p63 = por %p61, %p62
    %p64 = scmp.ne.s32.totalorder %s53, %s54
    %p65 = scmp.eq.s32.totalorder %s19, 0
    %p66 = por %p64, %p65
    %p67 = scmp.ne.s32.totalorder %s53, %s54
    %p68 = scmp.eq.s32.totalorder %s20, 1
    %p69 = por %p67, %p68
    %p71 = scmp.ne.s32.totalorder %s54, %s70
    %p72 = scmp.eq.s32.totalorder %s20, 0
    %p73 = por %p71, %p72
    %s75 = sadd.s32 %s74, 1
    %p78 = scmp.eq.s32.totalorder %s14, 1
    %p79 = scmp.ne.s32.totalorder %s74, %s76
    %p80 = scmp.eq.s32.totalorder %s14, 0
    %p81 = por %p79, %p80
    %p82 = scmp.ne.s32.totalorder %s74, %s76
    %p83 = scmp.eq.s32.totalorder %s19, 1
    %p84 = por %p82, %p83
    %p85 = scmp.ne.s32.totalorder %s76, %s77
    %p86 = scmp.eq.s32.totalorder %s19, 0
    %p87 = por %p85, %p86
    %p88 = scmp.ne.s32.totalorder %s76, %s77
    %p89 = scmp.eq.s32.totalorder %s20, 1
    %p90 = por %p88, %p89
    %p92 = scmp.ne.s32.totalorder %s77, %s91
    %p93 = scmp.eq.s32.totalorder %s20, 0
    %p94 = por %p92, %p93
    %s96 = sadd.s32 %s95, 1
    %p99 = scmp.eq.s32.totalorder %s14, 1
    %p100 = scmp.ne.s32.totalorder %s95, %s97
    %p101 = scmp.eq.s32.totalorder %s14, 0
    %p102 = por %p100, %p101
    %p103 = scmp.ne.s32.totalorder %s95, %s97
    %p104 = scmp.eq.s32.totalorder %s19, 1
    %p105 = por %p103, %p104
    %p106 = scmp.ne.s32.totalorder %s97, %s98
    %p107 = scmp.eq.s32.totalorder %s19, 0
    %p108 = por %p106, %p107
    %p109 = scmp.ne.s32.totalorder %s97, %s98
    %p110 = scmp.eq.s32.totalorder %s20, 1
    %p111 = por %p109, %p110
    %p113 = scmp.ne.s32.totalorder %s98, %s112
    %p114 = scmp.eq.s32.totalorder %s20, 0
    %p115 = por %p113, %p114
    %s117 = sadd.s32 %s116, 1
    %p120 = scmp.eq.s32.totalorder %s14, 1
    %p121 = scmp.ne.s32.totalorder %s116, %s118
    %p122 = scmp.eq.s32.totalorder %s14, 0
    %p123 = por %p121, %p122
    %p124 = scmp.ne.s32.totalorder %s116, %s118
    %p125 = scmp.eq.s32.totalorder %s19, 1
    %p126 = por %p124, %p125
    %p127 = scmp.ne.s32.totalorder %s118, %s119
    %p128 = scmp.eq.s32.totalorder %s19, 0
    %p129 = por %p127, %p128
    %p130 = scmp.ne.s32.totalorder %s118, %s119
    %p131 = scmp.eq.s32.totalorder %s20, 1
    %p132 = por %p130, %p131
    %p134 = scmp.ne.s32.totalorder %s119, %s133
    %p135 = scmp.eq.s32.totalorder %s20, 0
    %p136 = por %p134, %p135
    %s138 = sadd.s32 %s137, 1
    %p141 = scmp.eq.s32.totalorder %s14, 1
    %p142 = scmp.ne.s32.totalorder %s137, %s139
    %p143 = scmp.eq.s32.totalorder %s14, 0
    %p144 = por %p142, %p143
    %p145 = scmp.ne.s32.totalorder %s137, %s139
    %p146 = scmp.eq.s32.totalorder %s19, 1
    %p147 = por %p145, %p146
    %p148 = scmp.ne.s32.totalorder %s139, %s140
    %p149 = scmp.eq.s32.totalorder %s19, 0
    %p150 = por %p148, %p149
    %p151 = scmp.ne.s32.totalorder %s139, %s140
    %p152 = scmp.eq.s32.totalorder %s20, 1
    %p153 = por %p151, %p152
    %p155 = scmp.ne.s32.totalorder %s140, %s154
    %p156 = scmp.eq.s32.totalorder %s20, 0
    %p157 = por %p155, %p156
    %s159 = sadd.s32 %s158, 1
    %p162 = scmp.eq.s32.totalorder %s14, 1
    %p163 = scmp.ne.s32.totalorder %s158, %s160
    %p164 = scmp.eq.s32.totalorder %s14, 0
    %p165 = por %p163, %p164
    %p166 = scmp.ne.s32.totalorder %s158, %s160
    %p167 = scmp.eq.s32.totalorder %s19, 1
    %p168 = por %p166, %p167
    %p169 = scmp.ne.s32.totalorder %s160, %s161
    %p170 = scmp.eq.s32.totalorder %s19, 0
    %p171 = por %p169, %p170
    %p172 = scmp.ne.s32.totalorder %s160, %s161
    %p173 = scmp.eq.s32.totalorder %s20, 1
    %p174 = por %p172, %p173
    %p176 = scmp.ne.s32.totalorder %s161, %s175
    %p177 = scmp.eq.s32.totalorder %s20, 0
    %p178 = por %p176, %p177
    %s180 = sadd.s32 %s179, 1
    %p183 = scmp.eq.s32.totalorder %s14, 1
    %p184 = scmp.ne.s32.totalorder %s179, %s181
    %p185 = scmp.eq.s32.totalorder %s14, 0
    %p186 = por %p184, %p185
    %p187 = scmp.ne.s32.totalorder %s179, %s181
    %p188 = scmp.eq.s32.totalorder %s19, 1
    %p189 = por %p187, %p188
    %p190 = scmp.ne.s32.totalorder %s181, %s182
    %p191 = scmp.eq.s32.totalorder %s19, 0
    %p192 = por %p190, %p191
    %p193 = scmp.ne.s32.totalorder %s181, %s182
    %p194 = scmp.eq.s32.totalorder %s20, 1
    %p195 = por %p193, %p194
    %p197 = scmp.ne.s32.totalorder %s182, %s196
    %p198 = scmp.eq.s32.totalorder %s20, 0
    %p199 = por %p197, %p198
    %s200 = ssub.s32 %s14, %s21
    %p201 = scmp.eq.s32.totalorder %s200, 0
    %s203 = sadd.s32 %s202, 1
    %s204 = scalar_select %p201, %s202, %s203
    %p207 = pneg %p201
    %p208 = scmp.eq.s32.totalorder %s14, 1
    %p209 = por %p207, %p208
    %p210 = scmp.ne.s32.totalorder %s202, %s205
    %p211 = scmp.eq.s32.totalorder %s14, 0
    %p212 = por %p210, %p211
    %p213 = scmp.ne.s32.totalorder %s202, %s205
    %p214 = scmp.eq.s32.totalorder %s19, 1
    %p215 = por %p213, %p214
    %p216 = scmp.ne.s32.totalorder %s205, %s206
    %p217 = scmp.eq.s32.totalorder %s19, 0
    %p218 = por %p216, %p217
    %p219 = scmp.ne.s32.totalorder %s205, %s206
    %p220 = scmp.eq.s32.totalorder %s20, 1
    %p221 = por %p219, %p220
    %p223 = scmp.ne.s32.totalorder %s206, %s222
    %p224 = scmp.eq.s32.totalorder %s20, 0
    %p225 = por %p223, %p224
    %p226 = scmp.le.s32.totalorder 1, %s14
    %p227 = scmp.lt.s32.totalorder %s14, 3
    %p228 = pnand %p226, %p227
    %p229 = pneg %p228
    // Predicated region
    $region9: #{unfactored_gbm_forward.1} parent=5 // pred_check
      _
    $region10: #{unfactored_gbm_forward.1} parent=5 // pred_check_branch
      %231 = sbr.rel (%p228) target = $region12
    $region11: #{unfactored_gbm_forward.1} parent=5 // pred_region
      %s232 = ssub.s32 %s14, 1
      // Predicated region
      $region13: #{unfactored_gbm_forward.1} parent=11 // pred_check
        %p233 = pneg %p87
      $region14: #{unfactored_gbm_forward.1} parent=11 // pred_check_branch
        %235 = sbr.rel (%p233) target = $region16
      $region15: #{unfactored_gbm_forward.1} parent=11 // pred_region
        _
      $region16: #{unfactored_gbm_forward.1} parent=11 // pred_fallthru
        _
      // Predicated region
      $region17: #{unfactored_gbm_forward.1} parent=11 // pred_check
        %p236 = pneg %p108
      $region18: #{unfactored_gbm_forward.1} parent=11 // pred_check_branch
        %238 = sbr.rel (%p236) target = $region20
      $region19: #{unfactored_gbm_forward.1} parent=11 // pred_region
        _
      $region20: #{unfactored_gbm_forward.1} parent=11 // pred_fallthru
        _
      // Predicated region
      $region21: #{unfactored_gbm_forward.1} parent=11 // pred_check
        %p239 = pneg %p129
      $region22: #{unfactored_gbm_forward.1} parent=11 // pred_check_branch
        %241 = sbr.rel (%p239) target = $region24
      $region23: #{unfactored_gbm_forward.1} parent=11 // pred_region
        _
      $region24: #{unfactored_gbm_forward.1} parent=11 // pred_fallthru
        _
      // Predicated region
      $region25: #{unfactored_gbm_forward.1} parent=11 // pred_check
        %p242 = pneg %p150
      $region26: #{unfactored_gbm_forward.1} parent=11 // pred_check_branch
        %244 = sbr.rel (%p242) target = $region28
      $region27: #{unfactored_gbm_forward.1} parent=11 // pred_region
        _
      $region28: #{unfactored_gbm_forward.1} parent=11 // pred_fallthru
        _
      // Predicated region
      $region29: #{unfactored_gbm_forward.1} parent=11 // pred_check
        %p245 = pneg %p171
      $region30: #{unfactored_gbm_forward.1} parent=11 // pred_check_branch
        %247 = sbr.rel (%p245) target = $region32
      $region31: #{unfactored_gbm_forward.1} parent=11 // pred_region
        _
      $region32: #{unfactored_gbm_forward.1} parent=11 // pred_fallthru
        _
      // Predicated region
      $region33: #{unfactored_gbm_forward.1} parent=11 // pred_check
        %p248 = pneg %p192
      $region34: #{unfactored_gbm_forward.1} parent=11 // pred_check_branch
        %250 = sbr.rel (%p248) target = $region36
      $region35: #{unfactored_gbm_forward.1} parent=11 // pred_region
        _
      $region36: #{unfactored_gbm_forward.1} parent=11 // pred_fallthru
        _
    $region12: #{unfactored_gbm_forward.1} parent=5 // pred_fallthru
      _
    %p251 = scmp.lt.s32.totalorder %s14, 2
    // Predicated region
    $region37: #{unfactored_gbm_forward.1} parent=5 // pred_check
      %p252 = pneg %p251
    $region38: #{unfactored_gbm_forward.1} parent=5 // pred_check_branch
      %254 = sbr.rel (%p252) target = $region40
    $region39: #{unfactored_gbm_forward.1} parent=5 // pred_region
      // Predicated region
      $region41: #{unfactored_gbm_forward.1} parent=39 // pred_check
        %p255 = pneg %p34
      $region42: #{unfactored_gbm_forward.1} parent=39 // pred_check_branch
        %257 = sbr.rel (%p255) target = $region44
      $region43: #{unfactored_gbm_forward.1} parent=39 // pred_region
        %s258 = smul.u32 4, %s14
        %p259 = scmp.lt.s32.totalorder %s258, 7
        %s260 = scalar_select %p259, %s258, 7
        %s261 = smul.addr %s260, 8
        %s262 = scalar_lea.vmem %s0, %s261
        %s263 = smul.u32 4, %s14
      $region44: #{unfactored_gbm_forward.1} parent=39 // pred_fallthru
        _
      // Predicated region
      $region45: #{unfactored_gbm_forward.1} parent=39 // pred_check
        %p264 = pneg %p60
      $region46: #{unfactored_gbm_forward.1} parent=39 // pred_check_branch
        %266 = sbr.rel (%p264) target = $region48
      $region47: #{unfactored_gbm_forward.1} parent=39 // pred_region
        %s267 = smul.u32 4, %s14
        %p268 = scmp.lt.s32.totalorder %s267, 7
        %s269 = scalar_select %p268, %s267, 7
        %s270 = smul.addr %s269, 8
        %s271 = scalar_lea.vmem %s1, %s270
        %s272 = smul.u32 4, %s14
      $region48: #{unfactored_gbm_forward.1} parent=39 // pred_fallthru
        _
    $region40: #{unfactored_gbm_forward.1} parent=5 // pred_fallthru
      _
    %p273 = scmp.le.s32.totalorder 1, %s14
    %p274 = scmp.lt.s32.totalorder %s14, 3
    %p275 = pnand %p273, %p274
    %p276 = pneg %p275
    // Predicated region
    $region49: #{unfactored_gbm_forward.1} parent=5 // pred_check
      _
    $region50: #{unfactored_gbm_forward.1} parent=5 // pred_check_branch
      %278 = sbr.rel (%p275) target = $region52
    $region51: #{unfactored_gbm_forward.1} parent=5 // pred_region
      %s279 = ssub.s32 %s14, 1
      %s280 = smul.u32 4, %s19
      %p281 = scmp.lt.s32.totalorder %s280, 7
      %s282 = scalar_select %p281, %s280, 7
      %s283 = smul.addr %s282, 8
      %s284 = scalar_lea.vmem %s0, %s283
      %p285 = pneg %p40
      %p286 = pneg %p37
      %s287 = smul.u32 4, %s19
      %p288 = scmp.lt.s32.totalorder %s287, 7
      %s289 = scalar_select %p288, %s287, 7
      %s290 = smul.addr %s289, 8
      %s291 = scalar_lea.vmem %s1, %s290
      %p292 = pneg %p66
      %p293 = pneg %p63
      %p294 = pneg %p87
      %p295 = pneg %p84
      %p296 = pneg %p108
      %p297 = pneg %p105
      %p298 = pneg %p129
      %p299 = pneg %p126
      %p300 = pneg %p150
      %p301 = pneg %p147
      %p302 = pneg %p171
      %p303 = pneg %p168
      %p304 = pneg %p192
      %p305 = pneg %p189
      %p306 = pneg %p218
      %p307 = pneg %p215
      %s308 = smul.u32 4, %s19
      %p309 = scmp.lt.s32.totalorder %s308, 7
      %s310 = scalar_select %p309, %s308, 7
      %s311 = smul.addr %s310, 8
      %s312 = scalar_lea.vmem %s8, %s311
      %s313 = smul.u32 4, %s19
      %p314 = scmp.lt.s32.totalorder %s313, 7
      %s315 = scalar_select %p314, %s313, 7
      %s316 = smul.addr %s315, 8
      %s317 = scalar_lea.vmem %s0, %s316
      %s318 = smul.u32 4, %s19
      %s319 = smul.u32 4, %s19
      %p320 = scmp.lt.s32.totalorder %s319, 7
      %s321 = scalar_select %p320, %s319, 7
      %s322 = smul.addr %s321, 8
      %s323 = scalar_lea.vmem %s1, %s322
      %s324 = smul.u32 4, %s19
      %s325 = smul.u32 4, %s19
      %p326 = scmp.lt.s32.totalorder %s325, 7
      %s327 = scalar_select %p326, %s325, 7
      %s328 = smul.addr %s327, 8
      %s329 = scalar_lea.vmem %s8, %s328
      %s330 = smul.u32 4, %s19
      %v331 = vld [vmem:[%s317] sm:$0xff]
      %v332 = vld [vmem:[%s317 + $0x8] sm:$0xff]
      %v333 = vld [vmem:[%s317 + $0x10] sm:$0xff]
      %v334 = vld [vmem:[%s317 + $0x18] sm:$0xff]
      %v335 = vld [vmem:[%s323] sm:$0xff]
      %v336 = vld [vmem:[%s323 + $0x8] sm:$0xff]
      %v337 = vld [vmem:[%s323 + $0x10] sm:$0xff]
      %v338 = vld [vmem:[%s323 + $0x18] sm:$0xff]
      %v339 = vld [vmem:[%s5] sm:$0x1]
      %v341 = vlaneseq
      %v342 = vshrl.u32 %v341, 7
      %v343 = vsub.s32 0, %v342
      %v344 = vrot.slane %v339, %v343
      %v346 = vld [vmem:[%s6] sm:$0x1]
      %v348 = vlaneseq
      %v349 = vshrl.u32 %v348, 7
      %v350 = vsub.s32 0, %v349
      %v351 = vrot.slane %v346, %v350
      %v353 = vld [vmem:[%s7] sm:$0x1]
      %v355 = vlaneseq
      %v356 = vshrl.u32 %v355, 7
      %v357 = vsub.s32 0, %v356
      %v358 = vrot.slane %v353, %v357
      %361 = vset.pattern.permute.xlu0 0
      %362 = vperm.xlu0 %361, %v331
      %v363 = vpop.permute.xlu0 %362
      %366 = vset.pattern.permute.xlu0 0
      %367 = vperm.xlu0 %366, %v332
      %v368 = vpop.permute.xlu0 %367
      %371 = vset.pattern.permute.xlu0 0
      %372 = vperm.xlu0 %371, %v333
      %v373 = vpop.permute.xlu0 %372
      %376 = vset.pattern.permute.xlu0 0
      %377 = vperm.xlu0 %376, %v334
      %v378 = vpop.permute.xlu0 %377
      %v380 = vmul.f32 %v363, %v335
      %v381 = vmul.f32 %v368, %v336
      %v382 = vmul.f32 %v373, %v337
      %v383 = vmul.f32 %v378, %v338
      %384 = vset.pattern.permute.xlu0 1
      %385 = vperm.xlu0 %384, %v331
      %v386 = vpop.permute.xlu0 %385
      %388 = vset.pattern.permute.xlu0 1
      %389 = vperm.xlu0 %388, %v332
      %v390 = vpop.permute.xlu0 %389
      %392 = vset.pattern.permute.xlu0 1
      %393 = vperm.xlu0 %392, %v333
      %v394 = vpop.permute.xlu0 %393
      %396 = vset.pattern.permute.xlu0 1
      %397 = vperm.xlu0 %396, %v334
      %v398 = vpop.permute.xlu0 %397
      %v400 = vmul.f32 %v386, %v335
      %v401 = vmul.f32 %v390, %v336
      %v402 = vmul.f32 %v394, %v337
      %v403 = vmul.f32 %v398, %v338
      %404 = vset.pattern.permute.xlu0 2
      %405 = vperm.xlu0 %404, %v331
      %v406 = vpop.permute.xlu0 %405
      %408 = vset.pattern.permute.xlu0 2
      %409 = vperm.xlu0 %408, %v332
      %v410 = vpop.permute.xlu0 %409
      %412 = vset.pattern.permute.xlu0 2
      %413 = vperm.xlu0 %412, %v333
      %v414 = vpop.permute.xlu0 %413
      %416 = vset.pattern.permute.xlu0 2
      %417 = vperm.xlu0 %416, %v334
      %v418 = vpop.permute.xlu0 %417
      %v420 = vmul.f32 %v406, %v335
      %v421 = vmul.f32 %v410, %v336
      %v422 = vmul.f32 %v414, %v337
      %v423 = vmul.f32 %v418, %v338
      %424 = vset.pattern.permute.xlu0 3
      %425 = vperm.xlu0 %424, %v331
      %v426 = vpop.permute.xlu0 %425
      %428 = vset.pattern.permute.xlu0 3
      %429 = vperm.xlu0 %428, %v332
      %v430 = vpop.permute.xlu0 %429
      %432 = vset.pattern.permute.xlu0 3
      %433 = vperm.xlu0 %432, %v333
      %v434 = vpop.permute.xlu0 %433
      %436 = vset.pattern.permute.xlu0 3
      %437 = vperm.xlu0 %436, %v334
      %v438 = vpop.permute.xlu0 %437
      %v440 = vmul.f32 %v426, %v335
      %v441 = vmul.f32 %v430, %v336
      %v442 = vmul.f32 %v434, %v337
      %v443 = vmul.f32 %v438, %v338
      %444 = vset.pattern.permute.xlu0 4
      %445 = vperm.xlu0 %444, %v331
      %v446 = vpop.permute.xlu0 %445
      %448 = vset.pattern.permute.xlu0 4
      %449 = vperm.xlu0 %448, %v332
      %v450 = vpop.permute.xlu0 %449
      %452 = vset.pattern.permute.xlu0 4
      %453 = vperm.xlu0 %452, %v333
      %v454 = vpop.permute.xlu0 %453
      %456 = vset.pattern.permute.xlu0 4
      %457 = vperm.xlu0 %456, %v334
      %v458 = vpop.permute.xlu0 %457
      %v460 = vmul.f32 %v446, %v335
      %v461 = vmul.f32 %v450, %v336
      %v462 = vmul.f32 %v454, %v337
      %v463 = vmul.f32 %v458, %v338
      %464 = vset.pattern.permute.xlu0 5
      %465 = vperm.xlu0 %464, %v331
      %v466 = vpop.permute.xlu0 %465
      %468 = vset.pattern.permute.xlu0 5
      %469 = vperm.xlu0 %468, %v332
      %v470 = vpop.permute.xlu0 %469
      %472 = vset.pattern.permute.xlu0 5
      %473 = vperm.xlu0 %472, %v333
      %v474 = vpop.permute.xlu0 %473
      %476 = vset.pattern.permute.xlu0 5
      %477 = vperm.xlu0 %476, %v334
      %v478 = vpop.permute.xlu0 %477
      %v480 = vmul.f32 %v466, %v335
      %v481 = vmul.f32 %v470, %v336
      %v482 = vmul.f32 %v474, %v337
      %v483 = vmul.f32 %v478, %v338
      %484 = vset.pattern.permute.xlu0 6
      %485 = vperm.xlu0 %484, %v331
      %v486 = vpop.permute.xlu0 %485
      %488 = vset.pattern.permute.xlu0 6
      %489 = vperm.xlu0 %488, %v332
      %v490 = vpop.permute.xlu0 %489
      %492 = vset.pattern.permute.xlu0 6
      %493 = vperm.xlu0 %492, %v333
      %v494 = vpop.permute.xlu0 %493
      %496 = vset.pattern.permute.xlu0 6
      %497 = vperm.xlu0 %496, %v334
      %v498 = vpop.permute.xlu0 %497
      %v500 = vmul.f32 %v486, %v335
      %v501 = vmul.f32 %v490, %v336
      %v502 = vmul.f32 %v494, %v337
      %v503 = vmul.f32 %v498, %v338
      %504 = vset.pattern.permute.xlu0 7
      %505 = vperm.xlu0 %504, %v331
      %v506 = vpop.permute.xlu0 %505
      %508 = vset.pattern.permute.xlu0 7
      %509 = vperm.xlu0 %508, %v332
      %v510 = vpop.permute.xlu0 %509
      %512 = vset.pattern.permute.xlu0 7
      %513 = vperm.xlu0 %512, %v333
      %v514 = vpop.permute.xlu0 %513
      %516 = vset.pattern.permute.xlu0 7
      %517 = vperm.xlu0 %516, %v334
      %v518 = vpop.permute.xlu0 %517
      %v520 = vmul.f32 %v506, %v335
      %v521 = vmul.f32 %v510, %v336
      %v522 = vmul.f32 %v514, %v337
      %v523 = vmul.f32 %v518, %v338
      %528 = vrot.lane.b32.xlu0 %v400, 16
      %v529 = vpop.permute.xlu0 %528
      %530 = vrot.lane.b32.xlu0 %v401, 16
      %v531 = vpop.permute.xlu0 %530
      %532 = vrot.lane.b32.xlu0 %v402, 16
      %v533 = vpop.permute.xlu0 %532
      %534 = vrot.lane.b32.xlu0 %v403, 16
      %v535 = vpop.permute.xlu0 %534
      %544 = vrot.lane.b32.xlu0 %v420, 32
      %v545 = vpop.permute.xlu0 %544
      %546 = vrot.lane.b32.xlu0 %v421, 32
      %v547 = vpop.permute.xlu0 %546
      %548 = vrot.lane.b32.xlu0 %v422, 32
      %v549 = vpop.permute.xlu0 %548
      %550 = vrot.lane.b32.xlu0 %v423, 32
      %v551 = vpop.permute.xlu0 %550
      %560 = vrot.lane.b32.xlu0 %v440, 48
      %v561 = vpop.permute.xlu0 %560
      %562 = vrot.lane.b32.xlu0 %v441, 48
      %v563 = vpop.permute.xlu0 %562
      %564 = vrot.lane.b32.xlu0 %v442, 48
      %v565 = vpop.permute.xlu0 %564
      %566 = vrot.lane.b32.xlu0 %v443, 48
      %v567 = vpop.permute.xlu0 %566
      %576 = vrot.lane.b32.xlu0 %v460, 64
      %v577 = vpop.permute.xlu0 %576
      %578 = vrot.lane.b32.xlu0 %v461, 64
      %v579 = vpop.permute.xlu0 %578
      %580 = vrot.lane.b32.xlu0 %v462, 64
      %v581 = vpop.permute.xlu0 %580
      %582 = vrot.lane.b32.xlu0 %v463, 64
      %v583 = vpop.permute.xlu0 %582
      %592 = vrot.lane.b32.xlu0 %v480, 80
      %v593 = vpop.permute.xlu0 %592
      %594 = vrot.lane.b32.xlu0 %v481, 80
      %v595 = vpop.permute.xlu0 %594
      %596 = vrot.lane.b32.xlu0 %v482, 80
      %v597 = vpop.permute.xlu0 %596
      %598 = vrot.lane.b32.xlu0 %v483, 80
      %v599 = vpop.permute.xlu0 %598
      %608 = vrot.lane.b32.xlu0 %v500, 96
      %v609 = vpop.permute.xlu0 %608
      %610 = vrot.lane.b32.xlu0 %v501, 96
      %v611 = vpop.permute.xlu0 %610
      %612 = vrot.lane.b32.xlu0 %v502, 96
      %v613 = vpop.permute.xlu0 %612
      %614 = vrot.lane.b32.xlu0 %v503, 96
      %v615 = vpop.permute.xlu0 %614
      %624 = vrot.lane.b32.xlu0 %v520, 112
      %v625 = vpop.permute.xlu0 %624
      %626 = vrot.lane.b32.xlu0 %v521, 112
      %v627 = vpop.permute.xlu0 %626
      %628 = vrot.lane.b32.xlu0 %v522, 112
      %v629 = vpop.permute.xlu0 %628
      %630 = vrot.lane.b32.xlu0 %v523, 112
      %v631 = vpop.permute.xlu0 %630
      %vm636 = vcmask 130048
      %v637 = vsel %vm636, %v380, %v529
      %v638 = vsel %vm636, %v381, %v531
      %v639 = vsel %vm636, %v382, %v533
      %v640 = vsel %vm636, %v383, %v535
      %vm641 = vcmask 261120
      %v642 = vsel %vm641, %v637, %v545
      %v643 = vsel %vm641, %v638, %v547
      %v644 = vsel %vm641, %v639, %v549
      %v645 = vsel %vm641, %v640, %v551
      %vm646 = vcmask 392192
      %v647 = vsel %vm646, %v642, %v561
      %v648 = vsel %vm646, %v643, %v563
      %v649 = vsel %vm646, %v644, %v565
      %v650 = vsel %vm646, %v645, %v567
      %vm651 = vcmask 523264
      %v652 = vsel %vm651, %v647, %v577
      %v653 = vsel %vm651, %v648, %v579
      %v654 = vsel %vm651, %v649, %v581
      %v655 = vsel %vm651, %v650, %v583
      %vm656 = vcmask 654336
      %v657 = vsel %vm656, %v652, %v593
      %v658 = vsel %vm656, %v653, %v595
      %v659 = vsel %vm656, %v654, %v597
      %v660 = vsel %vm656, %v655, %v599
      %vm661 = vcmask 785408
      %v662 = vsel %vm661, %v657, %v609
      %v663 = vsel %vm661, %v658, %v611
      %v664 = vsel %vm661, %v659, %v613
      %v665 = vsel %vm661, %v660, %v615
      %vm666 = vcmask 916480
      %v667 = vsel %vm666, %v662, %v625
      %v668 = vsel %vm666, %v663, %v627
      %v669 = vsel %vm666, %v664, %v629
      %v670 = vsel %vm666, %v665, %v631
      %671 = vst [vmem:[#allocation2] sm:$0xff] %v667
      %672 = vst [vmem:[#allocation2 + $0x20] sm:$0xff] %v668
      %673 = vst [vmem:[#allocation2 + $0x40] sm:$0xff] %v669
      %674 = vst [vmem:[#allocation2 + $0x60] sm:$0xff] %v670
      %675 = vset.pattern.permute.xlu0 8
      %676 = vperm.xlu0 %675, %v331
      %v677 = vpop.permute.xlu0 %676
      %679 = vset.pattern.permute.xlu0 8
      %680 = vperm.xlu0 %679, %v332
      %v681 = vpop.permute.xlu0 %680
      %683 = vset.pattern.permute.xlu0 8
      %684 = vperm.xlu0 %683, %v333
      %v685 = vpop.permute.xlu0 %684
      %687 = vset.pattern.permute.xlu0 8
      %688 = vperm.xlu0 %687, %v334
      %v689 = vpop.permute.xlu0 %688
      %v691 = vmul.f32 %v677, %v335
      %v692 = vmul.f32 %v681, %v336
      %v693 = vmul.f32 %v685, %v337
      %v694 = vmul.f32 %v689, %v338
      %695 = vset.pattern.permute.xlu0 9
      %696 = vperm.xlu0 %695, %v331
      %v697 = vpop.permute.xlu0 %696
      %699 = vset.pattern.permute.xlu0 9
      %700 = vperm.xlu0 %699, %v332
      %v701 = vpop.permute.xlu0 %700
      %703 = vset.pattern.permute.xlu0 9
      %704 = vperm.xlu0 %703, %v333
      %v705 = vpop.permute.xlu0 %704
      %707 = vset.pattern.permute.xlu0 9
      %708 = vperm.xlu0 %707, %v334
      %v709 = vpop.permute.xlu0 %708
      %v711 = vmul.f32 %v697, %v335
      %v712 = vmul.f32 %v701, %v336
      %v713 = vmul.f32 %v705, %v337
      %v714 = vmul.f32 %v709, %v338
      %715 = vset.pattern.permute.xlu0 10
      %716 = vperm.xlu0 %715, %v331
      %v717 = vpop.permute.xlu0 %716
      %719 = vset.pattern.permute.xlu0 10
      %720 = vperm.xlu0 %719, %v332
      %v721 = vpop.permute.xlu0 %720
      %723 = vset.pattern.permute.xlu0 10
      %724 = vperm.xlu0 %723, %v333
      %v725 = vpop.permute.xlu0 %724
      %727 = vset.pattern.permute.xlu0 10
      %728 = vperm.xlu0 %727, %v334
      %v729 = vpop.permute.xlu0 %728
      %v731 = vmul.f32 %v717, %v335
      %v732 = vmul.f32 %v721, %v336
      %v733 = vmul.f32 %v725, %v337
      %v734 = vmul.f32 %v729, %v338
      %735 = vset.pattern.permute.xlu0 11
      %736 = vperm.xlu0 %735, %v331
      %v737 = vpop.permute.xlu0 %736
      %739 = vset.pattern.permute.xlu0 11
      %740 = vperm.xlu0 %739, %v332
      %v741 = vpop.permute.xlu0 %740
      %743 = vset.pattern.permute.xlu0 11
      %744 = vperm.xlu0 %743, %v333
      %v745 = vpop.permute.xlu0 %744
      %747 = vset.pattern.permute.xlu0 11
      %748 = vperm.xlu0 %747, %v334
      %v749 = vpop.permute.xlu0 %748
      %v751 = vmul.f32 %v737, %v335
      %v752 = vmul.f32 %v741, %v336
      %v753 = vmul.f32 %v745, %v337
      %v754 = vmul.f32 %v749, %v338
      %755 = vset.pattern.permute.xlu0 12
      %756 = vperm.xlu0 %755, %v331
      %v757 = vpop.permute.xlu0 %756
      %759 = vset.pattern.permute.xlu0 12
      %760 = vperm.xlu0 %759, %v332
      %v761 = vpop.permute.xlu0 %760
      %763 = vset.pattern.permute.xlu0 12
      %764 = vperm.xlu0 %763, %v333
      %v765 = vpop.permute.xlu0 %764
      %767 = vset.pattern.permute.xlu0 12
      %768 = vperm.xlu0 %767, %v334
      %v769 = vpop.permute.xlu0 %768
      %v771 = vmul.f32 %v757, %v335
      %v772 = vmul.f32 %v761, %v336
      %v773 = vmul.f32 %v765, %v337
      %v774 = vmul.f32 %v769, %v338
      %775 = vset.pattern.permute.xlu0 13
      %776 = vperm.xlu0 %775, %v331
      %v777 = vpop.permute.xlu0 %776
      %779 = vset.pattern.permute.xlu0 13
      %780 = vperm.xlu0 %779, %v332
      %v781 = vpop.permute.xlu0 %780
      %783 = vset.pattern.permute.xlu0 13
      %784 = vperm.xlu0 %783, %v333
      %v785 = vpop.permute.xlu0 %784
      %787 = vset.pattern.permute.xlu0 13
      %788 = vperm.xlu0 %787, %v334
      %v789 = vpop.permute.xlu0 %788
      %v791 = vmul.f32 %v777, %v335
      %v792 = vmul.f32 %v781, %v336
      %v793 = vmul.f32 %v785, %v337
      %v794 = vmul.f32 %v789, %v338
      %795 = vset.pattern.permute.xlu0 14
      %796 = vperm.xlu0 %795, %v331
      %v797 = vpop.permute.xlu0 %796
      %799 = vset.pattern.permute.xlu0 14
      %800 = vperm.xlu0 %799, %v332
      %v801 = vpop.permute.xlu0 %800
      %803 = vset.pattern.permute.xlu0 14
      %804 = vperm.xlu0 %803, %v333
      %v805 = vpop.permute.xlu0 %804
      %807 = vset.pattern.permute.xlu0 14
      %808 = vperm.xlu0 %807, %v334
      %v809 = vpop.permute.xlu0 %808
      %v811 = vmul.f32 %v797, %v335
      %v812 = vmul.f32 %v801, %v336
      %v813 = vmul.f32 %v805, %v337
      %v814 = vmul.f32 %v809, %v338
      %815 = vset.pattern.permute.xlu0 15
      %816 = vperm.xlu0 %815, %v331
      %v817 = vpop.permute.xlu0 %816
      %819 = vset.pattern.permute.xlu0 15
      %820 = vperm.xlu0 %819, %v332
      %v821 = vpop.permute.xlu0 %820
      %823 = vset.pattern.permute.xlu0 15
      %824 = vperm.xlu0 %823, %v333
      %v825 = vpop.permute.xlu0 %824
      %827 = vset.pattern.permute.xlu0 15
      %828 = vperm.xlu0 %827, %v334
      %v829 = vpop.permute.xlu0 %828
      %v831 = vmul.f32 %v817, %v335
      %v832 = vmul.f32 %v821, %v336
      %v833 = vmul.f32 %v825, %v337
      %v834 = vmul.f32 %v829, %v338
      %839 = vrot.lane.b32.xlu0 %v711, 16
      %v840 = vpop.permute.xlu0 %839
      %841 = vrot.lane.b32.xlu0 %v712, 16
      %v842 = vpop.permute.xlu0 %841
      %843 = vrot.lane.b32.xlu0 %v713, 16
      %v844 = vpop.permute.xlu0 %843
      %845 = vrot.lane.b32.xlu0 %v714, 16
      %v846 = vpop.permute.xlu0 %845
      %855 = vrot.lane.b32.xlu0 %v731, 32
      %v856 = vpop.permute.xlu0 %855
      %857 = vrot.lane.b32.xlu0 %v732, 32
      %v858 = vpop.permute.xlu0 %857
      %859 = vrot.lane.b32.xlu0 %v733, 32
      %v860 = vpop.permute.xlu0 %859
      %861 = vrot.lane.b32.xlu0 %v734, 32
      %v862 = vpop.permute.xlu0 %861
      %871 = vrot.lane.b32.xlu0 %v751, 48
      %v872 = vpop.permute.xlu0 %871
      %873 = vrot.lane.b32.xlu0 %v752, 48
      %v874 = vpop.permute.xlu0 %873
      %875 = vrot.lane.b32.xlu0 %v753, 48
      %v876 = vpop.permute.xlu0 %875
      %877 = vrot.lane.b32.xlu0 %v754, 48
      %v878 = vpop.permute.xlu0 %877
      %887 = vrot.lane.b32.xlu0 %v771, 64
      %v888 = vpop.permute.xlu0 %887
      %889 = vrot.lane.b32.xlu0 %v772, 64
      %v890 = vpop.permute.xlu0 %889
      %891 = vrot.lane.b32.xlu0 %v773, 64
      %v892 = vpop.permute.xlu0 %891
      %893 = vrot.lane.b32.xlu0 %v774, 64
      %v894 = vpop.permute.xlu0 %893
      %903 = vrot.lane.b32.xlu0 %v791, 80
      %v904 = vpop.permute.xlu0 %903
      %905 = vrot.lane.b32.xlu0 %v792, 80
      %v906 = vpop.permute.xlu0 %905
      %907 = vrot.lane.b32.xlu0 %v793, 80
      %v908 = vpop.permute.xlu0 %907
      %909 = vrot.lane.b32.xlu0 %v794, 80
      %v910 = vpop.permute.xlu0 %909
      %919 = vrot.lane.b32.xlu0 %v811, 96
      %v920 = vpop.permute.xlu0 %919
      %921 = vrot.lane.b32.xlu0 %v812, 96
      %v922 = vpop.permute.xlu0 %921
      %923 = vrot.lane.b32.xlu0 %v813, 96
      %v924 = vpop.permute.xlu0 %923
      %925 = vrot.lane.b32.xlu0 %v814, 96
      %v926 = vpop.permute.xlu0 %925
      %935 = vrot.lane.b32.xlu0 %v831, 112
      %v936 = vpop.permute.xlu0 %935
      %937 = vrot.lane.b32.xlu0 %v832, 112
      %v938 = vpop.permute.xlu0 %937
      %939 = vrot.lane.b32.xlu0 %v833, 112
      %v940 = vpop.permute.xlu0 %939
      %941 = vrot.lane.b32.xlu0 %v834, 112
      %v942 = vpop.permute.xlu0 %941
      %v947 = vsel %vm636, %v691, %v840
      %v948 = vsel %vm636, %v692, %v842
      %v949 = vsel %vm636, %v693, %v844
      %v950 = vsel %vm636, %v694, %v846
      %v951 = vsel %vm641, %v947, %v856
      %v952 = vsel %vm641, %v948, %v858
      %v953 = vsel %vm641, %v949, %v860
      %v954 = vsel %vm641, %v950, %v862
      %v955 = vsel %vm646, %v951, %v872
      %v956 = vsel %vm646, %v952, %v874
      %v957 = vsel %vm646, %v953, %v876
      %v958 = vsel %vm646, %v954, %v878
      %v959 = vsel %vm651, %v955, %v888
      %v960 = vsel %vm651, %v956, %v890
      %v961 = vsel %vm651, %v957, %v892
      %v962 = vsel %vm651, %v958, %v894
      %v963 = vsel %vm656, %v959, %v904
      %v964 = vsel %vm656, %v960, %v906
      %v965 = vsel %vm656, %v961, %v908
      %v966 = vsel %vm656, %v962, %v910
      %v967 = vsel %vm661, %v963, %v920
      %v968 = vsel %vm661, %v964, %v922
      %v969 = vsel %vm661, %v965, %v924
      %v970 = vsel %vm661, %v966, %v926
      %v971 = vsel %vm666, %v967, %v936
      %v972 = vsel %vm666, %v968, %v938
      %v973 = vsel %vm666, %v969, %v940
      %v974 = vsel %vm666, %v970, %v942
      %975 = vst [vmem:[#allocation2 + $0x8] sm:$0xff] %v971
      %976 = vst [vmem:[#allocation2 + $0x28] sm:$0xff] %v972
      %977 = vst [vmem:[#allocation2 + $0x48] sm:$0xff] %v973
      %978 = vst [vmem:[#allocation2 + $0x68] sm:$0xff] %v974
      %v979 = vld [vmem:[#allocation2] sm:$0xff]
      %v980 = vld [vmem:[#allocation2 + $0x8] sm:$0xff]
      %v981 = vld [vmem:[#allocation2 + $0x20] sm:$0xff]
      %v982 = vld [vmem:[#allocation2 + $0x28] sm:$0xff]
      %v983 = vld [vmem:[#allocation2 + $0x40] sm:$0xff]
      %v984 = vld [vmem:[#allocation2 + $0x48] sm:$0xff]
      %v985 = vld [vmem:[#allocation2 + $0x60] sm:$0xff]
      %v986 = vld [vmem:[#allocation2 + $0x68] sm:$0xff]
      %v987 = vld [vmem:[%s2] sm:$0xff]
      %v988 = vld [vmem:[%s2 + $0x8] sm:$0xff]
      %v989 = vld [vmem:[%s2 + $0x10] sm:$0xff]
      %v990 = vld [vmem:[%s2 + $0x18] sm:$0xff]
      %v991 = vld [vmem:[%s2 + $0x20] sm:$0xff]
      %v992 = vld [vmem:[%s2 + $0x28] sm:$0xff]
      %v993 = vld [vmem:[%s2 + $0x30] sm:$0xff]
      %v994 = vld [vmem:[%s2 + $0x38] sm:$0xff]
      %v995 = vld [vmem:[%s2 + $0x40] sm:$0xff]
      %v996 = vld [vmem:[%s2 + $0x48] sm:$0xff]
      %v997 = vld [vmem:[%s2 + $0x50] sm:$0xff]
      %v998 = vld [vmem:[%s2 + $0x58] sm:$0xff]
      %v999 = vld [vmem:[%s2 + $0x60] sm:$0xff]
      %v1000 = vld [vmem:[%s2 + $0x68] sm:$0xff]
      %v1001 = vld [vmem:[%s2 + $0x70] sm:$0xff]
      %v1002 = vld [vmem:[%s2 + $0x78] sm:$0xff]
      %v1003 = vld [vmem:[%s2 + $0x80] sm:$0xff]
      %v1004 = vld [vmem:[%s2 + $0x88] sm:$0xff]
      %v1005 = vld [vmem:[%s2 + $0x90] sm:$0xff]
      %v1006 = vld [vmem:[%s2 + $0x98] sm:$0xff]
      %v1007 = vld [vmem:[%s2 + $0xa0] sm:$0xff]
      %v1008 = vld [vmem:[%s2 + $0xa8] sm:$0xff]
      %v1009 = vld [vmem:[%s2 + $0xb0] sm:$0xff]
      %v1010 = vld [vmem:[%s2 + $0xb8] sm:$0xff]
      %v1011 = vld [vmem:[%s2 + $0xc0] sm:$0xff]
      %v1012 = vld [vmem:[%s2 + $0xc8] sm:$0xff]
      %v1013 = vld [vmem:[%s2 + $0xd0] sm:$0xff]
      %v1014 = vld [vmem:[%s2 + $0xd8] sm:$0xff]
      %v1015 = vld [vmem:[%s2 + $0xe0] sm:$0xff]
      %v1016 = vld [vmem:[%s2 + $0xe8] sm:$0xff]
      %v1017 = vld [vmem:[%s2 + $0xf0] sm:$0xff]
      %v1018 = vld [vmem:[%s2 + $0xf8] sm:$0xff]
      %1019 = vmatprep.subr.mxu0 0.0
      %1020 = vmatpush1.msra.mxu0 %v1002
      %1021 = vmatprep.subr.mxu0 0.0
      %1022 = vmatpush1.msra.mxu0 %v1001
      %1023 = vmatprep.subr.mxu0 0.0
      %1024 = vmatpush1.msra.mxu0 %v1000
      %1025 = vmatprep.subr.mxu0 0.0
      %1026 = vmatpush1.msra.mxu0 %v999
      %1027 = vmatprep.subr.mxu0 0.0
      %1028 = vmatpush1.msra.mxu0 %v998
      %1029 = vmatprep.subr.mxu0 0.0
      %1030 = vmatpush1.msra.mxu0 %v997
      %1031 = vmatprep.subr.mxu0 0.0
      %1032 = vmatpush1.msra.mxu0 %v996
      %1033 = vmatprep.subr.mxu0 0.0
      %1034 = vmatpush1.msra.mxu0 %v995
      %1035 = vmatprep.subr.mxu0 0.0
      %1036 = vmatpush1.msra.mxu0 %v994
      %1037 = vmatprep.subr.mxu0 0.0
      %1038 = vmatpush1.msra.mxu0 %v993
      %1039 = vmatprep.subr.mxu0 0.0
      %1040 = vmatpush1.msra.mxu0 %v992
      %1041 = vmatprep.subr.mxu0 0.0
      %1042 = vmatpush1.msra.mxu0 %v991
      %1043 = vmatprep.subr.mxu0 0.0
      %1044 = vmatpush1.msra.mxu0 %v990
      %1045 = vmatprep.subr.mxu0 0.0
      %1046 = vmatpush1.msra.mxu0 %v989
      %1047 = vmatprep.subr.mxu0 0.0
      %1048 = vmatpush1.msra.mxu0 %v988
      %1049 = vmatprep.subr.mxu0 0.0
      %1050 = vmatpush1.msra.mxu0 %v987
      %1051 = vmatprep.subr.mxu0 0.0
      %1052 = vmatpush2.msra.mxu0 %v1018
      %1053 = vmatprep.subr.mxu0 0.0
      %1054 = vmatpush2.msra.mxu0 %v1017
      %1055 = vmatprep.subr.mxu0 0.0
      %1056 = vmatpush2.msra.mxu0 %v1016
      %1057 = vmatprep.subr.mxu0 0.0
      %1058 = vmatpush2.msra.mxu0 %v1015
      %1059 = vmatprep.subr.mxu0 0.0
      %1060 = vmatpush2.msra.mxu0 %v1014
      %1061 = vmatprep.subr.mxu0 0.0
      %1062 = vmatpush2.msra.mxu0 %v1013
      %1063 = vmatprep.subr.mxu0 0.0
      %1064 = vmatpush2.msra.mxu0 %v1012
      %1065 = vmatprep.subr.mxu0 0.0
      %1066 = vmatpush2.msra.mxu0 %v1011
      %1067 = vmatprep.subr.mxu0 0.0
      %1068 = vmatpush2.msra.mxu0 %v1010
      %1069 = vmatprep.subr.mxu0 0.0
      %1070 = vmatpush2.msra.mxu0 %v1009
      %1071 = vmatprep.subr.mxu0 0.0
      %1072 = vmatpush2.msra.mxu0 %v1008
      %1073 = vmatprep.subr.mxu0 0.0
      %1074 = vmatpush2.msra.mxu0 %v1007
      %1075 = vmatprep.subr.mxu0 0.0
      %1076 = vmatpush2.msra.mxu0 %v1006
      %1077 = vmatprep.subr.mxu0 0.0
      %1078 = vmatpush2.msra.mxu0 %v1005
      %1079 = vmatprep.subr.mxu0 0.0
      %1080 = vmatpush2.msra.mxu0 %v1004
      %1081 = vmatprep.subr.mxu0 0.0
      %1082 = vmatpush2.msra.mxu0 %v1003
      %1083 = vmatprep.mubr.f32.mxu0 %v980
      %1084 = vmatmul.mubr.f32.gmra.mxu0 %v979
      %v1085 = vpop.f32.mrf.mxu0
      %v1086 = vadd.f32 %v358, %v1085
      %v1087 = vpop.f32.mrf.mxu0
      %1088 = vmatprep.mubr.f32.mxu0 %v982
      %1089 = vmatmul.mubr.f32.gmra.mxu0 %v981
      %v1090 = vpop.f32.mrf.mxu0
      %v1091 = vadd.f32 %v358, %v1090
      %v1092 = vpop.f32.mrf.mxu0
      %1093 = vmatprep.mubr.f32.mxu0 %v984
      %1094 = vmatmul.mubr.f32.gmra.mxu0 %v983
      %v1095 = vpop.f32.mrf.mxu0
      %v1096 = vadd.f32 %v358, %v1095
      %v1097 = vpop.f32.mrf.mxu0
      %1098 = vmatprep.mubr.f32.mxu0 %v986
      %1099 = vmatmul.mubr.f32.gmra.mxu0 %v985
      %v1100 = vpop.f32.mrf.mxu0
      %v1101 = vadd.f32 %v358, %v1100
      %v1102 = vpop.f32.mrf.mxu0
      %1103 = vdwg.mxu0
      %v1104 = vmul.f32 %v1086, 0.5
      %v1105 = vmul.f32 %v1091, 0.5
      %v1106 = vmul.f32 %v1096, 0.5
      %v1107 = vmul.f32 %v1101, 0.5
      %v1108 = vtanh.pop %v1104
      %v1109 = vtanh.pop %v1105
      %v1110 = vtanh.pop %v1106
      %v1111 = vtanh.pop %v1107
      %v1112 = vmul.f32 %v1108, 0.5
      %v1113 = vmul.f32 %v1109, 0.5
      %v1114 = vmul.f32 %v1110, 0.5
      %v1115 = vmul.f32 %v1111, 0.5
      %v1116 = vadd.f32 %v1112, 0.5
      %v1117 = vadd.f32 %v1113, 0.5
      %v1118 = vadd.f32 %v1114, 0.5
      %v1119 = vadd.f32 %v1115, 0.5
      %v1120 = vmul.f32 %v363, %v1116
      %v1121 = vmul.f32 %v368, %v1117
      %v1122 = vmul.f32 %v373, %v1118
      %v1123 = vmul.f32 %v378, %v1119
      %v1124 = vmul.f32 %v386, %v1116
      %v1125 = vmul.f32 %v390, %v1117
      %v1126 = vmul.f32 %v394, %v1118
      %v1127 = vmul.f32 %v398, %v1119
      %v1128 = vmul.f32 %v406, %v1116
      %v1129 = vmul.f32 %v410, %v1117
      %v1130 = vmul.f32 %v414, %v1118
      %v1131 = vmul.f32 %v418, %v1119
      %v1132 = vmul.f32 %v426, %v1116
      %v1133 = vmul.f32 %v430, %v1117
      %v1134 = vmul.f32 %v434, %v1118
      %v1135 = vmul.f32 %v438, %v1119
      %1140 = vrot.lane.b32.xlu0 %v1124, 32
      %v1141 = vpop.permute.xlu0 %1140
      %1142 = vrot.lane.b32.xlu0 %v1125, 32
      %v1143 = vpop.permute.xlu0 %1142
      %1144 = vrot.lane.b32.xlu0 %v1126, 32
      %v1145 = vpop.permute.xlu0 %1144
      %1146 = vrot.lane.b32.xlu0 %v1127, 32
      %v1147 = vpop.permute.xlu0 %1146
      %1156 = vrot.lane.b32.xlu0 %v1128, 64
      %v1157 = vpop.permute.xlu0 %1156
      %1158 = vrot.lane.b32.xlu0 %v1129, 64
      %v1159 = vpop.permute.xlu0 %1158
      %1160 = vrot.lane.b32.xlu0 %v1130, 64
      %v1161 = vpop.permute.xlu0 %1160
      %1162 = vrot.lane.b32.xlu0 %v1131, 64
      %v1163 = vpop.permute.xlu0 %1162
      %1172 = vrot.lane.b32.xlu0 %v1132, 96
      %v1173 = vpop.permute.xlu0 %1172
      %1174 = vrot.lane.b32.xlu0 %v1133, 96
      %v1175 = vpop.permute.xlu0 %1174
      %1176 = vrot.lane.b32.xlu0 %v1134, 96
      %v1177 = vpop.permute.xlu0 %1176
      %1178 = vrot.lane.b32.xlu0 %v1135, 96
      %v1179 = vpop.permute.xlu0 %1178
      %v1184 = vsel %vm641, %v1120, %v1141
      %v1185 = vsel %vm641, %v1121, %v1143
      %v1186 = vsel %vm641, %v1122, %v1145
      %v1187 = vsel %vm641, %v1123, %v1147
      %v1188 = vsel %vm651, %v1184, %v1157
      %v1189 = vsel %vm651, %v1185, %v1159
      %v1190 = vsel %vm651, %v1186, %v1161
      %v1191 = vsel %vm651, %v1187, %v1163
      %v1192 = vsel %vm661, %v1188, %v1173
      %v1193 = vsel %vm661, %v1189, %v1175
      %v1194 = vsel %vm661, %v1190, %v1177
      %v1195 = vsel %vm661, %v1191, %v1179
      %1196 = vst [vmem:[#allocation2] sm:$0xff] %v1192
      %1197 = vst [vmem:[#allocation2 + $0x20] sm:$0xff] %v1193
      %1198 = vst [vmem:[#allocation2 + $0x40] sm:$0xff] %v1194
      %1199 = vst [vmem:[#allocation2 + $0x60] sm:$0xff] %v1195
      %v1200 = vmul.f32 %v446, %v1116
      %v1201 = vmul.f32 %v450, %v1117
      %v1202 = vmul.f32 %v454, %v1118
      %v1203 = vmul.f32 %v458, %v1119
      %v1204 = vmul.f32 %v466, %v1116
      %v1205 = vmul.f32 %v470, %v1117
      %v1206 = vmul.f32 %v474, %v1118
      %v1207 = vmul.f32 %v478, %v1119
      %v1208 = vmul.f32 %v486, %v1116
      %v1209 = vmul.f32 %v490, %v1117
      %v1210 = vmul.f32 %v494, %v1118
      %v1211 = vmul.f32 %v498, %v1119
      %v1212 = vmul.f32 %v506, %v1116
      %v1213 = vmul.f32 %v510, %v1117
      %v1214 = vmul.f32 %v514, %v1118
      %v1215 = vmul.f32 %v518, %v1119
      %1220 = vrot.lane.b32.xlu0 %v1204, 32
      %v1221 = vpop.permute.xlu0 %1220
      %1222 = vrot.lane.b32.xlu0 %v1205, 32
      %v1223 = vpop.permute.xlu0 %1222
      %1224 = vrot.lane.b32.xlu0 %v1206, 32
      %v1225 = vpop.permute.xlu0 %1224
      %1226 = vrot.lane.b32.xlu0 %v1207, 32
      %v1227 = vpop.permute.xlu0 %1226
      %1236 = vrot.lane.b32.xlu0 %v1208, 64
      %v1237 = vpop.permute.xlu0 %1236
      %1238 = vrot.lane.b32.xlu0 %v1209, 64
      %v1239 = vpop.permute.xlu0 %1238
      %1240 = vrot.lane.b32.xlu0 %v1210, 64
      %v1241 = vpop.permute.xlu0 %1240
      %1242 = vrot.lane.b32.xlu0 %v1211, 64
      %v1243 = vpop.permute.xlu0 %1242
      %1252 = vrot.lane.b32.xlu0 %v1212, 96
      %v1253 = vpop.permute.xlu0 %1252
      %1254 = vrot.lane.b32.xlu0 %v1213, 96
      %v1255 = vpop.permute.xlu0 %1254
      %1256 = vrot.lane.b32.xlu0 %v1214, 96
      %v1257 = vpop.permute.xlu0 %1256
      %1258 = vrot.lane.b32.xlu0 %v1215, 96
      %v1259 = vpop.permute.xlu0 %1258
      %v1264 = vsel %vm641, %v1200, %v1221
      %v1265 = vsel %vm641, %v1201, %v1223
      %v1266 = vsel %vm641, %v1202, %v1225
      %v1267 = vsel %vm641, %v1203, %v1227
      %v1268 = vsel %vm651, %v1264, %v1237
      %v1269 = vsel %vm651, %v1265, %v1239
      %v1270 = vsel %vm651, %v1266, %v1241
      %v1271 = vsel %vm651, %v1267, %v1243
      %v1272 = vsel %vm661, %v1268, %v1253
      %v1273 = vsel %vm661, %v1269, %v1255
      %v1274 = vsel %vm661, %v1270, %v1257
      %v1275 = vsel %vm661, %v1271, %v1259
      %1276 = vst [vmem:[#allocation2 + $0x8] sm:$0xff] %v1272
      %1277 = vst [vmem:[#allocation2 + $0x28] sm:$0xff] %v1273
      %1278 = vst [vmem:[#allocation2 + $0x48] sm:$0xff] %v1274
      %1279 = vst [vmem:[#allocation2 + $0x68] sm:$0xff] %v1275
      %v1280 = vmul.f32 %v677, %v1116
      %v1281 = vmul.f32 %v681, %v1117
      %v1282 = vmul.f32 %v685, %v1118
      %v1283 = vmul.f32 %v689, %v1119
      %v1284 = vmul.f32 %v697, %v1116
      %v1285 = vmul.f32 %v701, %v1117
      %v1286 = vmul.f32 %v705, %v1118
      %v1287 = vmul.f32 %v709, %v1119
      %v1288 = vmul.f32 %v717, %v1116
      %v1289 = vmul.f32 %v721, %v1117
      %v1290 = vmul.f32 %v725, %v1118
      %v1291 = vmul.f32 %v729, %v1119
      %v1292 = vmul.f32 %v737, %v1116
      %v1293 = vmul.f32 %v741, %v1117
      %v1294 = vmul.f32 %v745, %v1118
      %v1295 = vmul.f32 %v749, %v1119
      %1300 = vrot.lane.b32.xlu0 %v1284, 32
      %v1301 = vpop.permute.xlu0 %1300
      %1302 = vrot.lane.b32.xlu0 %v1285, 32
      %v1303 = vpop.permute.xlu0 %1302
      %1304 = vrot.lane.b32.xlu0 %v1286, 32
      %v1305 = vpop.permute.xlu0 %1304
      %1306 = vrot.lane.b32.xlu0 %v1287, 32
      %v1307 = vpop.permute.xlu0 %1306
      %1316 = vrot.lane.b32.xlu0 %v1288, 64
      %v1317 = vpop.permute.xlu0 %1316
      %1318 = vrot.lane.b32.xlu0 %v1289, 64
      %v1319 = vpop.permute.xlu0 %1318
      %1320 = vrot.lane.b32.xlu0 %v1290, 64
      %v1321 = vpop.permute.xlu0 %1320
      %1322 = vrot.lane.b32.xlu0 %v1291, 64
      %v1323 = vpop.permute.xlu0 %1322
      %1332 = vrot.lane.b32.xlu0 %v1292, 96
      %v1333 = vpop.permute.xlu0 %1332
      %1334 = vrot.lane.b32.xlu0 %v1293, 96
      %v1335 = vpop.permute.xlu0 %1334
      %1336 = vrot.lane.b32.xlu0 %v1294, 96
      %v1337 = vpop.permute.xlu0 %1336
      %1338 = vrot.lane.b32.xlu0 %v1295, 96
      %v1339 = vpop.permute.xlu0 %1338
      %v1344 = vsel %vm641, %v1280, %v1301
      %v1345 = vsel %vm641, %v1281, %v1303
      %v1346 = vsel %vm641, %v1282, %v1305
      %v1347 = vsel %vm641, %v1283, %v1307
      %v1348 = vsel %vm651, %v1344, %v1317
      %v1349 = vsel %vm651, %v1345, %v1319
      %v1350 = vsel %vm651, %v1346, %v1321
      %v1351 = vsel %vm651, %v1347, %v1323
      %v1352 = vsel %vm661, %v1348, %v1333
      %v1353 = vsel %vm661, %v1349, %v1335
      %v1354 = vsel %vm661, %v1350, %v1337
      %v1355 = vsel %vm661, %v1351, %v1339
      %1356 = vst [vmem:[#allocation2 + $0x10] sm:$0xff] %v1352
      %1357 = vst [vmem:[#allocation2 + $0x30] sm:$0xff] %v1353
      %1358 = vst [vmem:[#allocation2 + $0x50] sm:$0xff] %v1354
      %1359 = vst [vmem:[#allocation2 + $0x70] sm:$0xff] %v1355
      %v1360 = vmul.f32 %v757, %v1116
      %v1361 = vmul.f32 %v761, %v1117
      %v1362 = vmul.f32 %v765, %v1118
      %v1363 = vmul.f32 %v769, %v1119
      %v1364 = vmul.f32 %v777, %v1116
      %v1365 = vmul.f32 %v781, %v1117
      %v1366 = vmul.f32 %v785, %v1118
      %v1367 = vmul.f32 %v789, %v1119
      %v1368 = vmul.f32 %v797, %v1116
      %v1369 = vmul.f32 %v801, %v1117
      %v1370 = vmul.f32 %v805, %v1118
      %v1371 = vmul.f32 %v809, %v1119
      %v1372 = vmul.f32 %v817, %v1116
      %v1373 = vmul.f32 %v821, %v1117
      %v1374 = vmul.f32 %v825, %v1118
      %v1375 = vmul.f32 %v829, %v1119
      %1380 = vrot.lane.b32.xlu0 %v1364, 32
      %v1381 = vpop.permute.xlu0 %1380
      %1382 = vrot.lane.b32.xlu0 %v1365, 32
      %v1383 = vpop.permute.xlu0 %1382
      %1384 = vrot.lane.b32.xlu0 %v1366, 32
      %v1385 = vpop.permute.xlu0 %1384
      %1386 = vrot.lane.b32.xlu0 %v1367, 32
      %v1387 = vpop.permute.xlu0 %1386
      %1396 = vrot.lane.b32.xlu0 %v1368, 64
      %v1397 = vpop.permute.xlu0 %1396
      %1398 = vrot.lane.b32.xlu0 %v1369, 64
      %v1399 = vpop.permute.xlu0 %1398
      %1400 = vrot.lane.b32.xlu0 %v1370, 64
      %v1401 = vpop.permute.xlu0 %1400
      %1402 = vrot.lane.b32.xlu0 %v1371, 64
      %v1403 = vpop.permute.xlu0 %1402
      %1412 = vrot.lane.b32.xlu0 %v1372, 96
      %v1413 = vpop.permute.xlu0 %1412
      %1414 = vrot.lane.b32.xlu0 %v1373, 96
      %v1415 = vpop.permute.xlu0 %1414
      %1416 = vrot.lane.b32.xlu0 %v1374, 96
      %v1417 = vpop.permute.xlu0 %1416
      %1418 = vrot.lane.b32.xlu0 %v1375, 96
      %v1419 = vpop.permute.xlu0 %1418
      %v1424 = vsel %vm641, %v1360, %v1381
      %v1425 = vsel %vm641, %v1361, %v1383
      %v1426 = vsel %vm641, %v1362, %v1385
      %v1427 = vsel %vm641, %v1363, %v1387
      %v1428 = vsel %vm651, %v1424, %v1397
      %v1429 = vsel %vm651, %v1425, %v1399
      %v1430 = vsel %vm651, %v1426, %v1401
      %v1431 = vsel %vm651, %v1427, %v1403
      %v1432 = vsel %vm661, %v1428, %v1413
      %v1433 = vsel %vm661, %v1429, %v1415
      %v1434 = vsel %vm661, %v1430, %v1417
      %v1435 = vsel %vm661, %v1431, %v1419
      %1436 = vst [vmem:[#allocation2 + $0x18] sm:$0xff] %v1432
      %1437 = vst [vmem:[#allocation2 + $0x38] sm:$0xff] %v1433
      %1438 = vst [vmem:[#allocation2 + $0x58] sm:$0xff] %v1434
      %1439 = vst [vmem:[#allocation2 + $0x78] sm:$0xff] %v1435
      %v1440 = vld [vmem:[#allocation2] sm:$0xff]
      %v1441 = vld [vmem:[#allocation2 + $0x8] sm:$0xff]
      %v1442 = vld [vmem:[#allocation2 + $0x10] sm:$0xff]
      %v1443 = vld [vmem:[#allocation2 + $0x18] sm:$0xff]
      %v1444 = vld [vmem:[#allocation2 + $0x20] sm:$0xff]
      %v1445 = vld [vmem:[#allocation2 + $0x28] sm:$0xff]
      %v1446 = vld [vmem:[#allocation2 + $0x30] sm:$0xff]
      %v1447 = vld [vmem:[#allocation2 + $0x38] sm:$0xff]
      %v1448 = vld [vmem:[#allocation2 + $0x40] sm:$0xff]
      %v1449 = vld [vmem:[#allocation2 + $0x48] sm:$0xff]
      %v1450 = vld [vmem:[#allocation2 + $0x50] sm:$0xff]
      %v1451 = vld [vmem:[#allocation2 + $0x58] sm:$0xff]
      %v1452 = vld [vmem:[#allocation2 + $0x60] sm:$0xff]
      %v1453 = vld [vmem:[#allocation2 + $0x68] sm:$0xff]
      %v1454 = vld [vmem:[#allocation2 + $0x70] sm:$0xff]
      %v1455 = vld [vmem:[#allocation2 + $0x78] sm:$0xff]
      %v1456 = vld [vmem:[%s3] sm:$0xff]
      %v1457 = vld [vmem:[%s3 + $0x8] sm:$0xff]
      %v1458 = vld [vmem:[%s3 + $0x10] sm:$0xff]
      %v1459 = vld [vmem:[%s3 + $0x18] sm:$0xff]
      %v1460 = vld [vmem:[%s3 + $0x20] sm:$0xff]
      %v1461 = vld [vmem:[%s3 + $0x28] sm:$0xff]
      %v1462 = vld [vmem:[%s3 + $0x30] sm:$0xff]
      %v1463 = vld [vmem:[%s3 + $0x38] sm:$0xff]
      %v1464 = vld [vmem:[%s3 + $0x40] sm:$0xff]
      %v1465 = vld [vmem:[%s3 + $0x48] sm:$0xff]
      %v1466 = vld [vmem:[%s3 + $0x50] sm:$0xff]
      %v1467 = vld [vmem:[%s3 + $0x58] sm:$0xff]
      %v1468 = vld [vmem:[%s3 + $0x60] sm:$0xff]
      %v1469 = vld [vmem:[%s3 + $0x68] sm:$0xff]
      %v1470 = vld [vmem:[%s3 + $0x70] sm:$0xff]
      %v1471 = vld [vmem:[%s3 + $0x78] sm:$0xff]
      %v1472 = vld [vmem:[%s3 + $0x80] sm:$0xff]
      %v1473 = vld [vmem:[%s3 + $0x88] sm:$0xff]
      %v1474 = vld [vmem:[%s3 + $0x90] sm:$0xff]
      %v1475 = vld [vmem:[%s3 + $0x98] sm:$0xff]
      %v1476 = vld [vmem:[%s3 + $0xa0] sm:$0xff]
      %v1477 = vld [vmem:[%s3 + $0xa8] sm:$0xff]
      %v1478 = vld [vmem:[%s3 + $0xb0] sm:$0xff]
      %v1479 = vld [vmem:[%s3 + $0xb8] sm:$0xff]
      %v1480 = vld [vmem:[%s3 + $0xc0] sm:$0xff]
      %v1481 = vld [vmem:[%s3 + $0xc8] sm:$0xff]
      %v1482 = vld [vmem:[%s3 + $0xd0] sm:$0xff]
      %v1483 = vld [vmem:[%s3 + $0xd8] sm:$0xff]
      %v1484 = vld [vmem:[%s3 + $0xe0] sm:$0xff]
      %v1485 = vld [vmem:[%s3 + $0xe8] sm:$0xff]
      %v1486 = vld [vmem:[%s3 + $0xf0] sm:$0xff]
      %v1487 = vld [vmem:[%s3 + $0xf8] sm:$0xff]
      %v1488 = vld [vmem:[%s3 + $0x100] sm:$0xff]
      %v1489 = vld [vmem:[%s3 + $0x108] sm:$0xff]
      %v1490 = vld [vmem:[%s3 + $0x110] sm:$0xff]
      %v1491 = vld [vmem:[%s3 + $0x118] sm:$0xff]
      %v1492 = vld [vmem:[%s3 + $0x120] sm:$0xff]
      %v1493 = vld [vmem:[%s3 + $0x128] sm:$0xff]
      %v1494 = vld [vmem:[%s3 + $0x130] sm:$0xff]
      %v1495 = vld [vmem:[%s3 + $0x138] sm:$0xff]
      %v1496 = vld [vmem:[%s3 + $0x140] sm:$0xff]
      %v1497 = vld [vmem:[%s3 + $0x148] sm:$0xff]
      %v1498 = vld [vmem:[%s3 + $0x150] sm:$0xff]
      %v1499 = vld [vmem:[%s3 + $0x158] sm:$0xff]
      %v1500 = vld [vmem:[%s3 + $0x160] sm:$0xff]
      %v1501 = vld [vmem:[%s3 + $0x168] sm:$0xff]
      %v1502 = vld [vmem:[%s3 + $0x170] sm:$0xff]
      %v1503 = vld [vmem:[%s3 + $0x178] sm:$0xff]
      %v1504 = vld [vmem:[%s3 + $0x180] sm:$0xff]
      %v1505 = vld [vmem:[%s3 + $0x188] sm:$0xff]
      %v1506 = vld [vmem:[%s3 + $0x190] sm:$0xff]
      %v1507 = vld [vmem:[%s3 + $0x198] sm:$0xff]
      %v1508 = vld [vmem:[%s3 + $0x1a0] sm:$0xff]
      %v1509 = vld [vmem:[%s3 + $0x1a8] sm:$0xff]
      %v1510 = vld [vmem:[%s3 + $0x1b0] sm:$0xff]
      %v1511 = vld [vmem:[%s3 + $0x1b8] sm:$0xff]
      %v1512 = vld [vmem:[%s3 + $0x1c0] sm:$0xff]
      %v1513 = vld [vmem:[%s3 + $0x1c8] sm:$0xff]
      %v1514 = vld [vmem:[%s3 + $0x1d0] sm:$0xff]
      %v1515 = vld [vmem:[%s3 + $0x1d8] sm:$0xff]
      %v1516 = vld [vmem:[%s3 + $0x1e0] sm:$0xff]
      %v1517 = vld [vmem:[%s3 + $0x1e8] sm:$0xff]
      %v1518 = vld [vmem:[%s3 + $0x1f0] sm:$0xff]
      %v1519 = vld [vmem:[%s3 + $0x1f8] sm:$0xff]
      %1520 = vmatprep.subr.mxu0 0.0
      %1521 = vmatpush1.msra.mxu0 %v1471
      %1522 = vmatprep.subr.mxu0 0.0
      %1523 = vmatpush1.msra.mxu0 %v1470
      %1524 = vmatprep.subr.mxu0 0.0
      %1525 = vmatpush1.msra.mxu0 %v1469
      %1526 = vmatprep.subr.mxu0 0.0
      %1527 = vmatpush1.msra.mxu0 %v1468
      %1528 = vmatprep.subr.mxu0 0.0
      %1529 = vmatpush1.msra.mxu0 %v1467
      %1530 = vmatprep.subr.mxu0 0.0
      %1531 = vmatpush1.msra.mxu0 %v1466
      %1532 = vmatprep.subr.mxu0 0.0
      %1533 = vmatpush1.msra.mxu0 %v1465
      %1534 = vmatprep.subr.mxu0 0.0
      %1535 = vmatpush1.msra.mxu0 %v1464
      %1536 = vmatprep.subr.mxu0 0.0
      %1537 = vmatpush1.msra.mxu0 %v1463
      %1538 = vmatprep.subr.mxu0 0.0
      %1539 = vmatpush1.msra.mxu0 %v1462
      %1540 = vmatprep.subr.mxu0 0.0
      %1541 = vmatpush1.msra.mxu0 %v1461
      %1542 = vmatprep.subr.mxu0 0.0
      %1543 = vmatpush1.msra.mxu0 %v1460
      %1544 = vmatprep.subr.mxu0 0.0
      %1545 = vmatpush1.msra.mxu0 %v1459
      %1546 = vmatprep.subr.mxu0 0.0
      %1547 = vmatpush1.msra.mxu0 %v1458
      %1548 = vmatprep.subr.mxu0 0.0
      %1549 = vmatpush1.msra.mxu0 %v1457
      %1550 = vmatprep.subr.mxu0 0.0
      %1551 = vmatpush1.msra.mxu0 %v1456
      %1552 = vmatprep.subr.mxu0 0.0
      %1553 = vmatpush2.msra.mxu0 %v1487
      %1554 = vmatprep.subr.mxu0 0.0
      %1555 = vmatpush2.msra.mxu0 %v1486
      %1556 = vmatprep.subr.mxu0 0.0
      %1557 = vmatpush2.msra.mxu0 %v1485
      %1558 = vmatprep.subr.mxu0 0.0
      %1559 = vmatpush2.msra.mxu0 %v1484
      %1560 = vmatprep.subr.mxu0 0.0
      %1561 = vmatpush2.msra.mxu0 %v1483
      %1562 = vmatprep.subr.mxu0 0.0
      %1563 = vmatpush2.msra.mxu0 %v1482
      %1564 = vmatprep.subr.mxu0 0.0
      %1565 = vmatpush2.msra.mxu0 %v1481
      %1566 = vmatprep.subr.mxu0 0.0
      %1567 = vmatpush2.msra.mxu0 %v1480
      %1568 = vmatprep.subr.mxu0 0.0
      %1569 = vmatpush2.msra.mxu0 %v1479
      %1570 = vmatprep.subr.mxu0 0.0
      %1571 = vmatpush2.msra.mxu0 %v1478
      %1572 = vmatprep.subr.mxu0 0.0
      %1573 = vmatpush2.msra.mxu0 %v1477
      %1574 = vmatprep.subr.mxu0 0.0
      %1575 = vmatpush2.msra.mxu0 %v1476
      %1576 = vmatprep.subr.mxu0 0.0
      %1577 = vmatpush2.msra.mxu0 %v1475
      %1578 = vmatprep.subr.mxu0 0.0
      %1579 = vmatpush2.msra.mxu0 %v1474
      %1580 = vmatprep.subr.mxu0 0.0
      %1581 = vmatpush2.msra.mxu0 %v1473
      %1582 = vmatprep.subr.mxu0 0.0
      %1583 = vmatpush2.msra.mxu0 %v1472
      %1584 = vmatprep.mubr.f32.mxu0 %v1441
      %1585 = vmatmul.mubr.f32.gmra.mxu0 %v1440
      %v1586 = vpop.f32.mrf.mxu0
      %v1587 = vadd.f32 %v351, %v1586
      %v1588 = vpop.f32.mrf.mxu0
      %1589 = vmatprep.mubr.f32.mxu0 %v1445
      %1590 = vmatmul.mubr.f32.gmra.mxu0 %v1444
      %v1591 = vpop.f32.mrf.mxu0
      %v1592 = vadd.f32 %v351, %v1591
      %v1593 = vpop.f32.mrf.mxu0
      %1594 = vmatprep.mubr.f32.mxu0 %v1449
      %1595 = vmatmul.mubr.f32.gmra.mxu0 %v1448
      %v1596 = vpop.f32.mrf.mxu0
      %v1597 = vadd.f32 %v351, %v1596
      %v1598 = vpop.f32.mrf.mxu0
      %1599 = vmatprep.mubr.f32.mxu0 %v1453
      %1600 = vmatmul.mubr.f32.gmra.mxu0 %v1452
      %v1601 = vpop.f32.mrf.mxu0
      %v1602 = vadd.f32 %v351, %v1601
      %v1603 = vpop.f32.mrf.mxu0
      %1604 = vdwg.mxu0
      %1605 = vmatprep.subr.mxu0 0.0
      %1606 = vmatpush1.msra.mxu0 %v1503
      %1607 = vmatprep.subr.mxu0 0.0
      %1608 = vmatpush1.msra.mxu0 %v1502
      %1609 = vmatprep.subr.mxu0 0.0
      %1610 = vmatpush1.msra.mxu0 %v1501
      %1611 = vmatprep.subr.mxu0 0.0
      %1612 = vmatpush1.msra.mxu0 %v1500
      %1613 = vmatprep.subr.mxu0 0.0
      %1614 = vmatpush1.msra.mxu0 %v1499
      %1615 = vmatprep.subr.mxu0 0.0
      %1616 = vmatpush1.msra.mxu0 %v1498
      %1617 = vmatprep.subr.mxu0 0.0
      %1618 = vmatpush1.msra.mxu0 %v1497
      %1619 = vmatprep.subr.mxu0 0.0
      %1620 = vmatpush1.msra.mxu0 %v1496
      %1621 = vmatprep.subr.mxu0 0.0
      %1622 = vmatpush1.msra.mxu0 %v1495
      %1623 = vmatprep.subr.mxu0 0.0
      %1624 = vmatpush1.msra.mxu0 %v1494
      %1625 = vmatprep.subr.mxu0 0.0
      %1626 = vmatpush1.msra.mxu0 %v1493
      %1627 = vmatprep.subr.mxu0 0.0
      %1628 = vmatpush1.msra.mxu0 %v1492
      %1629 = vmatprep.subr.mxu0 0.0
      %1630 = vmatpush1.msra.mxu0 %v1491
      %1631 = vmatprep.subr.mxu0 0.0
      %1632 = vmatpush1.msra.mxu0 %v1490
      %1633 = vmatprep.subr.mxu0 0.0
      %1634 = vmatpush1.msra.mxu0 %v1489
      %1635 = vmatprep.subr.mxu0 0.0
      %1636 = vmatpush1.msra.mxu0 %v1488
      %1637 = vmatprep.subr.mxu0 0.0
      %1638 = vmatpush2.msra.mxu0 %v1519
      %1639 = vmatprep.subr.mxu0 0.0
      %1640 = vmatpush2.msra.mxu0 %v1518
      %1641 = vmatprep.subr.mxu0 0.0
      %1642 = vmatpush2.msra.mxu0 %v1517
      %1643 = vmatprep.subr.mxu0 0.0
      %1644 = vmatpush2.msra.mxu0 %v1516
      %1645 = vmatprep.subr.mxu0 0.0
      %1646 = vmatpush2.msra.mxu0 %v1515
      %1647 = vmatprep.subr.mxu0 0.0
      %1648 = vmatpush2.msra.mxu0 %v1514
      %1649 = vmatprep.subr.mxu0 0.0
      %1650 = vmatpush2.msra.mxu0 %v1513
      %1651 = vmatprep.subr.mxu0 0.0
      %1652 = vmatpush2.msra.mxu0 %v1512
      %1653 = vmatprep.subr.mxu0 0.0
      %1654 = vmatpush2.msra.mxu0 %v1511
      %1655 = vmatprep.subr.mxu0 0.0
      %1656 = vmatpush2.msra.mxu0 %v1510
      %1657 = vmatprep.subr.mxu0 0.0
      %1658 = vmatpush2.msra.mxu0 %v1509
      %1659 = vmatprep.subr.mxu0 0.0
      %1660 = vmatpush2.msra.mxu0 %v1508
      %1661 = vmatprep.subr.mxu0 0.0
      %1662 = vmatpush2.msra.mxu0 %v1507
      %1663 = vmatprep.subr.mxu0 0.0
      %1664 = vmatpush2.msra.mxu0 %v1506
      %1665 = vmatprep.subr.mxu0 0.0
      %1666 = vmatpush2.msra.mxu0 %v1505
      %1667 = vmatprep.subr.mxu0 0.0
      %1668 = vmatpush2.msra.mxu0 %v1504
      %1669 = vmatprep.mubr.f32.mxu0 %v1443
      %1670 = vmatmul.mubr.f32.gmra.mxu0 %v1442
      %v1671 = vpop.f32.mrf.mxu0
      %v1672 = vadd.f32 %v1587, %v1671
      %v1673 = vpop.f32.mrf.mxu0
      %1674 = vmatprep.mubr.f32.mxu0 %v1447
      %1675 = vmatmul.mubr.f32.gmra.mxu0 %v1446
      %v1676 = vpop.f32.mrf.mxu0
      %v1677 = vadd.f32 %v1592, %v1676
      %v1678 = vpop.f32.mrf.mxu0
      %1679 = vmatprep.mubr.f32.mxu0 %v1451
      %1680 = vmatmul.mubr.f32.gmra.mxu0 %v1450
      %v1681 = vpop.f32.mrf.mxu0
      %v1682 = vadd.f32 %v1597, %v1681
      %v1683 = vpop.f32.mrf.mxu0
      %1684 = vmatprep.mubr.f32.mxu0 %v1455
      %1685 = vmatmul.mubr.f32.gmra.mxu0 %v1454
      %v1686 = vpop.f32.mrf.mxu0
      %v1687 = vadd.f32 %v1602, %v1686
      %v1688 = vpop.f32.mrf.mxu0
      %1689 = vdwg.mxu0
      %v1690 = vmul.f32 %v1672, 0.5
      %v1691 = vmul.f32 %v1677, 0.5
      %v1692 = vmul.f32 %v1682, 0.5
      %v1693 = vmul.f32 %v1687, 0.5
      %v1694 = vtanh.pop %v1690
      %v1695 = vtanh.pop %v1691
      %v1696 = vtanh.pop %v1692
      %v1697 = vtanh.pop %v1693
      %v1698 = vmul.f32 %v1694, 0.5
      %v1699 = vmul.f32 %v1695, 0.5
      %v1700 = vmul.f32 %v1696, 0.5
      %v1701 = vmul.f32 %v1697, 0.5
      %v1702 = vadd.f32 %v1698, 0.5
      %v1703 = vadd.f32 %v1699, 0.5
      %v1704 = vadd.f32 %v1700, 0.5
      %v1705 = vadd.f32 %v1701, 0.5
      %1707 = vset.pattern.permute.xlu0 0
      %1708 = vperm.xlu0 %1707, %v1702
      %v1709 = vpop.permute.xlu0 %1708
      %1712 = vset.pattern.permute.xlu0 0
      %1713 = vperm.xlu0 %1712, %v1703
      %v1714 = vpop.permute.xlu0 %1713
      %1717 = vset.pattern.permute.xlu0 0
      %1718 = vperm.xlu0 %1717, %v1704
      %v1719 = vpop.permute.xlu0 %1718
      %1722 = vset.pattern.permute.xlu0 0
      %1723 = vperm.xlu0 %1722, %v1705
      %v1724 = vpop.permute.xlu0 %1723
      %v1726 = vmul.f32 %v1709, %v1116
      %v1727 = vmul.f32 %v1714, %v1117
      %v1728 = vmul.f32 %v1719, %v1118
      %v1729 = vmul.f32 %v1724, %v1119
      %1730 = vset.pattern.permute.xlu0 1
      %1731 = vperm.xlu0 %1730, %v1702
      %v1732 = vpop.permute.xlu0 %1731
      %1734 = vset.pattern.permute.xlu0 1
      %1735 = vperm.xlu0 %1734, %v1703
      %v1736 = vpop.permute.xlu0 %1735
      %1738 = vset.pattern.permute.xlu0 1
      %1739 = vperm.xlu0 %1738, %v1704
      %v1740 = vpop.permute.xlu0 %1739
      %1742 = vset.pattern.permute.xlu0 1
      %1743 = vperm.xlu0 %1742, %v1705
      %v1744 = vpop.permute.xlu0 %1743
      %v1746 = vmul.f32 %v1732, %v1116
      %v1747 = vmul.f32 %v1736, %v1117
      %v1748 = vmul.f32 %v1740, %v1118
      %v1749 = vmul.f32 %v1744, %v1119
      %1750 = vset.pattern.permute.xlu0 2
      %1751 = vperm.xlu0 %1750, %v1702
      %v1752 = vpop.permute.xlu0 %1751
      %1754 = vset.pattern.permute.xlu0 2
      %1755 = vperm.xlu0 %1754, %v1703
      %v1756 = vpop.permute.xlu0 %1755
      %1758 = vset.pattern.permute.xlu0 2
      %1759 = vperm.xlu0 %1758, %v1704
      %v1760 = vpop.permute.xlu0 %1759
      %1762 = vset.pattern.permute.xlu0 2
      %1763 = vperm.xlu0 %1762, %v1705
      %v1764 = vpop.permute.xlu0 %1763
      %v1766 = vmul.f32 %v1752, %v1116
      %v1767 = vmul.f32 %v1756, %v1117
      %v1768 = vmul.f32 %v1760, %v1118
      %v1769 = vmul.f32 %v1764, %v1119
      %1770 = vset.pattern.permute.xlu0 3
      %1771 = vperm.xlu0 %1770, %v1702
      %v1772 = vpop.permute.xlu0 %1771
      %1774 = vset.pattern.permute.xlu0 3
      %1775 = vperm.xlu0 %1774, %v1703
      %v1776 = vpop.permute.xlu0 %1775
      %1778 = vset.pattern.permute.xlu0 3
      %1779 = vperm.xlu0 %1778, %v1704
      %v1780 = vpop.permute.xlu0 %1779
      %1782 = vset.pattern.permute.xlu0 3
      %1783 = vperm.xlu0 %1782, %v1705
      %v1784 = vpop.permute.xlu0 %1783
      %v1786 = vmul.f32 %v1772, %v1116
      %v1787 = vmul.f32 %v1776, %v1117
      %v1788 = vmul.f32 %v1780, %v1118
      %v1789 = vmul.f32 %v1784, %v1119
      %1794 = vrot.lane.b32.xlu0 %v1746, 32
      %v1795 = vpop.permute.xlu0 %1794
      %1796 = vrot.lane.b32.xlu0 %v1747, 32
      %v1797 = vpop.permute.xlu0 %1796
      %1798 = vrot.lane.b32.xlu0 %v1748, 32
      %v1799 = vpop.permute.xlu0 %1798
      %1800 = vrot.lane.b32.xlu0 %v1749, 32
      %v1801 = vpop.permute.xlu0 %1800
      %1810 = vrot.lane.b32.xlu0 %v1766, 64
      %v1811 = vpop.permute.xlu0 %1810
      %1812 = vrot.lane.b32.xlu0 %v1767, 64
      %v1813 = vpop.permute.xlu0 %1812
      %1814 = vrot.lane.b32.xlu0 %v1768, 64
      %v1815 = vpop.permute.xlu0 %1814
      %1816 = vrot.lane.b32.xlu0 %v1769, 64
      %v1817 = vpop.permute.xlu0 %1816
      %1826 = vrot.lane.b32.xlu0 %v1786, 96
      %v1827 = vpop.permute.xlu0 %1826
      %1828 = vrot.lane.b32.xlu0 %v1787, 96
      %v1829 = vpop.permute.xlu0 %1828
      %1830 = vrot.lane.b32.xlu0 %v1788, 96
      %v1831 = vpop.permute.xlu0 %1830
      %1832 = vrot.lane.b32.xlu0 %v1789, 96
      %v1833 = vpop.permute.xlu0 %1832
      %v1838 = vsel %vm641, %v1726, %v1795
      %v1839 = vsel %vm641, %v1727, %v1797
      %v1840 = vsel %vm641, %v1728, %v1799
      %v1841 = vsel %vm641, %v1729, %v1801
      %v1842 = vsel %vm651, %v1838, %v1811
      %v1843 = vsel %vm651, %v1839, %v1813
      %v1844 = vsel %vm651, %v1840, %v1815
      %v1845 = vsel %vm651, %v1841, %v1817
      %v1846 = vsel %vm661, %v1842, %v1827
      %v1847 = vsel %vm661, %v1843, %v1829
      %v1848 = vsel %vm661, %v1844, %v1831
      %v1849 = vsel %vm661, %v1845, %v1833
      %1850 = vst [vmem:[#allocation2] sm:$0xff] %v1846
      %1851 = vst [vmem:[#allocation2 + $0x20] sm:$0xff] %v1847
      %1852 = vst [vmem:[#allocation2 + $0x40] sm:$0xff] %v1848
      %1853 = vst [vmem:[#allocation2 + $0x60] sm:$0xff] %v1849
      %1854 = vset.pattern.permute.xlu0 4
      %1855 = vperm.xlu0 %1854, %v1702
      %v1856 = vpop.permute.xlu0 %1855
      %1858 = vset.pattern.permute.xlu0 4
      %1859 = vperm.xlu0 %1858, %v1703
      %v1860 = vpop.permute.xlu0 %1859
      %1862 = vset.pattern.permute.xlu0 4
      %1863 = vperm.xlu0 %1862, %v1704
      %v1864 = vpop.permute.xlu0 %1863
      %1866 = vset.pattern.permute.xlu0 4
      %1867 = vperm.xlu0 %1866, %v1705
      %v1868 = vpop.permute.xlu0 %1867
      %v1870 = vmul.f32 %v1856, %v1116
      %v1871 = vmul.f32 %v1860, %v1117
      %v1872 = vmul.f32 %v1864, %v1118
      %v1873 = vmul.f32 %v1868, %v1119
      %1874 = vset.pattern.permute.xlu0 5
      %1875 = vperm.xlu0 %1874, %v1702
      %v1876 = vpop.permute.xlu0 %1875
      %1878 = vset.pattern.permute.xlu0 5
      %1879 = vperm.xlu0 %1878, %v1703
      %v1880 = vpop.permute.xlu0 %1879
      %1882 = vset.pattern.permute.xlu0 5
      %1883 = vperm.xlu0 %1882, %v1704
      %v1884 = vpop.permute.xlu0 %1883
      %1886 = vset.pattern.permute.xlu0 5
      %1887 = vperm.xlu0 %1886, %v1705
      %v1888 = vpop.permute.xlu0 %1887
      %v1890 = vmul.f32 %v1876, %v1116
      %v1891 = vmul.f32 %v1880, %v1117
      %v1892 = vmul.f32 %v1884, %v1118
      %v1893 = vmul.f32 %v1888, %v1119
      %1894 = vset.pattern.permute.xlu0 6
      %1895 = vperm.xlu0 %1894, %v1702
      %v1896 = vpop.permute.xlu0 %1895
      %1898 = vset.pattern.permute.xlu0 6
      %1899 = vperm.xlu0 %1898, %v1703
      %v1900 = vpop.permute.xlu0 %1899
      %1902 = vset.pattern.permute.xlu0 6
      %1903 = vperm.xlu0 %1902, %v1704
      %v1904 = vpop.permute.xlu0 %1903
      %1906 = vset.pattern.permute.xlu0 6
      %1907 = vperm.xlu0 %1906, %v1705
      %v1908 = vpop.permute.xlu0 %1907
      %v1910 = vmul.f32 %v1896, %v1116
      %v1911 = vmul.f32 %v1900, %v1117
      %v1912 = vmul.f32 %v1904, %v1118
      %v1913 = vmul.f32 %v1908, %v1119
      %1914 = vset.pattern.permute.xlu0 7
      %1915 = vperm.xlu0 %1914, %v1702
      %v1916 = vpop.permute.xlu0 %1915
      %1918 = vset.pattern.permute.xlu0 7
      %1919 = vperm.xlu0 %1918, %v1703
      %v1920 = vpop.permute.xlu0 %1919
      %1922 = vset.pattern.permute.xlu0 7
      %1923 = vperm.xlu0 %1922, %v1704
      %v1924 = vpop.permute.xlu0 %1923
      %1926 = vset.pattern.permute.xlu0 7
      %1927 = vperm.xlu0 %1926, %v1705
      %v1928 = vpop.permute.xlu0 %1927
      %v1930 = vmul.f32 %v1916, %v1116
      %v1931 = vmul.f32 %v1920, %v1117
      %v1932 = vmul.f32 %v1924, %v1118
      %v1933 = vmul.f32 %v1928, %v1119
      %1938 = vrot.lane.b32.xlu0 %v1890, 32
      %v1939 = vpop.permute.xlu0 %1938
      %1940 = vrot.lane.b32.xlu0 %v1891, 32
      %v1941 = vpop.permute.xlu0 %1940
      %1942 = vrot.lane.b32.xlu0 %v1892, 32
      %v1943 = vpop.permute.xlu0 %1942
      %1944 = vrot.lane.b32.xlu0 %v1893, 32
      %v1945 = vpop.permute.xlu0 %1944
      %1954 = vrot.lane.b32.xlu0 %v1910, 64
      %v1955 = vpop.permute.xlu0 %1954
      %1956 = vrot.lane.b32.xlu0 %v1911, 64
      %v1957 = vpop.permute.xlu0 %1956
      %1958 = vrot.lane.b32.xlu0 %v1912, 64
      %v1959 = vpop.permute.xlu0 %1958
      %1960 = vrot.lane.b32.xlu0 %v1913, 64
      %v1961 = vpop.permute.xlu0 %1960
      %1970 = vrot.lane.b32.xlu0 %v1930, 96
      %v1971 = vpop.permute.xlu0 %1970
      %1972 = vrot.lane.b32.xlu0 %v1931, 96
      %v1973 = vpop.permute.xlu0 %1972
      %1974 = vrot.lane.b32.xlu0 %v1932, 96
      %v1975 = vpop.permute.xlu0 %1974
      %1976 = vrot.lane.b32.xlu0 %v1933, 96
      %v1977 = vpop.permute.xlu0 %1976
      %v1982 = vsel %vm641, %v1870, %v1939
      %v1983 = vsel %vm641, %v1871, %v1941
      %v1984 = vsel %vm641, %v1872, %v1943
      %v1985 = vsel %vm641, %v1873, %v1945
      %v1986 = vsel %vm651, %v1982, %v1955
      %v1987 = vsel %vm651, %v1983, %v1957
      %v1988 = vsel %vm651, %v1984, %v1959
      %v1989 = vsel %vm651, %v1985, %v1961
      %v1990 = vsel %vm661, %v1986, %v1971
      %v1991 = vsel %vm661, %v1987, %v1973
      %v1992 = vsel %vm661, %v1988, %v1975
      %v1993 = vsel %vm661, %v1989, %v1977
      %1994 = vst [vmem:[#allocation2 + $0x8] sm:$0xff] %v1990
      %1995 = vst [vmem:[#allocation2 + $0x28] sm:$0xff] %v1991
      %1996 = vst [vmem:[#allocation2 + $0x48] sm:$0xff] %v1992
      %1997 = vst [vmem:[#allocation2 + $0x68] sm:$0xff] %v1993
      %1998 = vset.pattern.permute.xlu0 8
      %1999 = vperm.xlu0 %1998, %v1702
      %v2000 = vpop.permute.xlu0 %1999
      %2002 = vset.pattern.permute.xlu0 8
      %2003 = vperm.xlu0 %2002, %v1703
      %v2004 = vpop.permute.xlu0 %2003
      %2006 = vset.pattern.permute.xlu0 8
      %2007 = vperm.xlu0 %2006, %v1704
      %v2008 = vpop.permute.xlu0 %2007
      %2010 = vset.pattern.permute.xlu0 8
      %2011 = vperm.xlu0 %2010, %v1705
      %v2012 = vpop.permute.xlu0 %2011
      %v2014 = vmul.f32 %v2000, %v1116
      %v2015 = vmul.f32 %v2004, %v1117
      %v2016 = vmul.f32 %v2008, %v1118
      %v2017 = vmul.f32 %v2012, %v1119
      %2018 = vset.pattern.permute.xlu0 9
      %2019 = vperm.xlu0 %2018, %v1702
      %v2020 = vpop.permute.xlu0 %2019
      %2022 = vset.pattern.permute.xlu0 9
      %2023 = vperm.xlu0 %2022, %v1703
      %v2024 = vpop.permute.xlu0 %2023
      %2026 = vset.pattern.permute.xlu0 9
      %2027 = vperm.xlu0 %2026, %v1704
      %v2028 = vpop.permute.xlu0 %2027
      %2030 = vset.pattern.permute.xlu0 9
      %2031 = vperm.xlu0 %2030, %v1705
      %v2032 = vpop.permute.xlu0 %2031
      %v2034 = vmul.f32 %v2020, %v1116
      %v2035 = vmul.f32 %v2024, %v1117
      %v2036 = vmul.f32 %v2028, %v1118
      %v2037 = vmul.f32 %v2032, %v1119
      %2038 = vset.pattern.permute.xlu0 10
      %2039 = vperm.xlu0 %2038, %v1702
      %v2040 = vpop.permute.xlu0 %2039
      %2042 = vset.pattern.permute.xlu0 10
      %2043 = vperm.xlu0 %2042, %v1703
      %v2044 = vpop.permute.xlu0 %2043
      %2046 = vset.pattern.permute.xlu0 10
      %2047 = vperm.xlu0 %2046, %v1704
      %v2048 = vpop.permute.xlu0 %2047
      %2050 = vset.pattern.permute.xlu0 10
      %2051 = vperm.xlu0 %2050, %v1705
      %v2052 = vpop.permute.xlu0 %2051
      %v2054 = vmul.f32 %v2040, %v1116
      %v2055 = vmul.f32 %v2044, %v1117
      %v2056 = vmul.f32 %v2048, %v1118
      %v2057 = vmul.f32 %v2052, %v1119
      %2058 = vset.pattern.permute.xlu0 11
      %2059 = vperm.xlu0 %2058, %v1702
      %v2060 = vpop.permute.xlu0 %2059
      %2062 = vset.pattern.permute.xlu0 11
      %2063 = vperm.xlu0 %2062, %v1703
      %v2064 = vpop.permute.xlu0 %2063
      %2066 = vset.pattern.permute.xlu0 11
      %2067 = vperm.xlu0 %2066, %v1704
      %v2068 = vpop.permute.xlu0 %2067
      %2070 = vset.pattern.permute.xlu0 11
      %2071 = vperm.xlu0 %2070, %v1705
      %v2072 = vpop.permute.xlu0 %2071
      %v2074 = vmul.f32 %v2060, %v1116
      %v2075 = vmul.f32 %v2064, %v1117
      %v2076 = vmul.f32 %v2068, %v1118
      %v2077 = vmul.f32 %v2072, %v1119
      %2082 = vrot.lane.b32.xlu0 %v2034, 32
      %v2083 = vpop.permute.xlu0 %2082
      %2084 = vrot.lane.b32.xlu0 %v2035, 32
      %v2085 = vpop.permute.xlu0 %2084
      %2086 = vrot.lane.b32.xlu0 %v2036, 32
      %v2087 = vpop.permute.xlu0 %2086
      %2088 = vrot.lane.b32.xlu0 %v2037, 32
      %v2089 = vpop.permute.xlu0 %2088
      %2098 = vrot.lane.b32.xlu0 %v2054, 64
      %v2099 = vpop.permute.xlu0 %2098
      %2100 = vrot.lane.b32.xlu0 %v2055, 64
      %v2101 = vpop.permute.xlu0 %2100
      %2102 = vrot.lane.b32.xlu0 %v2056, 64
      %v2103 = vpop.permute.xlu0 %2102
      %2104 = vrot.lane.b32.xlu0 %v2057, 64
      %v2105 = vpop.permute.xlu0 %2104
      %2114 = vrot.lane.b32.xlu0 %v2074, 96
      %v2115 = vpop.permute.xlu0 %2114
      %2116 = vrot.lane.b32.xlu0 %v2075, 96
      %v2117 = vpop.permute.xlu0 %2116
      %2118 = vrot.lane.b32.xlu0 %v2076, 96
      %v2119 = vpop.permute.xlu0 %2118
      %2120 = vrot.lane.b32.xlu0 %v2077, 96
      %v2121 = vpop.permute.xlu0 %2120
      %v2126 = vsel %vm641, %v2014, %v2083
      %v2127 = vsel %vm641, %v2015, %v2085
      %v2128 = vsel %vm641, %v2016, %v2087
      %v2129 = vsel %vm641, %v2017, %v2089
      %v2130 = vsel %vm651, %v2126, %v2099
      %v2131 = vsel %vm651, %v2127, %v2101
      %v2132 = vsel %vm651, %v2128, %v2103
      %v2133 = vsel %vm651, %v2129, %v2105
      %v2134 = vsel %vm661, %v2130, %v2115
      %v2135 = vsel %vm661, %v2131, %v2117
      %v2136 = vsel %vm661, %v2132, %v2119
      %v2137 = vsel %vm661, %v2133, %v2121
      %2138 = vst [vmem:[#allocation2 + $0x10] sm:$0xff] %v2134
      %2139 = vst [vmem:[#allocation2 + $0x30] sm:$0xff] %v2135
      %2140 = vst [vmem:[#allocation2 + $0x50] sm:$0xff] %v2136
      %2141 = vst [vmem:[#allocation2 + $0x70] sm:$0xff] %v2137
      %2142 = vset.pattern.permute.xlu0 12
      %2143 = vperm.xlu0 %2142, %v1702
      %v2144 = vpop.permute.xlu0 %2143
      %2146 = vset.pattern.permute.xlu0 12
      %2147 = vperm.xlu0 %2146, %v1703
      %v2148 = vpop.permute.xlu0 %2147
      %2150 = vset.pattern.permute.xlu0 12
      %2151 = vperm.xlu0 %2150, %v1704
      %v2152 = vpop.permute.xlu0 %2151
      %2154 = vset.pattern.permute.xlu0 12
      %2155 = vperm.xlu0 %2154, %v1705
      %v2156 = vpop.permute.xlu0 %2155
      %v2158 = vmul.f32 %v2144, %v1116
      %v2159 = vmul.f32 %v2148, %v1117
      %v2160 = vmul.f32 %v2152, %v1118
      %v2161 = vmul.f32 %v2156, %v1119
      %2162 = vset.pattern.permute.xlu0 13
      %2163 = vperm.xlu0 %2162, %v1702
      %v2164 = vpop.permute.xlu0 %2163
      %2166 = vset.pattern.permute.xlu0 13
      %2167 = vperm.xlu0 %2166, %v1703
      %v2168 = vpop.permute.xlu0 %2167
      %2170 = vset.pattern.permute.xlu0 13
      %2171 = vperm.xlu0 %2170, %v1704
      %v2172 = vpop.permute.xlu0 %2171
      %2174 = vset.pattern.permute.xlu0 13
      %2175 = vperm.xlu0 %2174, %v1705
      %v2176 = vpop.permute.xlu0 %2175
      %v2178 = vmul.f32 %v2164, %v1116
      %v2179 = vmul.f32 %v2168, %v1117
      %v2180 = vmul.f32 %v2172, %v1118
      %v2181 = vmul.f32 %v2176, %v1119
      %2182 = vset.pattern.permute.xlu0 14
      %2183 = vperm.xlu0 %2182, %v1702
      %v2184 = vpop.permute.xlu0 %2183
      %2186 = vset.pattern.permute.xlu0 14
      %2187 = vperm.xlu0 %2186, %v1703
      %v2188 = vpop.permute.xlu0 %2187
      %2190 = vset.pattern.permute.xlu0 14
      %2191 = vperm.xlu0 %2190, %v1704
      %v2192 = vpop.permute.xlu0 %2191
      %2194 = vset.pattern.permute.xlu0 14
      %2195 = vperm.xlu0 %2194, %v1705
      %v2196 = vpop.permute.xlu0 %2195
      %v2198 = vmul.f32 %v2184, %v1116
      %v2199 = vmul.f32 %v2188, %v1117
      %v2200 = vmul.f32 %v2192, %v1118
      %v2201 = vmul.f32 %v2196, %v1119
      %2202 = vset.pattern.permute.xlu0 15
      %2203 = vperm.xlu0 %2202, %v1702
      %v2204 = vpop.permute.xlu0 %2203
      %2206 = vset.pattern.permute.xlu0 15
      %2207 = vperm.xlu0 %2206, %v1703
      %v2208 = vpop.permute.xlu0 %2207
      %2210 = vset.pattern.permute.xlu0 15
      %2211 = vperm.xlu0 %2210, %v1704
      %v2212 = vpop.permute.xlu0 %2211
      %2214 = vset.pattern.permute.xlu0 15
      %2215 = vperm.xlu0 %2214, %v1705
      %v2216 = vpop.permute.xlu0 %2215
      %v2218 = vmul.f32 %v2204, %v1116
      %v2219 = vmul.f32 %v2208, %v1117
      %v2220 = vmul.f32 %v2212, %v1118
      %v2221 = vmul.f32 %v2216, %v1119
      %2226 = vrot.lane.b32.xlu0 %v2178, 32
      %v2227 = vpop.permute.xlu0 %2226
      %2228 = vrot.lane.b32.xlu0 %v2179, 32
      %v2229 = vpop.permute.xlu0 %2228
      %2230 = vrot.lane.b32.xlu0 %v2180, 32
      %v2231 = vpop.permute.xlu0 %2230
      %2232 = vrot.lane.b32.xlu0 %v2181, 32
      %v2233 = vpop.permute.xlu0 %2232
      %2242 = vrot.lane.b32.xlu0 %v2198, 64
      %v2243 = vpop.permute.xlu0 %2242
      %2244 = vrot.lane.b32.xlu0 %v2199, 64
      %v2245 = vpop.permute.xlu0 %2244
      %2246 = vrot.lane.b32.xlu0 %v2200, 64
      %v2247 = vpop.permute.xlu0 %2246
      %2248 = vrot.lane.b32.xlu0 %v2201, 64
      %v2249 = vpop.permute.xlu0 %2248
      %2258 = vrot.lane.b32.xlu0 %v2218, 96
      %v2259 = vpop.permute.xlu0 %2258
      %2260 = vrot.lane.b32.xlu0 %v2219, 96
      %v2261 = vpop.permute.xlu0 %2260
      %2262 = vrot.lane.b32.xlu0 %v2220, 96
      %v2263 = vpop.permute.xlu0 %2262
      %2264 = vrot.lane.b32.xlu0 %v2221, 96
      %v2265 = vpop.permute.xlu0 %2264
      %v2270 = vsel %vm641, %v2158, %v2227
      %v2271 = vsel %vm641, %v2159, %v2229
      %v2272 = vsel %vm641, %v2160, %v2231
      %v2273 = vsel %vm641, %v2161, %v2233
      %v2274 = vsel %vm651, %v2270, %v2243
      %v2275 = vsel %vm651, %v2271, %v2245
      %v2276 = vsel %vm651, %v2272, %v2247
      %v2277 = vsel %vm651, %v2273, %v2249
      %v2278 = vsel %vm661, %v2274, %v2259
      %v2279 = vsel %vm661, %v2275, %v2261
      %v2280 = vsel %vm661, %v2276, %v2263
      %v2281 = vsel %vm661, %v2277, %v2265
      %2282 = vst [vmem:[#allocation2 + $0x18] sm:$0xff] %v2278
      %2283 = vst [vmem:[#allocation2 + $0x38] sm:$0xff] %v2279
      %2284 = vst [vmem:[#allocation2 + $0x58] sm:$0xff] %v2280
      %2285 = vst [vmem:[#allocation2 + $0x78] sm:$0xff] %v2281
      %v2286 = vmul.f32 %v363, %v1702
      %v2287 = vmul.f32 %v368, %v1703
      %v2288 = vmul.f32 %v373, %v1704
      %v2289 = vmul.f32 %v378, %v1705
      %v2290 = vmul.f32 %v386, %v1702
      %v2291 = vmul.f32 %v390, %v1703
      %v2292 = vmul.f32 %v394, %v1704
      %v2293 = vmul.f32 %v398, %v1705
      %v2294 = vmul.f32 %v406, %v1702
      %v2295 = vmul.f32 %v410, %v1703
      %v2296 = vmul.f32 %v414, %v1704
      %v2297 = vmul.f32 %v418, %v1705
      %v2298 = vmul.f32 %v426, %v1702
      %v2299 = vmul.f32 %v430, %v1703
      %v2300 = vmul.f32 %v434, %v1704
      %v2301 = vmul.f32 %v438, %v1705
      %v2302 = vmul.f32 %v446, %v1702
      %v2303 = vmul.f32 %v450, %v1703
      %v2304 = vmul.f32 %v454, %v1704
      %v2305 = vmul.f32 %v458, %v1705
      %v2306 = vmul.f32 %v466, %v1702
      %v2307 = vmul.f32 %v470, %v1703
      %v2308 = vmul.f32 %v474, %v1704
      %v2309 = vmul.f32 %v478, %v1705
      %v2310 = vmul.f32 %v486, %v1702
      %v2311 = vmul.f32 %v490, %v1703
      %v2312 = vmul.f32 %v494, %v1704
      %v2313 = vmul.f32 %v498, %v1705
      %v2314 = vmul.f32 %v506, %v1702
      %v2315 = vmul.f32 %v510, %v1703
      %v2316 = vmul.f32 %v514, %v1704
      %v2317 = vmul.f32 %v518, %v1705
      %2322 = vrot.lane.b32.xlu0 %v2290, 16
      %v2323 = vpop.permute.xlu0 %2322
      %2324 = vrot.lane.b32.xlu0 %v2291, 16
      %v2325 = vpop.permute.xlu0 %2324
      %2326 = vrot.lane.b32.xlu0 %v2292, 16
      %v2327 = vpop.permute.xlu0 %2326
      %2328 = vrot.lane.b32.xlu0 %v2293, 16
      %v2329 = vpop.permute.xlu0 %2328
      %2338 = vrot.lane.b32.xlu0 %v2294, 32
      %v2339 = vpop.permute.xlu0 %2338
      %2340 = vrot.lane.b32.xlu0 %v2295, 32
      %v2341 = vpop.permute.xlu0 %2340
      %2342 = vrot.lane.b32.xlu0 %v2296, 32
      %v2343 = vpop.permute.xlu0 %2342
      %2344 = vrot.lane.b32.xlu0 %v2297, 32
      %v2345 = vpop.permute.xlu0 %2344
      %2354 = vrot.lane.b32.xlu0 %v2298, 48
      %v2355 = vpop.permute.xlu0 %2354
      %2356 = vrot.lane.b32.xlu0 %v2299, 48
      %v2357 = vpop.permute.xlu0 %2356
      %2358 = vrot.lane.b32.xlu0 %v2300, 48
      %v2359 = vpop.permute.xlu0 %2358
      %2360 = vrot.lane.b32.xlu0 %v2301, 48
      %v2361 = vpop.permute.xlu0 %2360
      %2370 = vrot.lane.b32.xlu0 %v2302, 64
      %v2371 = vpop.permute.xlu0 %2370
      %2372 = vrot.lane.b32.xlu0 %v2303, 64
      %v2373 = vpop.permute.xlu0 %2372
      %2374 = vrot.lane.b32.xlu0 %v2304, 64
      %v2375 = vpop.permute.xlu0 %2374
      %2376 = vrot.lane.b32.xlu0 %v2305, 64
      %v2377 = vpop.permute.xlu0 %2376
      %2386 = vrot.lane.b32.xlu0 %v2306, 80
      %v2387 = vpop.permute.xlu0 %2386
      %2388 = vrot.lane.b32.xlu0 %v2307, 80
      %v2389 = vpop.permute.xlu0 %2388
      %2390 = vrot.lane.b32.xlu0 %v2308, 80
      %v2391 = vpop.permute.xlu0 %2390
      %2392 = vrot.lane.b32.xlu0 %v2309, 80
      %v2393 = vpop.permute.xlu0 %2392
      %2402 = vrot.lane.b32.xlu0 %v2310, 96
      %v2403 = vpop.permute.xlu0 %2402
      %2404 = vrot.lane.b32.xlu0 %v2311, 96
      %v2405 = vpop.permute.xlu0 %2404
      %2406 = vrot.lane.b32.xlu0 %v2312, 96
      %v2407 = vpop.permute.xlu0 %2406
      %2408 = vrot.lane.b32.xlu0 %v2313, 96
      %v2409 = vpop.permute.xlu0 %2408
      %2418 = vrot.lane.b32.xlu0 %v2314, 112
      %v2419 = vpop.permute.xlu0 %2418
      %2420 = vrot.lane.b32.xlu0 %v2315, 112
      %v2421 = vpop.permute.xlu0 %2420
      %2422 = vrot.lane.b32.xlu0 %v2316, 112
      %v2423 = vpop.permute.xlu0 %2422
      %2424 = vrot.lane.b32.xlu0 %v2317, 112
      %v2425 = vpop.permute.xlu0 %2424
      %v2430 = vsel %vm636, %v2286, %v2323
      %v2431 = vsel %vm636, %v2287, %v2325
      %v2432 = vsel %vm636, %v2288, %v2327
      %v2433 = vsel %vm636, %v2289, %v2329
      %v2434 = vsel %vm641, %v2430, %v2339
      %v2435 = vsel %vm641, %v2431, %v2341
      %v2436 = vsel %vm641, %v2432, %v2343
      %v2437 = vsel %vm641, %v2433, %v2345
      %v2438 = vsel %vm646, %v2434, %v2355
      %v2439 = vsel %vm646, %v2435, %v2357
      %v2440 = vsel %vm646, %v2436, %v2359
      %v2441 = vsel %vm646, %v2437, %v2361
      %v2442 = vsel %vm651, %v2438, %v2371
      %v2443 = vsel %vm651, %v2439, %v2373
      %v2444 = vsel %vm651, %v2440, %v2375
      %v2445 = vsel %vm651, %v2441, %v2377
      %v2446 = vsel %vm656, %v2442, %v2387
      %v2447 = vsel %vm656, %v2443, %v2389
      %v2448 = vsel %vm656, %v2444, %v2391
      %v2449 = vsel %vm656, %v2445, %v2393
      %v2450 = vsel %vm661, %v2446, %v2403
      %v2451 = vsel %vm661, %v2447, %v2405
      %v2452 = vsel %vm661, %v2448, %v2407
      %v2453 = vsel %vm661, %v2449, %v2409
      %v2454 = vsel %vm666, %v2450, %v2419
      %v2455 = vsel %vm666, %v2451, %v2421
      %v2456 = vsel %vm666, %v2452, %v2423
      %v2457 = vsel %vm666, %v2453, %v2425
      %2458 = vst [vmem:[#allocation2] sm:$0xff] %v2454
      %2459 = vst [vmem:[#allocation2 + $0x20] sm:$0xff] %v2455
      %2460 = vst [vmem:[#allocation2 + $0x40] sm:$0xff] %v2456
      %2461 = vst [vmem:[#allocation2 + $0x60] sm:$0xff] %v2457
      %v2462 = vmul.f32 %v677, %v1702
      %v2463 = vmul.f32 %v681, %v1703
      %v2464 = vmul.f32 %v685, %v1704
      %v2465 = vmul.f32 %v689, %v1705
      %v2466 = vmul.f32 %v697, %v1702
      %v2467 = vmul.f32 %v701, %v1703
      %v2468 = vmul.f32 %v705, %v1704
      %v2469 = vmul.f32 %v709, %v1705
      %v2470 = vmul.f32 %v717, %v1702
      %v2471 = vmul.f32 %v721, %v1703
      %v2472 = vmul.f32 %v725, %v1704
      %v2473 = vmul.f32 %v729, %v1705
      %v2474 = vmul.f32 %v737, %v1702
      %v2475 = vmul.f32 %v741, %v1703
      %v2476 = vmul.f32 %v745, %v1704
      %v2477 = vmul.f32 %v749, %v1705
      %v2478 = vmul.f32 %v757, %v1702
      %v2479 = vmul.f32 %v761, %v1703
      %v2480 = vmul.f32 %v765, %v1704
      %v2481 = vmul.f32 %v769, %v1705
      %v2482 = vmul.f32 %v777, %v1702
      %v2483 = vmul.f32 %v781, %v1703
      %v2484 = vmul.f32 %v785, %v1704
      %v2485 = vmul.f32 %v789, %v1705
      %v2486 = vmul.f32 %v797, %v1702
      %v2487 = vmul.f32 %v801, %v1703
      %v2488 = vmul.f32 %v805, %v1704
      %v2489 = vmul.f32 %v809, %v1705
      %v2490 = vmul.f32 %v817, %v1702
      %v2491 = vmul.f32 %v821, %v1703
      %v2492 = vmul.f32 %v825, %v1704
      %v2493 = vmul.f32 %v829, %v1705
      %2498 = vrot.lane.b32.xlu0 %v2466, 16
      %v2499 = vpop.permute.xlu0 %2498
      %2500 = vrot.lane.b32.xlu0 %v2467, 16
      %v2501 = vpop.permute.xlu0 %2500
      %2502 = vrot.lane.b32.xlu0 %v2468, 16
      %v2503 = vpop.permute.xlu0 %2502
      %2504 = vrot.lane.b32.xlu0 %v2469, 16
      %v2505 = vpop.permute.xlu0 %2504
      %2514 = vrot.lane.b32.xlu0 %v2470, 32
      %v2515 = vpop.permute.xlu0 %2514
      %2516 = vrot.lane.b32.xlu0 %v2471, 32
      %v2517 = vpop.permute.xlu0 %2516
      %2518 = vrot.lane.b32.xlu0 %v2472, 32
      %v2519 = vpop.permute.xlu0 %2518
      %2520 = vrot.lane.b32.xlu0 %v2473, 32
      %v2521 = vpop.permute.xlu0 %2520
      %2530 = vrot.lane.b32.xlu0 %v2474, 48
      %v2531 = vpop.permute.xlu0 %2530
      %2532 = vrot.lane.b32.xlu0 %v2475, 48
      %v2533 = vpop.permute.xlu0 %2532
      %2534 = vrot.lane.b32.xlu0 %v2476, 48
      %v2535 = vpop.permute.xlu0 %2534
      %2536 = vrot.lane.b32.xlu0 %v2477, 48
      %v2537 = vpop.permute.xlu0 %2536
      %2546 = vrot.lane.b32.xlu0 %v2478, 64
      %v2547 = vpop.permute.xlu0 %2546
      %2548 = vrot.lane.b32.xlu0 %v2479, 64
      %v2549 = vpop.permute.xlu0 %2548
      %2550 = vrot.lane.b32.xlu0 %v2480, 64
      %v2551 = vpop.permute.xlu0 %2550
      %2552 = vrot.lane.b32.xlu0 %v2481, 64
      %v2553 = vpop.permute.xlu0 %2552
      %2562 = vrot.lane.b32.xlu0 %v2482, 80
      %v2563 = vpop.permute.xlu0 %2562
      %2564 = vrot.lane.b32.xlu0 %v2483, 80
      %v2565 = vpop.permute.xlu0 %2564
      %2566 = vrot.lane.b32.xlu0 %v2484, 80
      %v2567 = vpop.permute.xlu0 %2566
      %2568 = vrot.lane.b32.xlu0 %v2485, 80
      %v2569 = vpop.permute.xlu0 %2568
      %2578 = vrot.lane.b32.xlu0 %v2486, 96
      %v2579 = vpop.permute.xlu0 %2578
      %2580 = vrot.lane.b32.xlu0 %v2487, 96
      %v2581 = vpop.permute.xlu0 %2580
      %2582 = vrot.lane.b32.xlu0 %v2488, 96
      %v2583 = vpop.permute.xlu0 %2582
      %2584 = vrot.lane.b32.xlu0 %v2489, 96
      %v2585 = vpop.permute.xlu0 %2584
      %2594 = vrot.lane.b32.xlu0 %v2490, 112
      %v2595 = vpop.permute.xlu0 %2594
      %2596 = vrot.lane.b32.xlu0 %v2491, 112
      %v2597 = vpop.permute.xlu0 %2596
      %2598 = vrot.lane.b32.xlu0 %v2492, 112
      %v2599 = vpop.permute.xlu0 %2598
      %2600 = vrot.lane.b32.xlu0 %v2493, 112
      %v2601 = vpop.permute.xlu0 %2600
      %v2606 = vsel %vm636, %v2462, %v2499
      %v2607 = vsel %vm636, %v2463, %v2501
      %v2608 = vsel %vm636, %v2464, %v2503
      %v2609 = vsel %vm636, %v2465, %v2505
      %v2610 = vsel %vm641, %v2606, %v2515
      %v2611 = vsel %vm641, %v2607, %v2517
      %v2612 = vsel %vm641, %v2608, %v2519
      %v2613 = vsel %vm641, %v2609, %v2521
      %v2614 = vsel %vm646, %v2610, %v2531
      %v2615 = vsel %vm646, %v2611, %v2533
      %v2616 = vsel %vm646, %v2612, %v2535
      %v2617 = vsel %vm646, %v2613, %v2537
      %v2618 = vsel %vm651, %v2614, %v2547
      %v2619 = vsel %vm651, %v2615, %v2549
      %v2620 = vsel %vm651, %v2616, %v2551
      %v2621 = vsel %vm651, %v2617, %v2553
      %v2622 = vsel %vm656, %v2618, %v2563
      %v2623 = vsel %vm656, %v2619, %v2565
      %v2624 = vsel %vm656, %v2620, %v2567
      %v2625 = vsel %vm656, %v2621, %v2569
      %v2626 = vsel %vm661, %v2622, %v2579
      %v2627 = vsel %vm661, %v2623, %v2581
      %v2628 = vsel %vm661, %v2624, %v2583
      %v2629 = vsel %vm661, %v2625, %v2585
      %v2630 = vsel %vm666, %v2626, %v2595
      %v2631 = vsel %vm666, %v2627, %v2597
      %v2632 = vsel %vm666, %v2628, %v2599
      %v2633 = vsel %vm666, %v2629, %v2601
      %2634 = vst [vmem:[#allocation2 + $0x8] sm:$0xff] %v2630
      %2635 = vst [vmem:[#allocation2 + $0x28] sm:$0xff] %v2631
      %2636 = vst [vmem:[#allocation2 + $0x48] sm:$0xff] %v2632
      %2637 = vst [vmem:[#allocation2 + $0x68] sm:$0xff] %v2633
      %v2638 = vld [vmem:[#allocation2] sm:$0xff]
      %v2639 = vld [vmem:[#allocation2 + $0x8] sm:$0xff]
      %v2640 = vld [vmem:[#allocation2 + $0x20] sm:$0xff]
      %v2641 = vld [vmem:[#allocation2 + $0x28] sm:$0xff]
      %v2642 = vld [vmem:[#allocation2 + $0x40] sm:$0xff]
      %v2643 = vld [vmem:[#allocation2 + $0x48] sm:$0xff]
      %v2644 = vld [vmem:[#allocation2 + $0x60] sm:$0xff]
      %v2645 = vld [vmem:[#allocation2 + $0x68] sm:$0xff]
      %v2646 = vld [vmem:[%s2] sm:$0xff]
      %v2647 = vld [vmem:[%s2 + $0x8] sm:$0xff]
      %v2648 = vld [vmem:[%s2 + $0x10] sm:$0xff]
      %v2649 = vld [vmem:[%s2 + $0x18] sm:$0xff]
      %v2650 = vld [vmem:[%s2 + $0x20] sm:$0xff]
      %v2651 = vld [vmem:[%s2 + $0x28] sm:$0xff]
      %v2652 = vld [vmem:[%s2 + $0x30] sm:$0xff]
      %v2653 = vld [vmem:[%s2 + $0x38] sm:$0xff]
      %v2654 = vld [vmem:[%s2 + $0x40] sm:$0xff]
      %v2655 = vld [vmem:[%s2 + $0x48] sm:$0xff]
      %v2656 = vld [vmem:[%s2 + $0x50] sm:$0xff]
      %v2657 = vld [vmem:[%s2 + $0x58] sm:$0xff]
      %v2658 = vld [vmem:[%s2 + $0x60] sm:$0xff]
      %v2659 = vld [vmem:[%s2 + $0x68] sm:$0xff]
      %v2660 = vld [vmem:[%s2 + $0x70] sm:$0xff]
      %v2661 = vld [vmem:[%s2 + $0x78] sm:$0xff]
      %v2662 = vld [vmem:[%s2 + $0x80] sm:$0xff]
      %v2663 = vld [vmem:[%s2 + $0x88] sm:$0xff]
      %v2664 = vld [vmem:[%s2 + $0x90] sm:$0xff]
      %v2665 = vld [vmem:[%s2 + $0x98] sm:$0xff]
      %v2666 = vld [vmem:[%s2 + $0xa0] sm:$0xff]
      %v2667 = vld [vmem:[%s2 + $0xa8] sm:$0xff]
      %v2668 = vld [vmem:[%s2 + $0xb0] sm:$0xff]
      %v2669 = vld [vmem:[%s2 + $0xb8] sm:$0xff]
      %v2670 = vld [vmem:[%s2 + $0xc0] sm:$0xff]
      %v2671 = vld [vmem:[%s2 + $0xc8] sm:$0xff]
      %v2672 = vld [vmem:[%s2 + $0xd0] sm:$0xff]
      %v2673 = vld [vmem:[%s2 + $0xd8] sm:$0xff]
      %v2674 = vld [vmem:[%s2 + $0xe0] sm:$0xff]
      %v2675 = vld [vmem:[%s2 + $0xe8] sm:$0xff]
      %v2676 = vld [vmem:[%s2 + $0xf0] sm:$0xff]
      %v2677 = vld [vmem:[%s2 + $0xf8] sm:$0xff]
      %2678 = vmatprep.subr.mxu0 0.0
      %2679 = vmatpush1.msra.mxu0 %v2661
      %2680 = vmatprep.subr.mxu0 0.0
      %2681 = vmatpush1.msra.mxu0 %v2660
      %2682 = vmatprep.subr.mxu0 0.0
      %2683 = vmatpush1.msra.mxu0 %v2659
      %2684 = vmatprep.subr.mxu0 0.0
      %2685 = vmatpush1.msra.mxu0 %v2658
      %2686 = vmatprep.subr.mxu0 0.0
      %2687 = vmatpush1.msra.mxu0 %v2657
      %2688 = vmatprep.subr.mxu0 0.0
      %2689 = vmatpush1.msra.mxu0 %v2656
      %2690 = vmatprep.subr.mxu0 0.0
      %2691 = vmatpush1.msra.mxu0 %v2655
      %2692 = vmatprep.subr.mxu0 0.0
      %2693 = vmatpush1.msra.mxu0 %v2654
      %2694 = vmatprep.subr.mxu0 0.0
      %2695 = vmatpush1.msra.mxu0 %v2653
      %2696 = vmatprep.subr.mxu0 0.0
      %2697 = vmatpush1.msra.mxu0 %v2652
      %2698 = vmatprep.subr.mxu0 0.0
      %2699 = vmatpush1.msra.mxu0 %v2651
      %2700 = vmatprep.subr.mxu0 0.0
      %2701 = vmatpush1.msra.mxu0 %v2650
      %2702 = vmatprep.subr.mxu0 0.0
      %2703 = vmatpush1.msra.mxu0 %v2649
      %2704 = vmatprep.subr.mxu0 0.0
      %2705 = vmatpush1.msra.mxu0 %v2648
      %2706 = vmatprep.subr.mxu0 0.0
      %2707 = vmatpush1.msra.mxu0 %v2647
      %2708 = vmatprep.subr.mxu0 0.0
      %2709 = vmatpush1.msra.mxu0 %v2646
      %2710 = vmatprep.subr.mxu0 0.0
      %2711 = vmatpush2.msra.mxu0 %v2677
      %2712 = vmatprep.subr.mxu0 0.0
      %2713 = vmatpush2.msra.mxu0 %v2676
      %2714 = vmatprep.subr.mxu0 0.0
      %2715 = vmatpush2.msra.mxu0 %v2675
      %2716 = vmatprep.subr.mxu0 0.0
      %2717 = vmatpush2.msra.mxu0 %v2674
      %2718 = vmatprep.subr.mxu0 0.0
      %2719 = vmatpush2.msra.mxu0 %v2673
      %2720 = vmatprep.subr.mxu0 0.0
      %2721 = vmatpush2.msra.mxu0 %v2672
      %2722 = vmatprep.subr.mxu0 0.0
      %2723 = vmatpush2.msra.mxu0 %v2671
      %2724 = vmatprep.subr.mxu0 0.0
      %2725 = vmatpush2.msra.mxu0 %v2670
      %2726 = vmatprep.subr.mxu0 0.0
      %2727 = vmatpush2.msra.mxu0 %v2669
      %2728 = vmatprep.subr.mxu0 0.0
      %2729 = vmatpush2.msra.mxu0 %v2668
      %2730 = vmatprep.subr.mxu0 0.0
      %2731 = vmatpush2.msra.mxu0 %v2667
      %2732 = vmatprep.subr.mxu0 0.0
      %2733 = vmatpush2.msra.mxu0 %v2666
      %2734 = vmatprep.subr.mxu0 0.0
      %2735 = vmatpush2.msra.mxu0 %v2665
      %2736 = vmatprep.subr.mxu0 0.0
      %2737 = vmatpush2.msra.mxu0 %v2664
      %2738 = vmatprep.subr.mxu0 0.0
      %2739 = vmatpush2.msra.mxu0 %v2663
      %2740 = vmatprep.subr.mxu0 0.0
      %2741 = vmatpush2.msra.mxu0 %v2662
      %2742 = vmatprep.mubr.f32.mxu0 %v2639
      %2743 = vmatmul.mubr.f32.gmra.mxu0 %v2638
      %v2744 = vpop.f32.mrf.mxu0
      %v2745 = vadd.f32 %v358, %v2744
      %v2746 = vpop.f32.mrf.mxu0
      %2747 = vmatprep.mubr.f32.mxu0 %v2641
      %2748 = vmatmul.mubr.f32.gmra.mxu0 %v2640
      %v2749 = vpop.f32.mrf.mxu0
      %v2750 = vadd.f32 %v358, %v2749
      %v2751 = vpop.f32.mrf.mxu0
      %2752 = vmatprep.mubr.f32.mxu0 %v2643
      %2753 = vmatmul.mubr.f32.gmra.mxu0 %v2642
      %v2754 = vpop.f32.mrf.mxu0
      %v2755 = vadd.f32 %v358, %v2754
      %v2756 = vpop.f32.mrf.mxu0
      %2757 = vmatprep.mubr.f32.mxu0 %v2645
      %2758 = vmatmul.mubr.f32.gmra.mxu0 %v2644
      %v2759 = vpop.f32.mrf.mxu0
      %v2760 = vadd.f32 %v358, %v2759
      %v2761 = vpop.f32.mrf.mxu0
      %2762 = vdwg.mxu0
      %v2763 = vmul.f32 %v2745, 0.5
      %v2764 = vmul.f32 %v2750, 0.5
      %v2765 = vmul.f32 %v2755, 0.5
      %v2766 = vmul.f32 %v2760, 0.5
      %v2767 = vtanh.pop %v2763
      %v2768 = vtanh.pop %v2764
      %v2769 = vtanh.pop %v2765
      %v2770 = vtanh.pop %v2766
      %v2771 = vmul.f32 %v2767, 0.5
      %v2772 = vmul.f32 %v2768, 0.5
      %v2773 = vmul.f32 %v2769, 0.5
      %v2774 = vmul.f32 %v2770, 0.5
      %v2775 = vadd.f32 %v2771, 0.5
      %v2776 = vadd.f32 %v2772, 0.5
      %v2777 = vadd.f32 %v2773, 0.5
      %v2778 = vadd.f32 %v2774, 0.5
      %v2779 = vmul.f32 %v363, %v2775
      %v2780 = vmul.f32 %v368, %v2776
      %v2781 = vmul.f32 %v373, %v2777
      %v2782 = vmul.f32 %v378, %v2778
      %v2783 = vmul.f32 %v386, %v2775
      %v2784 = vmul.f32 %v390, %v2776
      %v2785 = vmul.f32 %v394, %v2777
      %v2786 = vmul.f32 %v398, %v2778
      %v2787 = vmul.f32 %v406, %v2775
      %v2788 = vmul.f32 %v410, %v2776
      %v2789 = vmul.f32 %v414, %v2777
      %v2790 = vmul.f32 %v418, %v2778
      %v2791 = vmul.f32 %v426, %v2775
      %v2792 = vmul.f32 %v430, %v2776
      %v2793 = vmul.f32 %v434, %v2777
      %v2794 = vmul.f32 %v438, %v2778
      %2799 = vrot.lane.b32.xlu0 %v2783, 32
      %v2800 = vpop.permute.xlu0 %2799
      %2801 = vrot.lane.b32.xlu0 %v2784, 32
      %v2802 = vpop.permute.xlu0 %2801
      %2803 = vrot.lane.b32.xlu0 %v2785, 32
      %v2804 = vpop.permute.xlu0 %2803
      %2805 = vrot.lane.b32.xlu0 %v2786, 32
      %v2806 = vpop.permute.xlu0 %2805
      %2815 = vrot.lane.b32.xlu0 %v2787, 64
      %v2816 = vpop.permute.xlu0 %2815
      %2817 = vrot.lane.b32.xlu0 %v2788, 64
      %v2818 = vpop.permute.xlu0 %2817
      %2819 = vrot.lane.b32.xlu0 %v2789, 64
      %v2820 = vpop.permute.xlu0 %2819
      %2821 = vrot.lane.b32.xlu0 %v2790, 64
      %v2822 = vpop.permute.xlu0 %2821
      %2831 = vrot.lane.b32.xlu0 %v2791, 96
      %v2832 = vpop.permute.xlu0 %2831
      %2833 = vrot.lane.b32.xlu0 %v2792, 96
      %v2834 = vpop.permute.xlu0 %2833
      %2835 = vrot.lane.b32.xlu0 %v2793, 96
      %v2836 = vpop.permute.xlu0 %2835
      %2837 = vrot.lane.b32.xlu0 %v2794, 96
      %v2838 = vpop.permute.xlu0 %2837
      %v2843 = vsel %vm641, %v2779, %v2800
      %v2844 = vsel %vm641, %v2780, %v2802
      %v2845 = vsel %vm641, %v2781, %v2804
      %v2846 = vsel %vm641, %v2782, %v2806
      %v2847 = vsel %vm651, %v2843, %v2816
      %v2848 = vsel %vm651, %v2844, %v2818
      %v2849 = vsel %vm651, %v2845, %v2820
      %v2850 = vsel %vm651, %v2846, %v2822
      %v2851 = vsel %vm661, %v2847, %v2832
      %v2852 = vsel %vm661, %v2848, %v2834
      %v2853 = vsel %vm661, %v2849, %v2836
      %v2854 = vsel %vm661, %v2850, %v2838
      %2855 = vst [vmem:[#allocation2] sm:$0xff] %v2851
      %2856 = vst [vmem:[#allocation2 + $0x20] sm:$0xff] %v2852
      %2857 = vst [vmem:[#allocation2 + $0x40] sm:$0xff] %v2853
      %2858 = vst [vmem:[#allocation2 + $0x60] sm:$0xff] %v2854
      %v2859 = vmul.f32 %v446, %v2775
      %v2860 = vmul.f32 %v450, %v2776
      %v2861 = vmul.f32 %v454, %v2777
      %v2862 = vmul.f32 %v458, %v2778
      %v2863 = vmul.f32 %v466, %v2775
      %v2864 = vmul.f32 %v470, %v2776
      %v2865 = vmul.f32 %v474, %v2777
      %v2866 = vmul.f32 %v478, %v2778
      %v2867 = vmul.f32 %v486, %v2775
      %v2868 = vmul.f32 %v490, %v2776
      %v2869 = vmul.f32 %v494, %v2777
      %v2870 = vmul.f32 %v498, %v2778
      %v2871 = vmul.f32 %v506, %v2775
      %v2872 = vmul.f32 %v510, %v2776
      %v2873 = vmul.f32 %v514, %v2777
      %v2874 = vmul.f32 %v518, %v2778
      %2879 = vrot.lane.b32.xlu0 %v2863, 32
      %v2880 = vpop.permute.xlu0 %2879
      %2881 = vrot.lane.b32.xlu0 %v2864, 32
      %v2882 = vpop.permute.xlu0 %2881
      %2883 = vrot.lane.b32.xlu0 %v2865, 32
      %v2884 = vpop.permute.xlu0 %2883
      %2885 = vrot.lane.b32.xlu0 %v2866, 32
      %v2886 = vpop.permute.xlu0 %2885
      %2895 = vrot.lane.b32.xlu0 %v2867, 64
      %v2896 = vpop.permute.xlu0 %2895
      %2897 = vrot.lane.b32.xlu0 %v2868, 64
      %v2898 = vpop.permute.xlu0 %2897
      %2899 = vrot.lane.b32.xlu0 %v2869, 64
      %v2900 = vpop.permute.xlu0 %2899
      %2901 = vrot.lane.b32.xlu0 %v2870, 64
      %v2902 = vpop.permute.xlu0 %2901
      %2911 = vrot.lane.b32.xlu0 %v2871, 96
      %v2912 = vpop.permute.xlu0 %2911
      %2913 = vrot.lane.b32.xlu0 %v2872, 96
      %v2914 = vpop.permute.xlu0 %2913
      %2915 = vrot.lane.b32.xlu0 %v2873, 96
      %v2916 = vpop.permute.xlu0 %2915
      %2917 = vrot.lane.b32.xlu0 %v2874, 96
      %v2918 = vpop.permute.xlu0 %2917
      %v2923 = vsel %vm641, %v2859, %v2880
      %v2924 = vsel %vm641, %v2860, %v2882
      %v2925 = vsel %vm641, %v2861, %v2884
      %v2926 = vsel %vm641, %v2862, %v2886
      %v2927 = vsel %vm651, %v2923, %v2896
      %v2928 = vsel %vm651, %v2924, %v2898
      %v2929 = vsel %vm651, %v2925, %v2900
      %v2930 = vsel %vm651, %v2926, %v2902
      %v2931 = vsel %vm661, %v2927, %v2912
      %v2932 = vsel %vm661, %v2928, %v2914
      %v2933 = vsel %vm661, %v2929, %v2916
      %v2934 = vsel %vm661, %v2930, %v2918
      %2935 = vst [vmem:[#allocation2 + $0x8] sm:$0xff] %v2931
      %2936 = vst [vmem:[#allocation2 + $0x28] sm:$0xff] %v2932
      %2937 = vst [vmem:[#allocation2 + $0x48] sm:$0xff] %v2933
      %2938 = vst [vmem:[#allocation2 + $0x68] sm:$0xff] %v2934
      %v2939 = vmul.f32 %v677, %v2775
      %v2940 = vmul.f32 %v681, %v2776
      %v2941 = vmul.f32 %v685, %v2777
      %v2942 = vmul.f32 %v689, %v2778
      %v2943 = vmul.f32 %v697, %v2775
      %v2944 = vmul.f32 %v701, %v2776
      %v2945 = vmul.f32 %v705, %v2777
      %v2946 = vmul.f32 %v709, %v2778
      %v2947 = vmul.f32 %v717, %v2775
      %v2948 = vmul.f32 %v721, %v2776
      %v2949 = vmul.f32 %v725, %v2777
      %v2950 = vmul.f32 %v729, %v2778
      %v2951 = vmul.f32 %v737, %v2775
      %v2952 = vmul.f32 %v741, %v2776
      %v2953 = vmul.f32 %v745, %v2777
      %v2954 = vmul.f32 %v749, %v2778
      %2959 = vrot.lane.b32.xlu0 %v2943, 32
      %v2960 = vpop.permute.xlu0 %2959
      %2961 = vrot.lane.b32.xlu0 %v2944, 32
      %v2962 = vpop.permute.xlu0 %2961
      %2963 = vrot.lane.b32.xlu0 %v2945, 32
      %v2964 = vpop.permute.xlu0 %2963
      %2965 = vrot.lane.b32.xlu0 %v2946, 32
      %v2966 = vpop.permute.xlu0 %2965
      %2975 = vrot.lane.b32.xlu0 %v2947, 64
      %v2976 = vpop.permute.xlu0 %2975
      %2977 = vrot.lane.b32.xlu0 %v2948, 64
      %v2978 = vpop.permute.xlu0 %2977
      %2979 = vrot.lane.b32.xlu0 %v2949, 64
      %v2980 = vpop.permute.xlu0 %2979
      %2981 = vrot.lane.b32.xlu0 %v2950, 64
      %v2982 = vpop.permute.xlu0 %2981
      %2991 = vrot.lane.b32.xlu0 %v2951, 96
      %v2992 = vpop.permute.xlu0 %2991
      %2993 = vrot.lane.b32.xlu0 %v2952, 96
      %v2994 = vpop.permute.xlu0 %2993
      %2995 = vrot.lane.b32.xlu0 %v2953, 96
      %v2996 = vpop.permute.xlu0 %2995
      %2997 = vrot.lane.b32.xlu0 %v2954, 96
      %v2998 = vpop.permute.xlu0 %2997
      %v3003 = vsel %vm641, %v2939, %v2960
      %v3004 = vsel %vm641, %v2940, %v2962
      %v3005 = vsel %vm641, %v2941, %v2964
      %v3006 = vsel %vm641, %v2942, %v2966
      %v3007 = vsel %vm651, %v3003, %v2976
      %v3008 = vsel %vm651, %v3004, %v2978
      %v3009 = vsel %vm651, %v3005, %v2980
      %v3010 = vsel %vm651, %v3006, %v2982
      %v3011 = vsel %vm661, %v3007, %v2992
      %v3012 = vsel %vm661, %v3008, %v2994
      %v3013 = vsel %vm661, %v3009, %v2996
      %v3014 = vsel %vm661, %v3010, %v2998
      %3015 = vst [vmem:[#allocation2 + $0x10] sm:$0xff] %v3011
      %3016 = vst [vmem:[#allocation2 + $0x30] sm:$0xff] %v3012
      %3017 = vst [vmem:[#allocation2 + $0x50] sm:$0xff] %v3013
      %3018 = vst [vmem:[#allocation2 + $0x70] sm:$0xff] %v3014
      %v3019 = vmul.f32 %v757, %v2775
      %v3020 = vmul.f32 %v761, %v2776
      %v3021 = vmul.f32 %v765, %v2777
      %v3022 = vmul.f32 %v769, %v2778
      %v3023 = vmul.f32 %v777, %v2775
      %v3024 = vmul.f32 %v781, %v2776
      %v3025 = vmul.f32 %v785, %v2777
      %v3026 = vmul.f32 %v789, %v2778
      %v3027 = vmul.f32 %v797, %v2775
      %v3028 = vmul.f32 %v801, %v2776
      %v3029 = vmul.f32 %v805, %v2777
      %v3030 = vmul.f32 %v809, %v2778
      %v3031 = vmul.f32 %v817, %v2775
      %v3032 = vmul.f32 %v821, %v2776
      %v3033 = vmul.f32 %v825, %v2777
      %v3034 = vmul.f32 %v829, %v2778
      %3039 = vrot.lane.b32.xlu0 %v3023, 32
      %v3040 = vpop.permute.xlu0 %3039
      %3041 = vrot.lane.b32.xlu0 %v3024, 32
      %v3042 = vpop.permute.xlu0 %3041
      %3043 = vrot.lane.b32.xlu0 %v3025, 32
      %v3044 = vpop.permute.xlu0 %3043
      %3045 = vrot.lane.b32.xlu0 %v3026, 32
      %v3046 = vpop.permute.xlu0 %3045
      %3055 = vrot.lane.b32.xlu0 %v3027, 64
      %v3056 = vpop.permute.xlu0 %3055
      %3057 = vrot.lane.b32.xlu0 %v3028, 64
      %v3058 = vpop.permute.xlu0 %3057
      %3059 = vrot.lane.b32.xlu0 %v3029, 64
      %v3060 = vpop.permute.xlu0 %3059
      %3061 = vrot.lane.b32.xlu0 %v3030, 64
      %v3062 = vpop.permute.xlu0 %3061
      %3071 = vrot.lane.b32.xlu0 %v3031, 96
      %v3072 = vpop.permute.xlu0 %3071
      %3073 = vrot.lane.b32.xlu0 %v3032, 96
      %v3074 = vpop.permute.xlu0 %3073
      %3075 = vrot.lane.b32.xlu0 %v3033, 96
      %v3076 = vpop.permute.xlu0 %3075
      %3077 = vrot.lane.b32.xlu0 %v3034, 96
      %v3078 = vpop.permute.xlu0 %3077
      %v3083 = vsel %vm641, %v3019, %v3040
      %v3084 = vsel %vm641, %v3020, %v3042
      %v3085 = vsel %vm641, %v3021, %v3044
      %v3086 = vsel %vm641, %v3022, %v3046
      %v3087 = vsel %vm651, %v3083, %v3056
      %v3088 = vsel %vm651, %v3084, %v3058
      %v3089 = vsel %vm651, %v3085, %v3060
      %v3090 = vsel %vm651, %v3086, %v3062
      %v3091 = vsel %vm661, %v3087, %v3072
      %v3092 = vsel %vm661, %v3088, %v3074
      %v3093 = vsel %vm661, %v3089, %v3076
      %v3094 = vsel %vm661, %v3090, %v3078
      %3095 = vst [vmem:[#allocation2 + $0x18] sm:$0xff] %v3091
      %3096 = vst [vmem:[#allocation2 + $0x38] sm:$0xff] %v3092
      %3097 = vst [vmem:[#allocation2 + $0x58] sm:$0xff] %v3093
      %3098 = vst [vmem:[#allocation2 + $0x78] sm:$0xff] %v3094
      %v3099 = vld [vmem:[#allocation2] sm:$0xff]
      %v3100 = vld [vmem:[#allocation2 + $0x8] sm:$0xff]
      %v3101 = vld [vmem:[#allocation2 + $0x10] sm:$0xff]
      %v3102 = vld [vmem:[#allocation2 + $0x18] sm:$0xff]
      %v3103 = vld [vmem:[#allocation2 + $0x20] sm:$0xff]
      %v3104 = vld [vmem:[#allocation2 + $0x28] sm:$0xff]
      %v3105 = vld [vmem:[#allocation2 + $0x30] sm:$0xff]
      %v3106 = vld [vmem:[#allocation2 + $0x38] sm:$0xff]
      %v3107 = vld [vmem:[#allocation2 + $0x40] sm:$0xff]
      %v3108 = vld [vmem:[#allocation2 + $0x48] sm:$0xff]
      %v3109 = vld [vmem:[#allocation2 + $0x50] sm:$0xff]
      %v3110 = vld [vmem:[#allocation2 + $0x58] sm:$0xff]
      %v3111 = vld [vmem:[#allocation2 + $0x60] sm:$0xff]
      %v3112 = vld [vmem:[#allocation2 + $0x68] sm:$0xff]
      %v3113 = vld [vmem:[#allocation2 + $0x70] sm:$0xff]
      %v3114 = vld [vmem:[#allocation2 + $0x78] sm:$0xff]
      %v3115 = vld [vmem:[%s3] sm:$0xff]
      %v3116 = vld [vmem:[%s3 + $0x8] sm:$0xff]
      %v3117 = vld [vmem:[%s3 + $0x10] sm:$0xff]
      %v3118 = vld [vmem:[%s3 + $0x18] sm:$0xff]
      %v3119 = vld [vmem:[%s3 + $0x20] sm:$0xff]
      %v3120 = vld [vmem:[%s3 + $0x28] sm:$0xff]
      %v3121 = vld [vmem:[%s3 + $0x30] sm:$0xff]
      %v3122 = vld [vmem:[%s3 + $0x38] sm:$0xff]
      %v3123 = vld [vmem:[%s3 + $0x40] sm:$0xff]
      %v3124 = vld [vmem:[%s3 + $0x48] sm:$0xff]
      %v3125 = vld [vmem:[%s3 + $0x50] sm:$0xff]
      %v3126 = vld [vmem:[%s3 + $0x58] sm:$0xff]
      %v3127 = vld [vmem:[%s3 + $0x60] sm:$0xff]
      %v3128 = vld [vmem:[%s3 + $0x68] sm:$0xff]
      %v3129 = vld [vmem:[%s3 + $0x70] sm:$0xff]
      %v3130 = vld [vmem:[%s3 + $0x78] sm:$0xff]
      %v3131 = vld [vmem:[%s3 + $0x80] sm:$0xff]
      %v3132 = vld [vmem:[%s3 + $0x88] sm:$0xff]
      %v3133 = vld [vmem:[%s3 + $0x90] sm:$0xff]
      %v3134 = vld [vmem:[%s3 + $0x98] sm:$0xff]
      %v3135 = vld [vmem:[%s3 + $0xa0] sm:$0xff]
      %v3136 = vld [vmem:[%s3 + $0xa8] sm:$0xff]
      %v3137 = vld [vmem:[%s3 + $0xb0] sm:$0xff]
      %v3138 = vld [vmem:[%s3 + $0xb8] sm:$0xff]
      %v3139 = vld [vmem:[%s3 + $0xc0] sm:$0xff]
      %v3140 = vld [vmem:[%s3 + $0xc8] sm:$0xff]
      %v3141 = vld [vmem:[%s3 + $0xd0] sm:$0xff]
      %v3142 = vld [vmem:[%s3 + $0xd8] sm:$0xff]
      %v3143 = vld [vmem:[%s3 + $0xe0] sm:$0xff]
      %v3144 = vld [vmem:[%s3 + $0xe8] sm:$0xff]
      %v3145 = vld [vmem:[%s3 + $0xf0] sm:$0xff]
      %v3146 = vld [vmem:[%s3 + $0xf8] sm:$0xff]
      %v3147 = vld [vmem:[%s3 + $0x100] sm:$0xff]
      %v3148 = vld [vmem:[%s3 + $0x108] sm:$0xff]
      %v3149 = vld [vmem:[%s3 + $0x110] sm:$0xff]
      %v3150 = vld [vmem:[%s3 + $0x118] sm:$0xff]
      %v3151 = vld [vmem:[%s3 + $0x120] sm:$0xff]
      %v3152 = vld [vmem:[%s3 + $0x128] sm:$0xff]
      %v3153 = vld [vmem:[%s3 + $0x130] sm:$0xff]
      %v3154 = vld [vmem:[%s3 + $0x138] sm:$0xff]
      %v3155 = vld [vmem:[%s3 + $0x140] sm:$0xff]
      %v3156 = vld [vmem:[%s3 + $0x148] sm:$0xff]
      %v3157 = vld [vmem:[%s3 + $0x150] sm:$0xff]
      %v3158 = vld [vmem:[%s3 + $0x158] sm:$0xff]
      %v3159 = vld [vmem:[%s3 + $0x160] sm:$0xff]
      %v3160 = vld [vmem:[%s3 + $0x168] sm:$0xff]
      %v3161 = vld [vmem:[%s3 + $0x170] sm:$0xff]
      %v3162 = vld [vmem:[%s3 + $0x178] sm:$0xff]
      %v3163 = vld [vmem:[%s3 + $0x180] sm:$0xff]
      %v3164 = vld [vmem:[%s3 + $0x188] sm:$0xff]
      %v3165 = vld [vmem:[%s3 + $0x190] sm:$0xff]
      %v3166 = vld [vmem:[%s3 + $0x198] sm:$0xff]
      %v3167 = vld [vmem:[%s3 + $0x1a0] sm:$0xff]
      %v3168 = vld [vmem:[%s3 + $0x1a8] sm:$0xff]
      %v3169 = vld [vmem:[%s3 + $0x1b0] sm:$0xff]
      %v3170 = vld [vmem:[%s3 + $0x1b8] sm:$0xff]
      %v3171 = vld [vmem:[%s3 + $0x1c0] sm:$0xff]
      %v3172 = vld [vmem:[%s3 + $0x1c8] sm:$0xff]
      %v3173 = vld [vmem:[%s3 + $0x1d0] sm:$0xff]
      %v3174 = vld [vmem:[%s3 + $0x1d8] sm:$0xff]
      %v3175 = vld [vmem:[%s3 + $0x1e0] sm:$0xff]
      %v3176 = vld [vmem:[%s3 + $0x1e8] sm:$0xff]
      %v3177 = vld [vmem:[%s3 + $0x1f0] sm:$0xff]
      %v3178 = vld [vmem:[%s3 + $0x1f8] sm:$0xff]
      %3179 = vmatprep.subr.mxu0 0.0
      %3180 = vmatpush1.msra.mxu0 %v3130
      %3181 = vmatprep.subr.mxu0 0.0
      %3182 = vmatpush1.msra.mxu0 %v3129
      %3183 = vmatprep.subr.mxu0 0.0
      %3184 = vmatpush1.msra.mxu0 %v3128
      %3185 = vmatprep.subr.mxu0 0.0
      %3186 = vmatpush1.msra.mxu0 %v3127
      %3187 = vmatprep.subr.mxu0 0.0
      %3188 = vmatpush1.msra.mxu0 %v3126
      %3189 = vmatprep.subr.mxu0 0.0
      %3190 = vmatpush1.msra.mxu0 %v3125
      %3191 = vmatprep.subr.mxu0 0.0
      %3192 = vmatpush1.msra.mxu0 %v3124
      %3193 = vmatprep.subr.mxu0 0.0
      %3194 = vmatpush1.msra.mxu0 %v3123
      %3195 = vmatprep.subr.mxu0 0.0
      %3196 = vmatpush1.msra.mxu0 %v3122
      %3197 = vmatprep.subr.mxu0 0.0
      %3198 = vmatpush1.msra.mxu0 %v3121
      %3199 = vmatprep.subr.mxu0 0.0
      %3200 = vmatpush1.msra.mxu0 %v3120
      %3201 = vmatprep.subr.mxu0 0.0
      %3202 = vmatpush1.msra.mxu0 %v3119
      %3203 = vmatprep.subr.mxu0 0.0
      %3204 = vmatpush1.msra.mxu0 %v3118
      %3205 = vmatprep.subr.mxu0 0.0
      %3206 = vmatpush1.msra.mxu0 %v3117
      %3207 = vmatprep.subr.mxu0 0.0
      %3208 = vmatpush1.msra.mxu0 %v3116
      %3209 = vmatprep.subr.mxu0 0.0
      %3210 = vmatpush1.msra.mxu0 %v3115
      %3211 = vmatprep.subr.mxu0 0.0
      %3212 = vmatpush2.msra.mxu0 %v3146
      %3213 = vmatprep.subr.mxu0 0.0
      %3214 = vmatpush2.msra.mxu0 %v3145
      %3215 = vmatprep.subr.mxu0 0.0
      %3216 = vmatpush2.msra.mxu0 %v3144
      %3217 = vmatprep.subr.mxu0 0.0
      %3218 = vmatpush2.msra.mxu0 %v3143
      %3219 = vmatprep.subr.mxu0 0.0
      %3220 = vmatpush2.msra.mxu0 %v3142
      %3221 = vmatprep.subr.mxu0 0.0
      %3222 = vmatpush2.msra.mxu0 %v3141
      %3223 = vmatprep.subr.mxu0 0.0
      %3224 = vmatpush2.msra.mxu0 %v3140
      %3225 = vmatprep.subr.mxu0 0.0
      %3226 = vmatpush2.msra.mxu0 %v3139
      %3227 = vmatprep.subr.mxu0 0.0
      %3228 = vmatpush2.msra.mxu0 %v3138
      %3229 = vmatprep.subr.mxu0 0.0
      %3230 = vmatpush2.msra.mxu0 %v3137
      %3231 = vmatprep.subr.mxu0 0.0
      %3232 = vmatpush2.msra.mxu0 %v3136
      %3233 = vmatprep.subr.mxu0 0.0
      %3234 = vmatpush2.msra.mxu0 %v3135
      %3235 = vmatprep.subr.mxu0 0.0
      %3236 = vmatpush2.msra.mxu0 %v3134
      %3237 = vmatprep.subr.mxu0 0.0
      %3238 = vmatpush2.msra.mxu0 %v3133
      %3239 = vmatprep.subr.mxu0 0.0
      %3240 = vmatpush2.msra.mxu0 %v3132
      %3241 = vmatprep.subr.mxu0 0.0
      %3242 = vmatpush2.msra.mxu0 %v3131
      %3243 = vmatprep.mubr.f32.mxu0 %v3100
      %3244 = vmatmul.mubr.f32.gmra.mxu0 %v3099
      %v3245 = vpop.f32.mrf.mxu0
      %v3246 = vadd.f32 %v351, %v3245
      %v3247 = vpop.f32.mrf.mxu0
      %3248 = vmatprep.mubr.f32.mxu0 %v3104
      %3249 = vmatmul.mubr.f32.gmra.mxu0 %v3103
      %v3250 = vpop.f32.mrf.mxu0
      %v3251 = vadd.f32 %v351, %v3250
      %v3252 = vpop.f32.mrf.mxu0
      %3253 = vmatprep.mubr.f32.mxu0 %v3108
      %3254 = vmatmul.mubr.f32.gmra.mxu0 %v3107
      %v3255 = vpop.f32.mrf.mxu0
      %v3256 = vadd.f32 %v351, %v3255
      %v3257 = vpop.f32.mrf.mxu0
      %3258 = vmatprep.mubr.f32.mxu0 %v3112
      %3259 = vmatmul.mubr.f32.gmra.mxu0 %v3111
      %v3260 = vpop.f32.mrf.mxu0
      %v3261 = vadd.f32 %v351, %v3260
      %v3262 = vpop.f32.mrf.mxu0
      %3263 = vdwg.mxu0
      %3264 = vmatprep.subr.mxu0 0.0
      %3265 = vmatpush1.msra.mxu0 %v3162
      %3266 = vmatprep.subr.mxu0 0.0
      %3267 = vmatpush1.msra.mxu0 %v3161
      %3268 = vmatprep.subr.mxu0 0.0
      %3269 = vmatpush1.msra.mxu0 %v3160
      %3270 = vmatprep.subr.mxu0 0.0
      %3271 = vmatpush1.msra.mxu0 %v3159
      %3272 = vmatprep.subr.mxu0 0.0
      %3273 = vmatpush1.msra.mxu0 %v3158
      %3274 = vmatprep.subr.mxu0 0.0
      %3275 = vmatpush1.msra.mxu0 %v3157
      %3276 = vmatprep.subr.mxu0 0.0
      %3277 = vmatpush1.msra.mxu0 %v3156
      %3278 = vmatprep.subr.mxu0 0.0
      %3279 = vmatpush1.msra.mxu0 %v3155
      %3280 = vmatprep.subr.mxu0 0.0
      %3281 = vmatpush1.msra.mxu0 %v3154
      %3282 = vmatprep.subr.mxu0 0.0
      %3283 = vmatpush1.msra.mxu0 %v3153
      %3284 = vmatprep.subr.mxu0 0.0
      %3285 = vmatpush1.msra.mxu0 %v3152
      %3286 = vmatprep.subr.mxu0 0.0
      %3287 = vmatpush1.msra.mxu0 %v3151
      %3288 = vmatprep.subr.mxu0 0.0
      %3289 = vmatpush1.msra.mxu0 %v3150
      %3290 = vmatprep.subr.mxu0 0.0
      %3291 = vmatpush1.msra.mxu0 %v3149
      %3292 = vmatprep.subr.mxu0 0.0
      %3293 = vmatpush1.msra.mxu0 %v3148
      %3294 = vmatprep.subr.mxu0 0.0
      %3295 = vmatpush1.msra.mxu0 %v3147
      %3296 = vmatprep.subr.mxu0 0.0
      %3297 = vmatpush2.msra.mxu0 %v3178
      %3298 = vmatprep.subr.mxu0 0.0
      %3299 = vmatpush2.msra.mxu0 %v3177
      %3300 = vmatprep.subr.mxu0 0.0
      %3301 = vmatpush2.msra.mxu0 %v3176
      %3302 = vmatprep.subr.mxu0 0.0
      %3303 = vmatpush2.msra.mxu0 %v3175
      %3304 = vmatprep.subr.mxu0 0.0
      %3305 = vmatpush2.msra.mxu0 %v3174
      %3306 = vmatprep.subr.mxu0 0.0
      %3307 = vmatpush2.msra.mxu0 %v3173
      %3308 = vmatprep.subr.mxu0 0.0
      %3309 = vmatpush2.msra.mxu0 %v3172
      %3310 = vmatprep.subr.mxu0 0.0
      %3311 = vmatpush2.msra.mxu0 %v3171
      %3312 = vmatprep.subr.mxu0 0.0
      %3313 = vmatpush2.msra.mxu0 %v3170
      %3314 = vmatprep.subr.mxu0 0.0
      %3315 = vmatpush2.msra.mxu0 %v3169
      %3316 = vmatprep.subr.mxu0 0.0
      %3317 = vmatpush2.msra.mxu0 %v3168
      %3318 = vmatprep.subr.mxu0 0.0
      %3319 = vmatpush2.msra.mxu0 %v3167
      %3320 = vmatprep.subr.mxu0 0.0
      %3321 = vmatpush2.msra.mxu0 %v3166
      %3322 = vmatprep.subr.mxu0 0.0
      %3323 = vmatpush2.msra.mxu0 %v3165
      %3324 = vmatprep.subr.mxu0 0.0
      %3325 = vmatpush2.msra.mxu0 %v3164
      %3326 = vmatprep.subr.mxu0 0.0
      %3327 = vmatpush2.msra.mxu0 %v3163
      %3328 = vmatprep.mubr.f32.mxu0 %v3102
      %3329 = vmatmul.mubr.f32.gmra.mxu0 %v3101
      %v3330 = vpop.f32.mrf.mxu0
      %v3331 = vadd.f32 %v3246, %v3330
      %v3332 = vpop.f32.mrf.mxu0
      %3333 = vmatprep.mubr.f32.mxu0 %v3106
      %3334 = vmatmul.mubr.f32.gmra.mxu0 %v3105
      %v3335 = vpop.f32.mrf.mxu0
      %v3336 = vadd.f32 %v3251, %v3335
      %v3337 = vpop.f32.mrf.mxu0
      %3338 = vmatprep.mubr.f32.mxu0 %v3110
      %3339 = vmatmul.mubr.f32.gmra.mxu0 %v3109
      %v3340 = vpop.f32.mrf.mxu0
      %v3341 = vadd.f32 %v3256, %v3340
      %v3342 = vpop.f32.mrf.mxu0
      %3343 = vmatprep.mubr.f32.mxu0 %v3114
      %3344 = vmatmul.mubr.f32.gmra.mxu0 %v3113
      %v3345 = vpop.f32.mrf.mxu0
      %v3346 = vadd.f32 %v3261, %v3345
      %v3347 = vpop.f32.mrf.mxu0
      %3348 = vdwg.mxu0
      %v3349 = vmul.f32 %v3331, 0.5
      %v3350 = vmul.f32 %v3336, 0.5
      %v3351 = vmul.f32 %v3341, 0.5
      %v3352 = vmul.f32 %v3346, 0.5
      %v3353 = vtanh.pop %v3349
      %v3354 = vtanh.pop %v3350
      %v3355 = vtanh.pop %v3351
      %v3356 = vtanh.pop %v3352
      %v3357 = vmul.f32 %v3353, 0.5
      %v3358 = vmul.f32 %v3354, 0.5
      %v3359 = vmul.f32 %v3355, 0.5
      %v3360 = vmul.f32 %v3356, 0.5
      %v3361 = vadd.f32 %v3357, 0.5
      %v3362 = vadd.f32 %v3358, 0.5
      %v3363 = vadd.f32 %v3359, 0.5
      %v3364 = vadd.f32 %v3360, 0.5
      %3366 = vset.pattern.permute.xlu0 0
      %3367 = vperm.xlu0 %3366, %v3361
      %v3368 = vpop.permute.xlu0 %3367
      %3371 = vset.pattern.permute.xlu0 0
      %3372 = vperm.xlu0 %3371, %v3362
      %v3373 = vpop.permute.xlu0 %3372
      %3376 = vset.pattern.permute.xlu0 0
      %3377 = vperm.xlu0 %3376, %v3363
      %v3378 = vpop.permute.xlu0 %3377
      %3381 = vset.pattern.permute.xlu0 0
      %3382 = vperm.xlu0 %3381, %v3364
      %v3383 = vpop.permute.xlu0 %3382
      %v3385 = vmul.f32 %v3368, %v2775
      %v3386 = vmul.f32 %v3373, %v2776
      %v3387 = vmul.f32 %v3378, %v2777
      %v3388 = vmul.f32 %v3383, %v2778
      %3389 = vset.pattern.permute.xlu0 1
      %3390 = vperm.xlu0 %3389, %v3361
      %v3391 = vpop.permute.xlu0 %3390
      %3393 = vset.pattern.permute.xlu0 1
      %3394 = vperm.xlu0 %3393, %v3362
      %v3395 = vpop.permute.xlu0 %3394
      %3397 = vset.pattern.permute.xlu0 1
      %3398 = vperm.xlu0 %3397, %v3363
      %v3399 = vpop.permute.xlu0 %3398
      %3401 = vset.pattern.permute.xlu0 1
      %3402 = vperm.xlu0 %3401, %v3364
      %v3403 = vpop.permute.xlu0 %3402
      %v3405 = vmul.f32 %v3391, %v2775
      %v3406 = vmul.f32 %v3395, %v2776
      %v3407 = vmul.f32 %v3399, %v2777
      %v3408 = vmul.f32 %v3403, %v2778
      %3409 = vset.pattern.permute.xlu0 2
      %3410 = vperm.xlu0 %3409, %v3361
      %v3411 = vpop.permute.xlu0 %3410
      %3413 = vset.pattern.permute.xlu0 2
      %3414 = vperm.xlu0 %3413, %v3362
      %v3415 = vpop.permute.xlu0 %3414
      %3417 = vset.pattern.permute.xlu0 2
      %3418 = vperm.xlu0 %3417, %v3363
      %v3419 = vpop.permute.xlu0 %3418
      %3421 = vset.pattern.permute.xlu0 2
      %3422 = vperm.xlu0 %3421, %v3364
      %v3423 = vpop.permute.xlu0 %3422
      %v3425 = vmul.f32 %v3411, %v2775
      %v3426 = vmul.f32 %v3415, %v2776
      %v3427 = vmul.f32 %v3419, %v2777
      %v3428 = vmul.f32 %v3423, %v2778
      %3429 = vset.pattern.permute.xlu0 3
      %3430 = vperm.xlu0 %3429, %v3361
      %v3431 = vpop.permute.xlu0 %3430
      %3433 = vset.pattern.permute.xlu0 3
      %3434 = vperm.xlu0 %3433, %v3362
      %v3435 = vpop.permute.xlu0 %3434
      %3437 = vset.pattern.permute.xlu0 3
      %3438 = vperm.xlu0 %3437, %v3363
      %v3439 = vpop.permute.xlu0 %3438
      %3441 = vset.pattern.permute.xlu0 3
      %3442 = vperm.xlu0 %3441, %v3364
      %v3443 = vpop.permute.xlu0 %3442
      %v3445 = vmul.f32 %v3431, %v2775
      %v3446 = vmul.f32 %v3435, %v2776
      %v3447 = vmul.f32 %v3439, %v2777
      %v3448 = vmul.f32 %v3443, %v2778
      %3453 = vrot.lane.b32.xlu0 %v3405, 32
      %v3454 = vpop.permute.xlu0 %3453
      %3455 = vrot.lane.b32.xlu0 %v3406, 32
      %v3456 = vpop.permute.xlu0 %3455
      %3457 = vrot.lane.b32.xlu0 %v3407, 32
      %v3458 = vpop.permute.xlu0 %3457
      %3459 = vrot.lane.b32.xlu0 %v3408, 32
      %v3460 = vpop.permute.xlu0 %3459
      %3469 = vrot.lane.b32.xlu0 %v3425, 64
      %v3470 = vpop.permute.xlu0 %3469
      %3471 = vrot.lane.b32.xlu0 %v3426, 64
      %v3472 = vpop.permute.xlu0 %3471
      %3473 = vrot.lane.b32.xlu0 %v3427, 64
      %v3474 = vpop.permute.xlu0 %3473
      %3475 = vrot.lane.b32.xlu0 %v3428, 64
      %v3476 = vpop.permute.xlu0 %3475
      %3485 = vrot.lane.b32.xlu0 %v3445, 96
      %v3486 = vpop.permute.xlu0 %3485
      %3487 = vrot.lane.b32.xlu0 %v3446, 96
      %v3488 = vpop.permute.xlu0 %3487
      %3489 = vrot.lane.b32.xlu0 %v3447, 96
      %v3490 = vpop.permute.xlu0 %3489
      %3491 = vrot.lane.b32.xlu0 %v3448, 96
      %v3492 = vpop.permute.xlu0 %3491
      %v3497 = vsel %vm641, %v3385, %v3454
      %v3498 = vsel %vm641, %v3386, %v3456
      %v3499 = vsel %vm641, %v3387, %v3458
      %v3500 = vsel %vm641, %v3388, %v3460
      %v3501 = vsel %vm651, %v3497, %v3470
      %v3502 = vsel %vm651, %v3498, %v3472
      %v3503 = vsel %vm651, %v3499, %v3474
      %v3504 = vsel %vm651, %v3500, %v3476
      %v3505 = vsel %vm661, %v3501, %v3486
      %v3506 = vsel %vm661, %v3502, %v3488
      %v3507 = vsel %vm661, %v3503, %v3490
      %v3508 = vsel %vm661, %v3504, %v3492
      %3509 = vst [vmem:[#allocation2] sm:$0xff] %v3505
      %3510 = vst [vmem:[#allocation2 + $0x20] sm:$0xff] %v3506
      %3511 = vst [vmem:[#allocation2 + $0x40] sm:$0xff] %v3507
      %3512 = vst [vmem:[#allocation2 + $0x60] sm:$0xff] %v3508
      %3513 = vset.pattern.permute.xlu0 4
      %3514 = vperm.xlu0 %3513, %v3361
      %v3515 = vpop.permute.xlu0 %3514
      %3517 = vset.pattern.permute.xlu0 4
      %3518 = vperm.xlu0 %3517, %v3362
      %v3519 = vpop.permute.xlu0 %3518
      %3521 = vset.pattern.permute.xlu0 4
      %3522 = vperm.xlu0 %3521, %v3363
      %v3523 = vpop.permute.xlu0 %3522
      %3525 = vset.pattern.permute.xlu0 4
      %3526 = vperm.xlu0 %3525, %v3364
      %v3527 = vpop.permute.xlu0 %3526
      %v3529 = vmul.f32 %v3515, %v2775
      %v3530 = vmul.f32 %v3519, %v2776
      %v3531 = vmul.f32 %v3523, %v2777
      %v3532 = vmul.f32 %v3527, %v2778
      %3533 = vset.pattern.permute.xlu0 5
      %3534 = vperm.xlu0 %3533, %v3361
      %v3535 = vpop.permute.xlu0 %3534
      %3537 = vset.pattern.permute.xlu0 5
      %3538 = vperm.xlu0 %3537, %v3362
      %v3539 = vpop.permute.xlu0 %3538
      %3541 = vset.pattern.permute.xlu0 5
      %3542 = vperm.xlu0 %3541, %v3363
      %v3543 = vpop.permute.xlu0 %3542
      %3545 = vset.pattern.permute.xlu0 5
      %3546 = vperm.xlu0 %3545, %v3364
      %v3547 = vpop.permute.xlu0 %3546
      %v3549 = vmul.f32 %v3535, %v2775
      %v3550 = vmul.f32 %v3539, %v2776
      %v3551 = vmul.f32 %v3543, %v2777
      %v3552 = vmul.f32 %v3547, %v2778
      %3553 = vset.pattern.permute.xlu0 6
      %3554 = vperm.xlu0 %3553, %v3361
      %v3555 = vpop.permute.xlu0 %3554
      %3557 = vset.pattern.permute.xlu0 6
      %3558 = vperm.xlu0 %3557, %v3362
      %v3559 = vpop.permute.xlu0 %3558
      %3561 = vset.pattern.permute.xlu0 6
      %3562 = vperm.xlu0 %3561, %v3363
      %v3563 = vpop.permute.xlu0 %3562
      %3565 = vset.pattern.permute.xlu0 6
      %3566 = vperm.xlu0 %3565, %v3364
      %v3567 = vpop.permute.xlu0 %3566
      %v3569 = vmul.f32 %v3555, %v2775
      %v3570 = vmul.f32 %v3559, %v2776
      %v3571 = vmul.f32 %v3563, %v2777
      %v3572 = vmul.f32 %v3567, %v2778
      %3573 = vset.pattern.permute.xlu0 7
      %3574 = vperm.xlu0 %3573, %v3361
      %v3575 = vpop.permute.xlu0 %3574
      %3577 = vset.pattern.permute.xlu0 7
      %3578 = vperm.xlu0 %3577, %v3362
      %v3579 = vpop.permute.xlu0 %3578
      %3581 = vset.pattern.permute.xlu0 7
      %3582 = vperm.xlu0 %3581, %v3363
      %v3583 = vpop.permute.xlu0 %3582
      %3585 = vset.pattern.permute.xlu0 7
      %3586 = vperm.xlu0 %3585, %v3364
      %v3587 = vpop.permute.xlu0 %3586
      %v3589 = vmul.f32 %v3575, %v2775
      %v3590 = vmul.f32 %v3579, %v2776
      %v3591 = vmul.f32 %v3583, %v2777
      %v3592 = vmul.f32 %v3587, %v2778
      %3597 = vrot.lane.b32.xlu0 %v3549, 32
      %v3598 = vpop.permute.xlu0 %3597
      %3599 = vrot.lane.b32.xlu0 %v3550, 32
      %v3600 = vpop.permute.xlu0 %3599
      %3601 = vrot.lane.b32.xlu0 %v3551, 32
      %v3602 = vpop.permute.xlu0 %3601
      %3603 = vrot.lane.b32.xlu0 %v3552, 32
      %v3604 = vpop.permute.xlu0 %3603
      %3613 = vrot.lane.b32.xlu0 %v3569, 64
      %v3614 = vpop.permute.xlu0 %3613
      %3615 = vrot.lane.b32.xlu0 %v3570, 64
      %v3616 = vpop.permute.xlu0 %3615
      %3617 = vrot.lane.b32.xlu0 %v3571, 64
      %v3618 = vpop.permute.xlu0 %3617
      %3619 = vrot.lane.b32.xlu0 %v3572, 64
      %v3620 = vpop.permute.xlu0 %3619
      %3629 = vrot.lane.b32.xlu0 %v3589, 96
      %v3630 = vpop.permute.xlu0 %3629
      %3631 = vrot.lane.b32.xlu0 %v3590, 96
      %v3632 = vpop.permute.xlu0 %3631
      %3633 = vrot.lane.b32.xlu0 %v3591, 96
      %v3634 = vpop.permute.xlu0 %3633
      %3635 = vrot.lane.b32.xlu0 %v3592, 96
      %v3636 = vpop.permute.xlu0 %3635
      %v3641 = vsel %vm641, %v3529, %v3598
      %v3642 = vsel %vm641, %v3530, %v3600
      %v3643 = vsel %vm641, %v3531, %v3602
      %v3644 = vsel %vm641, %v3532, %v3604
      %v3645 = vsel %vm651, %v3641, %v3614
      %v3646 = vsel %vm651, %v3642, %v3616
      %v3647 = vsel %vm651, %v3643, %v3618
      %v3648 = vsel %vm651, %v3644, %v3620
      %v3649 = vsel %vm661, %v3645, %v3630
      %v3650 = vsel %vm661, %v3646, %v3632
      %v3651 = vsel %vm661, %v3647, %v3634
      %v3652 = vsel %vm661, %v3648, %v3636
      %3653 = vst [vmem:[#allocation2 + $0x8] sm:$0xff] %v3649
      %3654 = vst [vmem:[#allocation2 + $0x28] sm:$0xff] %v3650
      %3655 = vst [vmem:[#allocation2 + $0x48] sm:$0xff] %v3651
      %3656 = vst [vmem:[#allocation2 + $0x68] sm:$0xff] %v3652
      %3657 = vset.pattern.permute.xlu0 8
      %3658 = vperm.xlu0 %3657, %v3361
      %v3659 = vpop.permute.xlu0 %3658
      %3661 = vset.pattern.permute.xlu0 8
      %3662 = vperm.xlu0 %3661, %v3362
      %v3663 = vpop.permute.xlu0 %3662
      %3665 = vset.pattern.permute.xlu0 8
      %3666 = vperm.xlu0 %3665, %v3363
      %v3667 = vpop.permute.xlu0 %3666
      %3669 = vset.pattern.permute.xlu0 8
      %3670 = vperm.xlu0 %3669, %v3364
      %v3671 = vpop.permute.xlu0 %3670
      %v3673 = vmul.f32 %v3659, %v2775
      %v3674 = vmul.f32 %v3663, %v2776
      %v3675 = vmul.f32 %v3667, %v2777
      %v3676 = vmul.f32 %v3671, %v2778
      %3677 = vset.pattern.permute.xlu0 9
      %3678 = vperm.xlu0 %3677, %v3361
      %v3679 = vpop.permute.xlu0 %3678
      %3681 = vset.pattern.permute.xlu0 9
      %3682 = vperm.xlu0 %3681, %v3362
      %v3683 = vpop.permute.xlu0 %3682
      %3685 = vset.pattern.permute.xlu0 9
      %3686 = vperm.xlu0 %3685, %v3363
      %v3687 = vpop.permute.xlu0 %3686
      %3689 = vset.pattern.permute.xlu0 9
      %3690 = vperm.xlu0 %3689, %v3364
      %v3691 = vpop.permute.xlu0 %3690
      %v3693 = vmul.f32 %v3679, %v2775
      %v3694 = vmul.f32 %v3683, %v2776
      %v3695 = vmul.f32 %v3687, %v2777
      %v3696 = vmul.f32 %v3691, %v2778
      %3697 = vset.pattern.permute.xlu0 10
      %3698 = vperm.xlu0 %3697, %v3361
      %v3699 = vpop.permute.xlu0 %3698
      %3701 = vset.pattern.permute.xlu0 10
      %3702 = vperm.xlu0 %3701, %v3362
      %v3703 = vpop.permute.xlu0 %3702
      %3705 = vset.pattern.permute.xlu0 10
      %3706 = vperm.xlu0 %3705, %v3363
      %v3707 = vpop.permute.xlu0 %3706
      %3709 = vset.pattern.permute.xlu0 10
      %3710 = vperm.xlu0 %3709, %v3364
      %v3711 = vpop.permute.xlu0 %3710
      %v3713 = vmul.f32 %v3699, %v2775
      %v3714 = vmul.f32 %v3703, %v2776
      %v3715 = vmul.f32 %v3707, %v2777
      %v3716 = vmul.f32 %v3711, %v2778
      %3717 = vset.pattern.permute.xlu0 11
      %3718 = vperm.xlu0 %3717, %v3361
      %v3719 = vpop.permute.xlu0 %3718
      %3721 = vset.pattern.permute.xlu0 11
      %3722 = vperm.xlu0 %3721, %v3362
      %v3723 = vpop.permute.xlu0 %3722
      %3725 = vset.pattern.permute.xlu0 11
      %3726 = vperm.xlu0 %3725, %v3363
      %v3727 = vpop.permute.xlu0 %3726
      %3729 = vset.pattern.permute.xlu0 11
      %3730 = vperm.xlu0 %3729, %v3364
      %v3731 = vpop.permute.xlu0 %3730
      %v3733 = vmul.f32 %v3719, %v2775
      %v3734 = vmul.f32 %v3723, %v2776
      %v3735 = vmul.f32 %v3727, %v2777
      %v3736 = vmul.f32 %v3731, %v2778
      %3741 = vrot.lane.b32.xlu0 %v3693, 32
      %v3742 = vpop.permute.xlu0 %3741
      %3743 = vrot.lane.b32.xlu0 %v3694, 32
      %v3744 = vpop.permute.xlu0 %3743
      %3745 = vrot.lane.b32.xlu0 %v3695, 32
      %v3746 = vpop.permute.xlu0 %3745
      %3747 = vrot.lane.b32.xlu0 %v3696, 32
      %v3748 = vpop.permute.xlu0 %3747
      %3757 = vrot.lane.b32.xlu0 %v3713, 64
      %v3758 = vpop.permute.xlu0 %3757
      %3759 = vrot.lane.b32.xlu0 %v3714, 64
      %v3760 = vpop.permute.xlu0 %3759
      %3761 = vrot.lane.b32.xlu0 %v3715, 64
      %v3762 = vpop.permute.xlu0 %3761
      %3763 = vrot.lane.b32.xlu0 %v3716, 64
      %v3764 = vpop.permute.xlu0 %3763
      %3773 = vrot.lane.b32.xlu0 %v3733, 96
      %v3774 = vpop.permute.xlu0 %3773
      %3775 = vrot.lane.b32.xlu0 %v3734, 96
      %v3776 = vpop.permute.xlu0 %3775
      %3777 = vrot.lane.b32.xlu0 %v3735, 96
      %v3778 = vpop.permute.xlu0 %3777
      %3779 = vrot.lane.b32.xlu0 %v3736, 96
      %v3780 = vpop.permute.xlu0 %3779
      %v3785 = vsel %vm641, %v3673, %v3742
      %v3786 = vsel %vm641, %v3674, %v3744
      %v3787 = vsel %vm641, %v3675, %v3746
      %v3788 = vsel %vm641, %v3676, %v3748
      %v3789 = vsel %vm651, %v3785, %v3758
      %v3790 = vsel %vm651, %v3786, %v3760
      %v3791 = vsel %vm651, %v3787, %v3762
      %v3792 = vsel %vm651, %v3788, %v3764
      %v3793 = vsel %vm661, %v3789, %v3774
      %v3794 = vsel %vm661, %v3790, %v3776
      %v3795 = vsel %vm661, %v3791, %v3778
      %v3796 = vsel %vm661, %v3792, %v3780
      %3797 = vst [vmem:[#allocation2 + $0x10] sm:$0xff] %v3793
      %3798 = vst [vmem:[#allocation2 + $0x30] sm:$0xff] %v3794
      %3799 = vst [vmem:[#allocation2 + $0x50] sm:$0xff] %v3795
      %3800 = vst [vmem:[#allocation2 + $0x70] sm:$0xff] %v3796
      %3801 = vset.pattern.permute.xlu0 12
      %3802 = vperm.xlu0 %3801, %v3361
      %v3803 = vpop.permute.xlu0 %3802
      %3805 = vset.pattern.permute.xlu0 12
      %3806 = vperm.xlu0 %3805, %v3362
      %v3807 = vpop.permute.xlu0 %3806
      %3809 = vset.pattern.permute.xlu0 12
      %3810 = vperm.xlu0 %3809, %v3363
      %v3811 = vpop.permute.xlu0 %3810
      %3813 = vset.pattern.permute.xlu0 12
      %3814 = vperm.xlu0 %3813, %v3364
      %v3815 = vpop.permute.xlu0 %3814
      %v3817 = vmul.f32 %v3803, %v2775
      %v3818 = vmul.f32 %v3807, %v2776
      %v3819 = vmul.f32 %v3811, %v2777
      %v3820 = vmul.f32 %v3815, %v2778
      %3821 = vset.pattern.permute.xlu0 13
      %3822 = vperm.xlu0 %3821, %v3361
      %v3823 = vpop.permute.xlu0 %3822
      %3825 = vset.pattern.permute.xlu0 13
      %3826 = vperm.xlu0 %3825, %v3362
      %v3827 = vpop.permute.xlu0 %3826
      %3829 = vset.pattern.permute.xlu0 13
      %3830 = vperm.xlu0 %3829, %v3363
      %v3831 = vpop.permute.xlu0 %3830
      %3833 = vset.pattern.permute.xlu0 13
      %3834 = vperm.xlu0 %3833, %v3364
      %v3835 = vpop.permute.xlu0 %3834
      %v3837 = vmul.f32 %v3823, %v2775
      %v3838 = vmul.f32 %v3827, %v2776
      %v3839 = vmul.f32 %v3831, %v2777
      %v3840 = vmul.f32 %v3835, %v2778
      %3841 = vset.pattern.permute.xlu0 14
      %3842 = vperm.xlu0 %3841, %v3361
      %v3843 = vpop.permute.xlu0 %3842
      %3845 = vset.pattern.permute.xlu0 14
      %3846 = vperm.xlu0 %3845, %v3362
      %v3847 = vpop.permute.xlu0 %3846
      %3849 = vset.pattern.permute.xlu0 14
      %3850 = vperm.xlu0 %3849, %v3363
      %v3851 = vpop.permute.xlu0 %3850
      %3853 = vset.pattern.permute.xlu0 14
      %3854 = vperm.xlu0 %3853, %v3364
      %v3855 = vpop.permute.xlu0 %3854
      %v3857 = vmul.f32 %v3843, %v2775
      %v3858 = vmul.f32 %v3847, %v2776
      %v3859 = vmul.f32 %v3851, %v2777
      %v3860 = vmul.f32 %v3855, %v2778
      %3861 = vset.pattern.permute.xlu0 15
      %3862 = vperm.xlu0 %3861, %v3361
      %v3863 = vpop.permute.xlu0 %3862
      %3865 = vset.pattern.permute.xlu0 15
      %3866 = vperm.xlu0 %3865, %v3362
      %v3867 = vpop.permute.xlu0 %3866
      %3869 = vset.pattern.permute.xlu0 15
      %3870 = vperm.xlu0 %3869, %v3363
      %v3871 = vpop.permute.xlu0 %3870
      %3873 = vset.pattern.permute.xlu0 15
      %3874 = vperm.xlu0 %3873, %v3364
      %v3875 = vpop.permute.xlu0 %3874
      %v3877 = vmul.f32 %v3863, %v2775
      %v3878 = vmul.f32 %v3867, %v2776
      %v3879 = vmul.f32 %v3871, %v2777
      %v3880 = vmul.f32 %v3875, %v2778
      %3885 = vrot.lane.b32.xlu0 %v3837, 32
      %v3886 = vpop.permute.xlu0 %3885
      %3887 = vrot.lane.b32.xlu0 %v3838, 32
      %v3888 = vpop.permute.xlu0 %3887
      %3889 = vrot.lane.b32.xlu0 %v3839, 32
      %v3890 = vpop.permute.xlu0 %3889
      %3891 = vrot.lane.b32.xlu0 %v3840, 32
      %v3892 = vpop.permute.xlu0 %3891
      %3901 = vrot.lane.b32.xlu0 %v3857, 64
      %v3902 = vpop.permute.xlu0 %3901
      %3903 = vrot.lane.b32.xlu0 %v3858, 64
      %v3904 = vpop.permute.xlu0 %3903
      %3905 = vrot.lane.b32.xlu0 %v3859, 64
      %v3906 = vpop.permute.xlu0 %3905
      %3907 = vrot.lane.b32.xlu0 %v3860, 64
      %v3908 = vpop.permute.xlu0 %3907
      %3917 = vrot.lane.b32.xlu0 %v3877, 96
      %v3918 = vpop.permute.xlu0 %3917
      %3919 = vrot.lane.b32.xlu0 %v3878, 96
      %v3920 = vpop.permute.xlu0 %3919
      %3921 = vrot.lane.b32.xlu0 %v3879, 96
      %v3922 = vpop.permute.xlu0 %3921
      %3923 = vrot.lane.b32.xlu0 %v3880, 96
      %v3924 = vpop.permute.xlu0 %3923
      %v3929 = vsel %vm641, %v3817, %v3886
      %v3930 = vsel %vm641, %v3818, %v3888
      %v3931 = vsel %vm641, %v3819, %v3890
      %v3932 = vsel %vm641, %v3820, %v3892
      %v3933 = vsel %vm651, %v3929, %v3902
      %v3934 = vsel %vm651, %v3930, %v3904
      %v3935 = vsel %vm651, %v3931, %v3906
      %v3936 = vsel %vm651, %v3932, %v3908
      %v3937 = vsel %vm661, %v3933, %v3918
      %v3938 = vsel %vm661, %v3934, %v3920
      %v3939 = vsel %vm661, %v3935, %v3922
      %v3940 = vsel %vm661, %v3936, %v3924
      %3941 = vst [vmem:[#allocation2 + $0x18] sm:$0xff] %v3937
      %3942 = vst [vmem:[#allocation2 + $0x38] sm:$0xff] %v3938
      %3943 = vst [vmem:[#allocation2 + $0x58] sm:$0xff] %v3939
      %3944 = vst [vmem:[#allocation2 + $0x78] sm:$0xff] %v3940
      %v3945 = vld [vmem:[#allocation2] sm:$0xff]
      %v3946 = vld [vmem:[#allocation2 + $0x8] sm:$0xff]
      %v3947 = vld [vmem:[#allocation2 + $0x10] sm:$0xff]
      %v3948 = vld [vmem:[#allocation2 + $0x18] sm:$0xff]
      %v3949 = vld [vmem:[#allocation2 + $0x20] sm:$0xff]
      %v3950 = vld [vmem:[#allocation2 + $0x28] sm:$0xff]
      %v3951 = vld [vmem:[#allocation2 + $0x30] sm:$0xff]
      %v3952 = vld [vmem:[#allocation2 + $0x38] sm:$0xff]
      %v3953 = vld [vmem:[#allocation2 + $0x40] sm:$0xff]
      %v3954 = vld [vmem:[#allocation2 + $0x48] sm:$0xff]
      %v3955 = vld [vmem:[#allocation2 + $0x50] sm:$0xff]
      %v3956 = vld [vmem:[#allocation2 + $0x58] sm:$0xff]
      %v3957 = vld [vmem:[#allocation2 + $0x60] sm:$0xff]
      %v3958 = vld [vmem:[#allocation2 + $0x68] sm:$0xff]
      %v3959 = vld [vmem:[#allocation2 + $0x70] sm:$0xff]
      %v3960 = vld [vmem:[#allocation2 + $0x78] sm:$0xff]
      %v3961 = vld [vmem:[%s4] sm:$0xff]
      %v3962 = vld [vmem:[%s4 + $0x8] sm:$0xff]
      %v3963 = vld [vmem:[%s4 + $0x10] sm:$0xff]
      %v3964 = vld [vmem:[%s4 + $0x18] sm:$0xff]
      %v3965 = vld [vmem:[%s4 + $0x20] sm:$0xff]
      %v3966 = vld [vmem:[%s4 + $0x28] sm:$0xff]
      %v3967 = vld [vmem:[%s4 + $0x30] sm:$0xff]
      %v3968 = vld [vmem:[%s4 + $0x38] sm:$0xff]
      %v3969 = vld [vmem:[%s4 + $0x40] sm:$0xff]
      %v3970 = vld [vmem:[%s4 + $0x48] sm:$0xff]
      %v3971 = vld [vmem:[%s4 + $0x50] sm:$0xff]
      %v3972 = vld [vmem:[%s4 + $0x58] sm:$0xff]
      %v3973 = vld [vmem:[%s4 + $0x60] sm:$0xff]
      %v3974 = vld [vmem:[%s4 + $0x68] sm:$0xff]
      %v3975 = vld [vmem:[%s4 + $0x70] sm:$0xff]
      %v3976 = vld [vmem:[%s4 + $0x78] sm:$0xff]
      %v3977 = vld [vmem:[%s4 + $0x80] sm:$0xff]
      %v3978 = vld [vmem:[%s4 + $0x88] sm:$0xff]
      %v3979 = vld [vmem:[%s4 + $0x90] sm:$0xff]
      %v3980 = vld [vmem:[%s4 + $0x98] sm:$0xff]
      %v3981 = vld [vmem:[%s4 + $0xa0] sm:$0xff]
      %v3982 = vld [vmem:[%s4 + $0xa8] sm:$0xff]
      %v3983 = vld [vmem:[%s4 + $0xb0] sm:$0xff]
      %v3984 = vld [vmem:[%s4 + $0xb8] sm:$0xff]
      %v3985 = vld [vmem:[%s4 + $0xc0] sm:$0xff]
      %v3986 = vld [vmem:[%s4 + $0xc8] sm:$0xff]
      %v3987 = vld [vmem:[%s4 + $0xd0] sm:$0xff]
      %v3988 = vld [vmem:[%s4 + $0xd8] sm:$0xff]
      %v3989 = vld [vmem:[%s4 + $0xe0] sm:$0xff]
      %v3990 = vld [vmem:[%s4 + $0xe8] sm:$0xff]
      %v3991 = vld [vmem:[%s4 + $0xf0] sm:$0xff]
      %v3992 = vld [vmem:[%s4 + $0xf8] sm:$0xff]
      %v3993 = vld [vmem:[%s4 + $0x100] sm:$0xff]
      %v3994 = vld [vmem:[%s4 + $0x108] sm:$0xff]
      %v3995 = vld [vmem:[%s4 + $0x110] sm:$0xff]
      %v3996 = vld [vmem:[%s4 + $0x118] sm:$0xff]
      %v3997 = vld [vmem:[%s4 + $0x120] sm:$0xff]
      %v3998 = vld [vmem:[%s4 + $0x128] sm:$0xff]
      %v3999 = vld [vmem:[%s4 + $0x130] sm:$0xff]
      %v4000 = vld [vmem:[%s4 + $0x138] sm:$0xff]
      %v4001 = vld [vmem:[%s4 + $0x140] sm:$0xff]
      %v4002 = vld [vmem:[%s4 + $0x148] sm:$0xff]
      %v4003 = vld [vmem:[%s4 + $0x150] sm:$0xff]
      %v4004 = vld [vmem:[%s4 + $0x158] sm:$0xff]
      %v4005 = vld [vmem:[%s4 + $0x160] sm:$0xff]
      %v4006 = vld [vmem:[%s4 + $0x168] sm:$0xff]
      %v4007 = vld [vmem:[%s4 + $0x170] sm:$0xff]
      %v4008 = vld [vmem:[%s4 + $0x178] sm:$0xff]
      %v4009 = vld [vmem:[%s4 + $0x180] sm:$0xff]
      %v4010 = vld [vmem:[%s4 + $0x188] sm:$0xff]
      %v4011 = vld [vmem:[%s4 + $0x190] sm:$0xff]
      %v4012 = vld [vmem:[%s4 + $0x198] sm:$0xff]
      %v4013 = vld [vmem:[%s4 + $0x1a0] sm:$0xff]
      %v4014 = vld [vmem:[%s4 + $0x1a8] sm:$0xff]
      %v4015 = vld [vmem:[%s4 + $0x1b0] sm:$0xff]
      %v4016 = vld [vmem:[%s4 + $0x1b8] sm:$0xff]
      %v4017 = vld [vmem:[%s4 + $0x1c0] sm:$0xff]
      %v4018 = vld [vmem:[%s4 + $0x1c8] sm:$0xff]
      %v4019 = vld [vmem:[%s4 + $0x1d0] sm:$0xff]
      %v4020 = vld [vmem:[%s4 + $0x1d8] sm:$0xff]
      %v4021 = vld [vmem:[%s4 + $0x1e0] sm:$0xff]
      %v4022 = vld [vmem:[%s4 + $0x1e8] sm:$0xff]
      %v4023 = vld [vmem:[%s4 + $0x1f0] sm:$0xff]
      %v4024 = vld [vmem:[%s4 + $0x1f8] sm:$0xff]
      %4025 = vmatprep.subr.mxu0 0.0
      %4026 = vmatpush1.msra.mxu0 %v3976
      %4027 = vmatprep.subr.mxu0 0.0
      %4028 = vmatpush1.msra.mxu0 %v3975
      %4029 = vmatprep.subr.mxu0 0.0
      %4030 = vmatpush1.msra.mxu0 %v3974
      %4031 = vmatprep.subr.mxu0 0.0
      %4032 = vmatpush1.msra.mxu0 %v3973
      %4033 = vmatprep.subr.mxu0 0.0
      %4034 = vmatpush1.msra.mxu0 %v3972
      %4035 = vmatprep.subr.mxu0 0.0
      %4036 = vmatpush1.msra.mxu0 %v3971
      %4037 = vmatprep.subr.mxu0 0.0
      %4038 = vmatpush1.msra.mxu0 %v3970
      %4039 = vmatprep.subr.mxu0 0.0
      %4040 = vmatpush1.msra.mxu0 %v3969
      %4041 = vmatprep.subr.mxu0 0.0
      %4042 = vmatpush1.msra.mxu0 %v3968
      %4043 = vmatprep.subr.mxu0 0.0
      %4044 = vmatpush1.msra.mxu0 %v3967
      %4045 = vmatprep.subr.mxu0 0.0
      %4046 = vmatpush1.msra.mxu0 %v3966
      %4047 = vmatprep.subr.mxu0 0.0
      %4048 = vmatpush1.msra.mxu0 %v3965
      %4049 = vmatprep.subr.mxu0 0.0
      %4050 = vmatpush1.msra.mxu0 %v3964
      %4051 = vmatprep.subr.mxu0 0.0
      %4052 = vmatpush1.msra.mxu0 %v3963
      %4053 = vmatprep.subr.mxu0 0.0
      %4054 = vmatpush1.msra.mxu0 %v3962
      %4055 = vmatprep.subr.mxu0 0.0
      %4056 = vmatpush1.msra.mxu0 %v3961
      %4057 = vmatprep.subr.mxu0 0.0
      %4058 = vmatpush2.msra.mxu0 %v3992
      %4059 = vmatprep.subr.mxu0 0.0
      %4060 = vmatpush2.msra.mxu0 %v3991
      %4061 = vmatprep.subr.mxu0 0.0
      %4062 = vmatpush2.msra.mxu0 %v3990
      %4063 = vmatprep.subr.mxu0 0.0
      %4064 = vmatpush2.msra.mxu0 %v3989
      %4065 = vmatprep.subr.mxu0 0.0
      %4066 = vmatpush2.msra.mxu0 %v3988
      %4067 = vmatprep.subr.mxu0 0.0
      %4068 = vmatpush2.msra.mxu0 %v3987
      %4069 = vmatprep.subr.mxu0 0.0
      %4070 = vmatpush2.msra.mxu0 %v3986
      %4071 = vmatprep.subr.mxu0 0.0
      %4072 = vmatpush2.msra.mxu0 %v3985
      %4073 = vmatprep.subr.mxu0 0.0
      %4074 = vmatpush2.msra.mxu0 %v3984
      %4075 = vmatprep.subr.mxu0 0.0
      %4076 = vmatpush2.msra.mxu0 %v3983
      %4077 = vmatprep.subr.mxu0 0.0
      %4078 = vmatpush2.msra.mxu0 %v3982
      %4079 = vmatprep.subr.mxu0 0.0
      %4080 = vmatpush2.msra.mxu0 %v3981
      %4081 = vmatprep.subr.mxu0 0.0
      %4082 = vmatpush2.msra.mxu0 %v3980
      %4083 = vmatprep.subr.mxu0 0.0
      %4084 = vmatpush2.msra.mxu0 %v3979
      %4085 = vmatprep.subr.mxu0 0.0
      %4086 = vmatpush2.msra.mxu0 %v3978
      %4087 = vmatprep.subr.mxu0 0.0
      %4088 = vmatpush2.msra.mxu0 %v3977
      %4089 = vmatprep.mubr.f32.mxu0 %v3946
      %4090 = vmatmul.mubr.f32.gmra.mxu0 %v3945
      %v4091 = vpop.f32.mrf.mxu0
      %v4092 = vadd.f32 %v344, %v4091
      %v4093 = vpop.f32.mrf.mxu0
      %4094 = vmatprep.mubr.f32.mxu0 %v3950
      %4095 = vmatmul.mubr.f32.gmra.mxu0 %v3949
      %v4096 = vpop.f32.mrf.mxu0
      %v4097 = vadd.f32 %v344, %v4096
      %v4098 = vpop.f32.mrf.mxu0
      %4099 = vmatprep.mubr.f32.mxu0 %v3954
      %4100 = vmatmul.mubr.f32.gmra.mxu0 %v3953
      %v4101 = vpop.f32.mrf.mxu0
      %v4102 = vadd.f32 %v344, %v4101
      %v4103 = vpop.f32.mrf.mxu0
      %4104 = vmatprep.mubr.f32.mxu0 %v3958
      %4105 = vmatmul.mubr.f32.gmra.mxu0 %v3957
      %v4106 = vpop.f32.mrf.mxu0
      %v4107 = vadd.f32 %v344, %v4106
      %v4108 = vpop.f32.mrf.mxu0
      %4109 = vdwg.mxu0
      %4110 = vmatprep.subr.mxu0 0.0
      %4111 = vmatpush1.msra.mxu0 %v4008
      %4112 = vmatprep.subr.mxu0 0.0
      %4113 = vmatpush1.msra.mxu0 %v4007
      %4114 = vmatprep.subr.mxu0 0.0
      %4115 = vmatpush1.msra.mxu0 %v4006
      %4116 = vmatprep.subr.mxu0 0.0
      %4117 = vmatpush1.msra.mxu0 %v4005
      %4118 = vmatprep.subr.mxu0 0.0
      %4119 = vmatpush1.msra.mxu0 %v4004
      %4120 = vmatprep.subr.mxu0 0.0
      %4121 = vmatpush1.msra.mxu0 %v4003
      %4122 = vmatprep.subr.mxu0 0.0
      %4123 = vmatpush1.msra.mxu0 %v4002
      %4124 = vmatprep.subr.mxu0 0.0
      %4125 = vmatpush1.msra.mxu0 %v4001
      %4126 = vmatprep.subr.mxu0 0.0
      %4127 = vmatpush1.msra.mxu0 %v4000
      %4128 = vmatprep.subr.mxu0 0.0
      %4129 = vmatpush1.msra.mxu0 %v3999
      %4130 = vmatprep.subr.mxu0 0.0
      %4131 = vmatpush1.msra.mxu0 %v3998
      %4132 = vmatprep.subr.mxu0 0.0
      %4133 = vmatpush1.msra.mxu0 %v3997
      %4134 = vmatprep.subr.mxu0 0.0
      %4135 = vmatpush1.msra.mxu0 %v3996
      %4136 = vmatprep.subr.mxu0 0.0
      %4137 = vmatpush1.msra.mxu0 %v3995
      %4138 = vmatprep.subr.mxu0 0.0
      %4139 = vmatpush1.msra.mxu0 %v3994
      %4140 = vmatprep.subr.mxu0 0.0
      %4141 = vmatpush1.msra.mxu0 %v3993
      %4142 = vmatprep.subr.mxu0 0.0
      %4143 = vmatpush2.msra.mxu0 %v4024
      %4144 = vmatprep.subr.mxu0 0.0
      %4145 = vmatpush2.msra.mxu0 %v4023
      %4146 = vmatprep.subr.mxu0 0.0
      %4147 = vmatpush2.msra.mxu0 %v4022
      %4148 = vmatprep.subr.mxu0 0.0
      %4149 = vmatpush2.msra.mxu0 %v4021
      %4150 = vmatprep.subr.mxu0 0.0
      %4151 = vmatpush2.msra.mxu0 %v4020
      %4152 = vmatprep.subr.mxu0 0.0
      %4153 = vmatpush2.msra.mxu0 %v4019
      %4154 = vmatprep.subr.mxu0 0.0
      %4155 = vmatpush2.msra.mxu0 %v4018
      %4156 = vmatprep.subr.mxu0 0.0
      %4157 = vmatpush2.msra.mxu0 %v4017
      %4158 = vmatprep.subr.mxu0 0.0
      %4159 = vmatpush2.msra.mxu0 %v4016
      %4160 = vmatprep.subr.mxu0 0.0
      %4161 = vmatpush2.msra.mxu0 %v4015
      %4162 = vmatprep.subr.mxu0 0.0
      %4163 = vmatpush2.msra.mxu0 %v4014
      %4164 = vmatprep.subr.mxu0 0.0
      %4165 = vmatpush2.msra.mxu0 %v4013
      %4166 = vmatprep.subr.mxu0 0.0
      %4167 = vmatpush2.msra.mxu0 %v4012
      %4168 = vmatprep.subr.mxu0 0.0
      %4169 = vmatpush2.msra.mxu0 %v4011
      %4170 = vmatprep.subr.mxu0 0.0
      %4171 = vmatpush2.msra.mxu0 %v4010
      %4172 = vmatprep.subr.mxu0 0.0
      %4173 = vmatpush2.msra.mxu0 %v4009
      %4174 = vmatprep.mubr.f32.mxu0 %v3948
      %4175 = vmatmul.mubr.f32.gmra.mxu0 %v3947
      %v4176 = vpop.f32.mrf.mxu0
      %v4177 = vadd.f32 %v4092, %v4176
      %v4178 = vpop.f32.mrf.mxu0
      %4179 = vmatprep.mubr.f32.mxu0 %v3952
      %4180 = vmatmul.mubr.f32.gmra.mxu0 %v3951
      %v4181 = vpop.f32.mrf.mxu0
      %v4182 = vadd.f32 %v4097, %v4181
      %v4183 = vpop.f32.mrf.mxu0
      %4184 = vmatprep.mubr.f32.mxu0 %v3956
      %4185 = vmatmul.mubr.f32.gmra.mxu0 %v3955
      %v4186 = vpop.f32.mrf.mxu0
      %v4187 = vadd.f32 %v4102, %v4186
      %v4188 = vpop.f32.mrf.mxu0
      %4189 = vmatprep.mubr.f32.mxu0 %v3960
      %4190 = vmatmul.mubr.f32.gmra.mxu0 %v3959
      %v4191 = vpop.f32.mrf.mxu0
      %v4192 = vadd.f32 %v4107, %v4191
      %v4193 = vpop.f32.mrf.mxu0
      %4194 = vdwg.mxu0
      %v4195 = vmul.f32 %v4177, 0.5
      %v4196 = vmul.f32 %v4182, 0.5
      %v4197 = vmul.f32 %v4187, 0.5
      %v4198 = vmul.f32 %v4192, 0.5
      %v4199 = vtanh.pop %v4195
      %v4200 = vtanh.pop %v4196
      %v4201 = vtanh.pop %v4197
      %v4202 = vtanh.pop %v4198
      %v4203 = vmul.f32 %v4199, 0.5
      %v4204 = vmul.f32 %v4200, 0.5
      %v4205 = vmul.f32 %v4201, 0.5
      %v4206 = vmul.f32 %v4202, 0.5
      %v4207 = vadd.f32 %v4203, 0.5
      %v4208 = vadd.f32 %v4204, 0.5
      %v4209 = vadd.f32 %v4205, 0.5
      %v4210 = vadd.f32 %v4206, 0.5
      %v4211 = vmul.f32 %v363, %v3361
      %v4212 = vmul.f32 %v368, %v3362
      %v4213 = vmul.f32 %v373, %v3363
      %v4214 = vmul.f32 %v378, %v3364
      %v4215 = vmul.f32 %v386, %v3361
      %v4216 = vmul.f32 %v390, %v3362
      %v4217 = vmul.f32 %v394, %v3363
      %v4218 = vmul.f32 %v398, %v3364
      %v4219 = vmul.f32 %v406, %v3361
      %v4220 = vmul.f32 %v410, %v3362
      %v4221 = vmul.f32 %v414, %v3363
      %v4222 = vmul.f32 %v418, %v3364
      %v4223 = vmul.f32 %v426, %v3361
      %v4224 = vmul.f32 %v430, %v3362
      %v4225 = vmul.f32 %v434, %v3363
      %v4226 = vmul.f32 %v438, %v3364
      %v4227 = vmul.f32 %v446, %v3361
      %v4228 = vmul.f32 %v450, %v3362
      %v4229 = vmul.f32 %v454, %v3363
      %v4230 = vmul.f32 %v458, %v3364
      %v4231 = vmul.f32 %v466, %v3361
      %v4232 = vmul.f32 %v470, %v3362
      %v4233 = vmul.f32 %v474, %v3363
      %v4234 = vmul.f32 %v478, %v3364
      %v4235 = vmul.f32 %v486, %v3361
      %v4236 = vmul.f32 %v490, %v3362
      %v4237 = vmul.f32 %v494, %v3363
      %v4238 = vmul.f32 %v498, %v3364
      %v4239 = vmul.f32 %v506, %v3361
      %v4240 = vmul.f32 %v510, %v3362
      %v4241 = vmul.f32 %v514, %v3363
      %v4242 = vmul.f32 %v518, %v3364
      %4247 = vrot.lane.b32.xlu0 %v4215, 16
      %v4248 = vpop.permute.xlu0 %4247
      %4249 = vrot.lane.b32.xlu0 %v4216, 16
      %v4250 = vpop.permute.xlu0 %4249
      %4251 = vrot.lane.b32.xlu0 %v4217, 16
      %v4252 = vpop.permute.xlu0 %4251
      %4253 = vrot.lane.b32.xlu0 %v4218, 16
      %v4254 = vpop.permute.xlu0 %4253
      %4263 = vrot.lane.b32.xlu0 %v4219, 32
      %v4264 = vpop.permute.xlu0 %4263
      %4265 = vrot.lane.b32.xlu0 %v4220, 32
      %v4266 = vpop.permute.xlu0 %4265
      %4267 = vrot.lane.b32.xlu0 %v4221, 32
      %v4268 = vpop.permute.xlu0 %4267
      %4269 = vrot.lane.b32.xlu0 %v4222, 32
      %v4270 = vpop.permute.xlu0 %4269
      %4279 = vrot.lane.b32.xlu0 %v4223, 48
      %v4280 = vpop.permute.xlu0 %4279
      %4281 = vrot.lane.b32.xlu0 %v4224, 48
      %v4282 = vpop.permute.xlu0 %4281
      %4283 = vrot.lane.b32.xlu0 %v4225, 48
      %v4284 = vpop.permute.xlu0 %4283
      %4285 = vrot.lane.b32.xlu0 %v4226, 48
      %v4286 = vpop.permute.xlu0 %4285
      %4295 = vrot.lane.b32.xlu0 %v4227, 64
      %v4296 = vpop.permute.xlu0 %4295
      %4297 = vrot.lane.b32.xlu0 %v4228, 64
      %v4298 = vpop.permute.xlu0 %4297
      %4299 = vrot.lane.b32.xlu0 %v4229, 64
      %v4300 = vpop.permute.xlu0 %4299
      %4301 = vrot.lane.b32.xlu0 %v4230, 64
      %v4302 = vpop.permute.xlu0 %4301
      %4311 = vrot.lane.b32.xlu0 %v4231, 80
      %v4312 = vpop.permute.xlu0 %4311
      %4313 = vrot.lane.b32.xlu0 %v4232, 80
      %v4314 = vpop.permute.xlu0 %4313
      %4315 = vrot.lane.b32.xlu0 %v4233, 80
      %v4316 = vpop.permute.xlu0 %4315
      %4317 = vrot.lane.b32.xlu0 %v4234, 80
      %v4318 = vpop.permute.xlu0 %4317
      %4327 = vrot.lane.b32.xlu0 %v4235, 96
      %v4328 = vpop.permute.xlu0 %4327
      %4329 = vrot.lane.b32.xlu0 %v4236, 96
      %v4330 = vpop.permute.xlu0 %4329
      %4331 = vrot.lane.b32.xlu0 %v4237, 96
      %v4332 = vpop.permute.xlu0 %4331
      %4333 = vrot.lane.b32.xlu0 %v4238, 96
      %v4334 = vpop.permute.xlu0 %4333
      %4343 = vrot.lane.b32.xlu0 %v4239, 112
      %v4344 = vpop.permute.xlu0 %4343
      %4345 = vrot.lane.b32.xlu0 %v4240, 112
      %v4346 = vpop.permute.xlu0 %4345
      %4347 = vrot.lane.b32.xlu0 %v4241, 112
      %v4348 = vpop.permute.xlu0 %4347
      %4349 = vrot.lane.b32.xlu0 %v4242, 112
      %v4350 = vpop.permute.xlu0 %4349
      %v4355 = vsel %vm636, %v4211, %v4248
      %v4356 = vsel %vm636, %v4212, %v4250
      %v4357 = vsel %vm636, %v4213, %v4252
      %v4358 = vsel %vm636, %v4214, %v4254
      %v4359 = vsel %vm641, %v4355, %v4264
      %v4360 = vsel %vm641, %v4356, %v4266
      %v4361 = vsel %vm641, %v4357, %v4268
      %v4362 = vsel %vm641, %v4358, %v4270
      %v4363 = vsel %vm646, %v4359, %v4280
      %v4364 = vsel %vm646, %v4360, %v4282
      %v4365 = vsel %vm646, %v4361, %v4284
      %v4366 = vsel %vm646, %v4362, %v4286
      %v4367 = vsel %vm651, %v4363, %v4296
      %v4368 = vsel %vm651, %v4364, %v4298
      %v4369 = vsel %vm651, %v4365, %v4300
      %v4370 = vsel %vm651, %v4366, %v4302
      %v4371 = vsel %vm656, %v4367, %v4312
      %v4372 = vsel %vm656, %v4368, %v4314
      %v4373 = vsel %vm656, %v4369, %v4316
      %v4374 = vsel %vm656, %v4370, %v4318
      %v4375 = vsel %vm661, %v4371, %v4328
      %v4376 = vsel %vm661, %v4372, %v4330
      %v4377 = vsel %vm661, %v4373, %v4332
      %v4378 = vsel %vm661, %v4374, %v4334
      %v4379 = vsel %vm666, %v4375, %v4344
      %v4380 = vsel %vm666, %v4376, %v4346
      %v4381 = vsel %vm666, %v4377, %v4348
      %v4382 = vsel %vm666, %v4378, %v4350
      %4383 = vst [vmem:[#allocation2] sm:$0xff] %v4379
      %4384 = vst [vmem:[#allocation2 + $0x20] sm:$0xff] %v4380
      %4385 = vst [vmem:[#allocation2 + $0x40] sm:$0xff] %v4381
      %4386 = vst [vmem:[#allocation2 + $0x60] sm:$0xff] %v4382
      %v4387 = vmul.f32 %v677, %v3361
      %v4388 = vmul.f32 %v681, %v3362
      %v4389 = vmul.f32 %v685, %v3363
      %v4390 = vmul.f32 %v689, %v3364
      %v4391 = vmul.f32 %v697, %v3361
      %v4392 = vmul.f32 %v701, %v3362
      %v4393 = vmul.f32 %v705, %v3363
      %v4394 = vmul.f32 %v709, %v3364
      %v4395 = vmul.f32 %v717, %v3361
      %v4396 = vmul.f32 %v721, %v3362
      %v4397 = vmul.f32 %v725, %v3363
      %v4398 = vmul.f32 %v729, %v3364
      %v4399 = vmul.f32 %v737, %v3361
      %v4400 = vmul.f32 %v741, %v3362
      %v4401 = vmul.f32 %v745, %v3363
      %v4402 = vmul.f32 %v749, %v3364
      %v4403 = vmul.f32 %v757, %v3361
      %v4404 = vmul.f32 %v761, %v3362
      %v4405 = vmul.f32 %v765, %v3363
      %v4406 = vmul.f32 %v769, %v3364
      %v4407 = vmul.f32 %v777, %v3361
      %v4408 = vmul.f32 %v781, %v3362
      %v4409 = vmul.f32 %v785, %v3363
      %v4410 = vmul.f32 %v789, %v3364
      %v4411 = vmul.f32 %v797, %v3361
      %v4412 = vmul.f32 %v801, %v3362
      %v4413 = vmul.f32 %v805, %v3363
      %v4414 = vmul.f32 %v809, %v3364
      %v4415 = vmul.f32 %v817, %v3361
      %v4416 = vmul.f32 %v821, %v3362
      %v4417 = vmul.f32 %v825, %v3363
      %v4418 = vmul.f32 %v829, %v3364
      %4423 = vrot.lane.b32.xlu0 %v4391, 16
      %v4424 = vpop.permute.xlu0 %4423
      %4425 = vrot.lane.b32.xlu0 %v4392, 16
      %v4426 = vpop.permute.xlu0 %4425
      %4427 = vrot.lane.b32.xlu0 %v4393, 16
      %v4428 = vpop.permute.xlu0 %4427
      %4429 = vrot.lane.b32.xlu0 %v4394, 16
      %v4430 = vpop.permute.xlu0 %4429
      %4439 = vrot.lane.b32.xlu0 %v4395, 32
      %v4440 = vpop.permute.xlu0 %4439
      %4441 = vrot.lane.b32.xlu0 %v4396, 32
      %v4442 = vpop.permute.xlu0 %4441
      %4443 = vrot.lane.b32.xlu0 %v4397, 32
      %v4444 = vpop.permute.xlu0 %4443
      %4445 = vrot.lane.b32.xlu0 %v4398, 32
      %v4446 = vpop.permute.xlu0 %4445
      %4455 = vrot.lane.b32.xlu0 %v4399, 48
      %v4456 = vpop.permute.xlu0 %4455
      %4457 = vrot.lane.b32.xlu0 %v4400, 48
      %v4458 = vpop.permute.xlu0 %4457
      %4459 = vrot.lane.b32.xlu0 %v4401, 48
      %v4460 = vpop.permute.xlu0 %4459
      %4461 = vrot.lane.b32.xlu0 %v4402, 48
      %v4462 = vpop.permute.xlu0 %4461
      %4471 = vrot.lane.b32.xlu0 %v4403, 64
      %v4472 = vpop.permute.xlu0 %4471
      %4473 = vrot.lane.b32.xlu0 %v4404, 64
      %v4474 = vpop.permute.xlu0 %4473
      %4475 = vrot.lane.b32.xlu0 %v4405, 64
      %v4476 = vpop.permute.xlu0 %4475
      %4477 = vrot.lane.b32.xlu0 %v4406, 64
      %v4478 = vpop.permute.xlu0 %4477
      %4487 = vrot.lane.b32.xlu0 %v4407, 80
      %v4488 = vpop.permute.xlu0 %4487
      %4489 = vrot.lane.b32.xlu0 %v4408, 80
      %v4490 = vpop.permute.xlu0 %4489
      %4491 = vrot.lane.b32.xlu0 %v4409, 80
      %v4492 = vpop.permute.xlu0 %4491
      %4493 = vrot.lane.b32.xlu0 %v4410, 80
      %v4494 = vpop.permute.xlu0 %4493
      %4503 = vrot.lane.b32.xlu0 %v4411, 96
      %v4504 = vpop.permute.xlu0 %4503
      %4505 = vrot.lane.b32.xlu0 %v4412, 96
      %v4506 = vpop.permute.xlu0 %4505
      %4507 = vrot.lane.b32.xlu0 %v4413, 96
      %v4508 = vpop.permute.xlu0 %4507
      %4509 = vrot.lane.b32.xlu0 %v4414, 96
      %v4510 = vpop.permute.xlu0 %4509
      %4519 = vrot.lane.b32.xlu0 %v4415, 112
      %v4520 = vpop.permute.xlu0 %4519
      %4521 = vrot.lane.b32.xlu0 %v4416, 112
      %v4522 = vpop.permute.xlu0 %4521
      %4523 = vrot.lane.b32.xlu0 %v4417, 112
      %v4524 = vpop.permute.xlu0 %4523
      %4525 = vrot.lane.b32.xlu0 %v4418, 112
      %v4526 = vpop.permute.xlu0 %4525
      %v4531 = vsel %vm636, %v4387, %v4424
      %v4532 = vsel %vm636, %v4388, %v4426
      %v4533 = vsel %vm636, %v4389, %v4428
      %v4534 = vsel %vm636, %v4390, %v4430
      %v4535 = vsel %vm641, %v4531, %v4440
      %v4536 = vsel %vm641, %v4532, %v4442
      %v4537 = vsel %vm641, %v4533, %v4444
      %v4538 = vsel %vm641, %v4534, %v4446
      %v4539 = vsel %vm646, %v4535, %v4456
      %v4540 = vsel %vm646, %v4536, %v4458
      %v4541 = vsel %vm646, %v4537, %v4460
      %v4542 = vsel %vm646, %v4538, %v4462
      %v4543 = vsel %vm651, %v4539, %v4472
      %v4544 = vsel %vm651, %v4540, %v4474
      %v4545 = vsel %vm651, %v4541, %v4476
      %v4546 = vsel %vm651, %v4542, %v4478
      %v4547 = vsel %vm656, %v4543, %v4488
      %v4548 = vsel %vm656, %v4544, %v4490
      %v4549 = vsel %vm656, %v4545, %v4492
      %v4550 = vsel %vm656, %v4546, %v4494
      %v4551 = vsel %vm661, %v4547, %v4504
      %v4552 = vsel %vm661, %v4548, %v4506
      %v4553 = vsel %vm661, %v4549, %v4508
      %v4554 = vsel %vm661, %v4550, %v4510
      %v4555 = vsel %vm666, %v4551, %v4520
      %v4556 = vsel %vm666, %v4552, %v4522
      %v4557 = vsel %vm666, %v4553, %v4524
      %v4558 = vsel %vm666, %v4554, %v4526
      %4559 = vst [vmem:[#allocation2 + $0x8] sm:$0xff] %v4555
      %4560 = vst [vmem:[#allocation2 + $0x28] sm:$0xff] %v4556
      %4561 = vst [vmem:[#allocation2 + $0x48] sm:$0xff] %v4557
      %4562 = vst [vmem:[#allocation2 + $0x68] sm:$0xff] %v4558
      %4563 = vrot.lane.b32.xlu0 %v3361, 16
      %v4564 = vpop.permute.xlu0 %4563
      %4565 = vrot.lane.b32.xlu0 %v3362, 16
      %v4566 = vpop.permute.xlu0 %4565
      %4567 = vrot.lane.b32.xlu0 %v3363, 16
      %v4568 = vpop.permute.xlu0 %4567
      %4569 = vrot.lane.b32.xlu0 %v3364, 16
      %v4570 = vpop.permute.xlu0 %4569
      %v4575 = vsel %vm636, %v4207, %v4564
      %v4576 = vsel %vm636, %v4208, %v4566
      %v4577 = vsel %vm636, %v4209, %v4568
      %v4578 = vsel %vm636, %v4210, %v4570
      %4579 = vst.msk [vmem:[%s329] sm:$0xff] %vm641, %v4575
      %4580 = vst.msk [vmem:[%s329 + $0x8] sm:$0xff] %vm641, %v4576
      %4581 = vst.msk [vmem:[%s329 + $0x10] sm:$0xff] %vm641, %v4577
      %4582 = vst.msk [vmem:[%s329 + $0x18] sm:$0xff] %vm641, %v4578
      %s4583 = smul.u32 4, %s19
      %p4584 = scmp.lt.s32.totalorder %s4583, 7
      %s4585 = scalar_select %p4584, %s4583, 7
      %s4586 = smul.addr %s4585, 8
      %s4587 = scalar_lea.vmem %s8, %s4586
      // Predicated region
      $region53: #{unfactored_gbm_forward.1} parent=51 // pred_check
        %p4588 = pneg %p215
      $region54: #{unfactored_gbm_forward.1} parent=51 // pred_check_branch
        %4590 = sbr.rel (%p4588) target = $region56
      $region55: #{unfactored_gbm_forward.1} parent=51 // pred_region
        %s4591 = smul.u32 4, %s19
      $region56: #{unfactored_gbm_forward.1} parent=51 // pred_fallthru
        _
    $region52: #{unfactored_gbm_forward.1} parent=5 // pred_fallthru
      _
    %p4592 = scmp.le.s32.totalorder 2, %s14
    // Predicated region
    $region57: #{unfactored_gbm_forward.1} parent=5 // pred_check
      %p4593 = pneg %p4592
    $region58: #{unfactored_gbm_forward.1} parent=5 // pred_check_branch
      %4595 = sbr.rel (%p4593) target = $region60
    $region59: #{unfactored_gbm_forward.1} parent=5 // pred_region
      %s4596 = ssub.s32 %s14, 2
      // Predicated region
      $region61: #{unfactored_gbm_forward.1} parent=59 // pred_check
        %p4597 = pneg %p221
      $region62: #{unfactored_gbm_forward.1} parent=59 // pred_check_branch
        %4599 = sbr.rel (%p4597) target = $region64
      $region63: #{unfactored_gbm_forward.1} parent=59 // pred_region
        %s4600 = smul.u32 4, %s20
        %p4601 = scmp.lt.s32.totalorder %s4600, 7
        %s4602 = scalar_select %p4601, %s4600, 7
        %s4603 = smul.addr %s4602, 8
        %s4604 = scalar_lea.vmem %s8, %s4603
      $region64: #{unfactored_gbm_forward.1} parent=59 // pred_fallthru
        _
    $region60: #{unfactored_gbm_forward.1} parent=5 // pred_fallthru
      _
  $region6: #{unfactored_gbm_forward.1} parent=0 // loop_footer
    %s18 = sadd.s32 1, %s14
  $region7: #{unfactored_gbm_forward.1} parent=0 // loop_footer_branch
    %13 = sbr.rel target = $region3
  $region8: #{unfactored_gbm_forward.1} parent=0 // loop_exit
    _

</llo_original>
